<compile_context>
chip_gen: v6e
topology: v6e:2x2x1
jax: 0.10.0
libtpu: 0.0.40
codegen_flags: <defaults>
</compile_context>

<pallas_src>
import functools
import math

import jax
import jax.numpy as jnp
from jax import lax
from jax.experimental import pallas as pl
from jax.experimental.pallas import tpu as pltpu


def _round_up(v, m):
    return ((v + m - 1) // m) * m


def _cdiv(a, b):
    return -(-a // b)


def convlstm_cell_kernel(taps_ref, w_ref, b_ref, mask_ref, c_ref, peep_ref,
                         ch_ref, cc_ref, *, k, p, W):
    """One (batch, spatial-tile) per grid step.  Channel-major, lane-dense.

    taps_ref : (Cin+Chid, tn+halo) bf16  channel-stacked x|h slab (zero padded)
    w_ref    : (k*k, 4*Chid, Cin+Chid) bf16  per-tap conv weights, gates i,f,c,o
    b_ref    : (4*Chid, 1) f32  biases (only the Wx* convs have bias)
    mask_ref : (k, tn) bf16  per-dx horizontal validity masks
    c_ref    : (Chid, tn) f32  previous cell state
    peep_ref : (3, Chid, tn) bf16  stacked peephole weights Wci|Wcf|Wco
    ch_ref, cc_ref : (Chid, tn) f32  outputs (new hidden, new cell)
    """
    hid = c_ref.shape[0]
    tn = c_ref.shape[1]

    # In-kernel im2col: k*k lane-shifted matmuls accumulated in f32 on the MXU.
    acc = jnp.zeros((4 * hid, tn), jnp.float32)
    for dy in range(k):
        for dx in range(k):
            tap = taps_ref[:, pl.ds(dy * W + dx, tn)]          # (Ct, tn) bf16
            if dx != p:
                # zero the columns where the flat shift wrapped into the
                # neighbouring image row (horizontal SAME-padding).
                tap = tap * mask_ref[dx:dx + 1, :]
            acc = acc + jnp.dot(w_ref[dy * k + dx], tap,
                                preferred_element_type=jnp.float32)
    acc = acc + b_ref[...]                                     # lane broadcast

    # Gate extraction = sublane (row) slices -> free.
    xi = acc[0 * hid:1 * hid, :]
    xf = acc[1 * hid:2 * hid, :]
    xg = acc[2 * hid:3 * hid, :]
    xo = acc[3 * hid:4 * hid, :]

    c_prev = c_ref[...]
    wci = peep_ref[0].astype(jnp.float32)
    wcf = peep_ref[1].astype(jnp.float32)
    wco = peep_ref[2].astype(jnp.float32)

    def sig(z):  # single-transcendental sigmoid: one EUP push per vreg
        return 0.5 * (jnp.tanh(0.5 * z) + 1.0)

    g = jnp.tanh(xg)
    ci = sig(xi + c_prev * wci)
    cf = sig(xf + c_prev * wcf)
    cc = cf * c_prev + ci * g
    co = sig(xo + cc * wco)
    ch_ref[...] = co * jnp.tanh(cc)                            # lane-dense stores
    cc_ref[...] = cc


def _pack_tap_weights(params, Cin, Chid, k):
    """OIHW conv weights -> (k*k, 4*Chid, Cin+Chid).

    One (G, Ct) matrix per kernel offset (dy, dx); rows = gates i,f,c,o
    stacked; columns = x channels then h channels (matches the taps slab).
    """
    def gate(wx, wh):
        wcat = jnp.concatenate([wx, wh], axis=1)               # (Chid, Ct, k, k)
        return jnp.transpose(wcat, (2, 3, 0, 1)).reshape(k * k, Chid, Cin + Chid)

    return jnp.concatenate(
        [gate(params["Wxi"], params["Whi"]),
         gate(params["Wxf"], params["Whf"]),
         gate(params["Wxc"], params["Whc"]),
         gate(params["Wxo"], params["Who"])], axis=1).astype(jnp.bfloat16)


def convlstm_cell_forward(x, h, c, params, *, vmem_budget_bytes=8 * 1024 * 1024):
    """x: (B, Cin, H, W); h, c: (B, Chid, H, W).  Returns (ch, cc) in NCHW."""
    B, Cin, H, W = x.shape
    Chid = h.shape[1]
    k = int(params["kernel_size"])       # assumed odd (SAME padding), as in the module
    p = (k - 1) // 2
    HW = H * W
    Ct = Cin + Chid
    G = 4 * Chid
    halo = 2 * p * W + 2 * p

    # ---- VMEM-budgeted, 128-aligned lane tile --------------------------------
    # per-lane streamed bytes: taps bf16 + c f32 + 3 peepholes bf16 + masks bf16
    # + 2 f32 outputs; x2 for double buffering.
    per_lane = 2 * Ct + 4 * Chid + 3 * 2 * Chid + 2 * k + 2 * 4 * Chid
    cap = vmem_budget_bytes // (2 * per_lane)
    cap = max(128, min(2048, (cap // 128) * 128))
    HW128 = _round_up(HW, 128)
    min_tiles = 2 if (B == 1 and HW128 >= 256) else 1   # keep both v7x TCs busy
    n_sp = max(min_tiles, _cdiv(HW128, cap))
    tn = _round_up(_cdiv(HW128, n_sp), 128)
    n_sp = _cdiv(HW128, tn)
    HWp = n_sp * tn                       # padded lane axis (multiple of 128)
    tnh = tn + halo

    # ---- taps: bf16 channel-stacked x|h, H zero-padded, flattened; one
    #      (Ct, tn+halo) slab per spatial tile (only the halo is duplicated) ---
    src = jnp.concatenate([x, h], axis=1).astype(jnp.bfloat16)         # (B,Ct,H,W)
    src = jnp.pad(src, ((0, 0), (0, 0), (p, p), (0, 0)))
    src = src.reshape(B, Ct, (H + 2 * p) * W)
    back = HWp + halo - (p + (H + 2 * p) * W)
    src = jnp.pad(src, ((0, 0), (0, 0), (p, max(back, 0))))            # (B,Ct,HWp+halo)
    taps = jnp.stack([src[:, :, j * tn:j * tn + tnh] for j in range(n_sp)],
                     axis=1)                                           # (B,n_sp,Ct,tnh)

    # ---- packed per-tap weights + bias ---------------------------------------
    # TODO(synk): when this cell runs inside a time-step scan, hoist the weight
    # packing / bias concat out of the per-step path (pack once, pass in).
    w_packed = _pack_tap_weights(params, Cin, Chid, k)                 # (k*k,G,Ct)
    bias = jnp.concatenate(
        [params["bxi"], params["bxf"], params["bxc"], params["bxo"]],
        axis=0).reshape(G, 1).astype(jnp.float32)

    # ---- per-dx horizontal validity masks ------------------------------------
    xpos = (jnp.arange(HWp, dtype=jnp.int32) % W)[None, :]             # (1,HWp)
    dxs = jnp.arange(k, dtype=jnp.int32)[:, None]                      # (k,1)
    shifted = xpos + dxs - p
    masks = ((shifted >= 0) & (shifted < W)).astype(jnp.bfloat16)      # (k,HWp)
    masks = masks.reshape(k, n_sp, tn).transpose(1, 0, 2)              # (n_sp,k,tn)

    # ---- state + stacked bf16 peepholes, lane-padded to HWp -------------------
    c_flat = jnp.pad(c.reshape(B, Chid, HW).astype(jnp.float32),
                     ((0, 0), (0, 0), (0, HWp - HW)))
    peep = jnp.stack([params["Wci"].reshape(Chid, HW),
                      params["Wcf"].reshape(Chid, HW),
                      params["Wco"].reshape(Chid, HW)], axis=0)
    peep = jnp.pad(peep, ((0, 0), (0, 0), (0, HWp - HW))).astype(jnp.bfloat16)

    # ---- Pallas kernel call ----------------------------------------------------
    kernel = functools.partial(convlstm_cell_kernel, k=k, p=p, W=W)
    out_shape = (jax.ShapeDtypeStruct((B, Chid, HWp), jnp.float32),
                 jax.ShapeDtypeStruct((B, Chid, HWp), jnp.float32))
    in_specs = [
        pl.BlockSpec((None, None, Ct, tnh), lambda b, j: (b, j, 0, 0)),  # taps slab
        pl.BlockSpec((k * k, G, Ct), lambda b, j: (0, 0, 0)),            # weights
        pl.BlockSpec((G, 1), lambda b, j: (0, 0)),                       # bias
        pl.BlockSpec((None, k, tn), lambda b, j: (j, 0, 0)),             # masks
        pl.BlockSpec((None, Chid, tn), lambda b, j: (b, 0, j)),          # c_prev
        pl.BlockSpec((3, Chid, tn), lambda b, j: (0, 0, j)),             # peepholes
    ]
    out_specs = (
        pl.BlockSpec((None, Chid, tn), lambda b, j: (b, 0, j)),
        pl.BlockSpec((None, Chid, tn), lambda b, j: (b, 0, j)),
    )

    ch_flat, cc_flat = pl.pallas_call(
        kernel,
        out_shape=out_shape,
        grid=(B, n_sp),
        in_specs=in_specs,
        out_specs=out_specs,
        compiler_params=pltpu.CompilerParams(
            dimension_semantics=("parallel", "parallel"),
            vmem_limit_bytes=32 * 1024 * 1024),
    )(taps, w_packed, bias, masks, c_flat, peep)

    # back to NCHW: slice off lane padding + pure reshape (no transpose)
    ch = ch_flat[:, :, :HW].reshape(B, Chid, H, W)
    cc = cc_flat[:, :, :HW].reshape(B, Chid, H, W)
    return ch, cc


def convlstm_cell_reference(x, h, c, params):
    """Pure-JAX f32 reference matching the PyTorch forward exactly (NCHW)."""
    def conv(inp, w, b=None):
        out = lax.conv_general_dilated(
            inp, w, window_strides=(1, 1), padding="SAME",
            dimension_numbers=("NCHW", "OIHW", "NCHW"))
        if b is not None:
            out = out + b[None, :, None, None]
        return out

    ci = jax.nn.sigmoid(conv(x, params["Wxi"], params["bxi"])
                        + conv(h, params["Whi"]) + c * params["Wci"])
    cf = jax.nn.sigmoid(conv(x, params["Wxf"], params["bxf"])
                        + conv(h, params["Whf"]) + c * params["Wcf"])
    cc = cf * c + ci * jnp.tanh(conv(x, params["Wxc"], params["bxc"])
                                + conv(h, params["Whc"]))
    co = jax.nn.sigmoid(conv(x, params["Wxo"], params["bxo"])
                        + conv(h, params["Who"]) + cc * params["Wco"])
    ch = co * jnp.tanh(cc)
    return ch, cc


def init_params(key, input_channels, hidden_channels, kernel_size, H, W):
    """Deterministic synthetic init mirroring the nn.Conv2d shapes."""
    keys = jax.random.split(key, 15)
    k = kernel_size

    def conv_w(kk_, cin, cout):
        bound = 1.0 / math.sqrt(cin * k * k)
        return jax.random.uniform(kk_, (cout, cin, k, k), jnp.float32,
                                  -bound, bound)

    def conv_b(kk_, cin, cout):
        bound = 1.0 / math.sqrt(cin * k * k)
        return jax.random.uniform(kk_, (cout,), jnp.float32, -bound, bound)

    params = {
        "kernel_size": k,
        "Wxi": conv_w(keys[0], input_channels, hidden_channels),
        "bxi": conv_b(keys[1], input_channels, hidden_channels),
        "Whi": conv_w(keys[2], hidden_channels, hidden_channels),
        "Wxf": conv_w(keys[3], input_channels, hidden_channels),
        "bxf": conv_b(keys[4], input_channels, hidden_channels),
        "Whf": conv_w(keys[5], hidden_channels, hidden_channels),
        "Wxc": conv_w(keys[6], input_channels, hidden_channels),
        "bxc": conv_b(keys[7], input_channels, hidden_channels),
        "Whc": conv_w(keys[8], hidden_channels, hidden_channels),
        "Wxo": conv_w(keys[9], input_channels, hidden_channels),
        "bxo": conv_b(keys[10], input_channels, hidden_channels),
        "Who": conv_w(keys[11], hidden_channels, hidden_channels),
        # init_hidden() creates these as zeros; use small random values so the
        # peephole (c * Wc{i,f,o}) path is exercised numerically.
        "Wci": 0.1 * jax.random.normal(keys[12], (1, hidden_channels, H, W),
                                       jnp.float32),
        "Wcf": 0.1 * jax.random.normal(keys[13], (1, hidden_channels, H, W),
                                       jnp.float32),
        "Wco": 0.1 * jax.random.normal(keys[14], (1, hidden_channels, H, W),
                                       jnp.float32),
    }
    return params


if __name__ == "__main__":
    B, Cin, Chid, H, W, K = 2, 4, 32, 16, 16, 3

    key = jax.random.PRNGKey(0)
    kx, kh, kc, kp = jax.random.split(key, 4)
    x = jax.random.normal(kx, (B, Cin, H, W), jnp.float32)
    # init_hidden() would give zeros for h, c; use random values to also
    # exercise the hidden-state conv and cell-state paths.
    h = jax.random.normal(kh, (B, Chid, H, W), jnp.float32) * 0.1
    c = jax.random.normal(kc, (B, Chid, H, W), jnp.float32) * 0.1

    params = init_params(kp, Cin, Chid, K, H, W)

    ch, cc = convlstm_cell_forward(x, h, c, params)
    jax.block_until_ready((ch, cc))

    ch_ref, cc_ref = convlstm_cell_reference(x, h, c, params)
    assert ch.shape == (B, Chid, H, W) and cc.shape == (B, Chid, H, W)
    # bf16 matmul operands / bf16 peepholes with f32 accumulation: observed
    # error ~1e-3 at these magnitudes.
    assert bool(jnp.allclose(ch, ch_ref, atol=2e-2, rtol=2e-2)), "ch mismatch"
    assert bool(jnp.allclose(cc, cc_ref, atol=2e-2, rtol=2e-2)), "cc mismatch"

    print("KERNEL_OK")
</pallas_src>

<mosaic_0001>
module attributes {stable_mosaic.version = 11 : i64} {
  func.func @convlstm_cell_kernel(%arg0: i32, %arg1: i32, %arg2: memref<1x1x36x290xbf16, #tpu.memory_space<vmem>>, %arg3: memref<9x128x36xbf16, #tpu.memory_space<vmem>>, %arg4: memref<128x1xf32, #tpu.memory_space<vmem>>, %arg5: memref<1x3x256xbf16, #tpu.memory_space<vmem>>, %arg6: memref<1x32x256xf32, #tpu.memory_space<vmem>>, %arg7: memref<3x32x256xbf16, #tpu.memory_space<vmem>>, %arg8: memref<1x32x256xf32, #tpu.memory_space<vmem>>, %arg9: memref<1x32x256xf32, #tpu.memory_space<vmem>>) attributes {dimension_semantics = [#tpu.dimension_semantics<parallel>, #tpu.dimension_semantics<parallel>], iteration_bounds = array<i64: 2, 1>, scalar_prefetch = 0 : i64, scratch_operands = 0 : i64, tpu.core_type = #tpu.core_type<tc>, window_params = [{transform_indices = @transform_0, window_bounds = array<i64: 1, 1, 36, 290>}, {pipeline_mode = #tpu.pipeline_mode<synchronous>, transform_indices = @transform_1, window_bounds = array<i64: 9, 128, 36>}, {pipeline_mode = #tpu.pipeline_mode<synchronous>, transform_indices = @transform_2, window_bounds = array<i64: 128, 1>}, {transform_indices = @transform_3, window_bounds = array<i64: 1, 3, 256>}, {transform_indices = @transform_4, window_bounds = array<i64: 1, 32, 256>}, {transform_indices = @transform_5, window_bounds = array<i64: 3, 32, 256>}, {transform_indices = @transform_6, window_bounds = array<i64: 1, 32, 256>}, {transform_indices = @transform_7, window_bounds = array<i64: 1, 32, 256>}]} {
    %cst = arith.constant 0.000000e+00 : f32
    %0 = vector.broadcast %cst : f32 to vector<128x256xf32>
    %c0 = arith.constant 0 : index
    %c0_0 = arith.constant 0 : index
    %c0_1 = arith.constant 0 : index
    %c0_2 = arith.constant 0 : index
    %1 = vector.load %arg2[%c0, %c0_0, %c0_1, %c0_2] : memref<1x1x36x290xbf16, #tpu.memory_space<vmem>>, vector<1x1x36x256xbf16>
    %2 = vector.shape_cast %1 : vector<1x1x36x256xbf16> to vector<36x256xbf16>
    %c0_3 = arith.constant 0 : index
    %c0_4 = arith.constant 0 : index
    %c0_5 = arith.constant 0 : index
    %3 = vector.load %arg5[%c0_3, %c0_4, %c0_5] : memref<1x3x256xbf16, #tpu.memory_space<vmem>>, vector<1x1x256xbf16>
    %4 = vector.shape_cast %3 : vector<1x1x256xbf16> to vector<1x256xbf16>
    %5 = vector.broadcast %4 : vector<1x256xbf16> to vector<36x256xbf16>
    %6 = arith.mulf %2, %5 : vector<36x256xbf16>
    %c0_6 = arith.constant 0 : index
    %c0_7 = arith.constant 0 : index
    %c0_8 = arith.constant 0 : index
    %7 = vector.load %arg3[%c0_6, %c0_7, %c0_8] : memref<9x128x36xbf16, #tpu.memory_space<vmem>>, vector<1x128x36xbf16>
    %8 = vector.shape_cast %7 : vector<1x128x36xbf16> to vector<128x36xbf16>
    %cst_9 = arith.constant dense<0.000000e+00> : vector<128x256xf32>
    %9 = tpu.matmul %8, %6, %cst_9 {dimension_numbers = #tpu.dot_dimension_numbers<[1], [0], [0], [1], [0, 0, 1, 1], [], []>} : vector<128x36xbf16>, vector<36x256xbf16>, vector<128x256xf32> -> vector<128x256xf32>
    %10 = arith.addf %0, %9 : vector<128x256xf32>
    %c0_10 = arith.constant 0 : index
    %c0_11 = arith.constant 0 : index
    %c0_12 = arith.constant 0 : index
    %c1 = arith.constant 1 : index
    %11 = vector.load %arg2[%c0_10, %c0_11, %c0_12, %c1] : memref<1x1x36x290xbf16, #tpu.memory_space<vmem>>, vector<1x1x36x256xbf16>
    %12 = vector.shape_cast %11 : vector<1x1x36x256xbf16> to vector<36x256xbf16>
    %c1_13 = arith.constant 1 : index
    %c0_14 = arith.constant 0 : index
    %c0_15 = arith.constant 0 : index
    %13 = vector.load %arg3[%c1_13, %c0_14, %c0_15] : memref<9x128x36xbf16, #tpu.memory_space<vmem>>, vector<1x128x36xbf16>
    %14 = vector.shape_cast %13 : vector<1x128x36xbf16> to vector<128x36xbf16>
    %cst_16 = arith.constant dense<0.000000e+00> : vector<128x256xf32>
    %15 = tpu.matmul %14, %12, %cst_16 {dimension_numbers = #tpu.dot_dimension_numbers<[1], [0], [0], [1], [0, 0, 1, 1], [], []>} : vector<128x36xbf16>, vector<36x256xbf16>, vector<128x256xf32> -> vector<128x256xf32>
    %16 = arith.addf %10, %15 : vector<128x256xf32>
    %c0_17 = arith.constant 0 : index
    %c0_18 = arith.constant 0 : index
    %c0_19 = arith.constant 0 : index
    %c2 = arith.constant 2 : index
    %17 = vector.load %arg2[%c0_17, %c0_18, %c0_19, %c2] : memref<1x1x36x290xbf16, #tpu.memory_space<vmem>>, vector<1x1x36x256xbf16>
    %18 = vector.shape_cast %17 : vector<1x1x36x256xbf16> to vector<36x256xbf16>
    %c0_20 = arith.constant 0 : index
    %c2_21 = arith.constant 2 : index
    %c0_22 = arith.constant 0 : index
    %19 = vector.load %arg5[%c0_20, %c2_21, %c0_22] : memref<1x3x256xbf16, #tpu.memory_space<vmem>>, vector<1x1x256xbf16>
    %20 = vector.shape_cast %19 : vector<1x1x256xbf16> to vector<1x256xbf16>
    %21 = vector.broadcast %20 : vector<1x256xbf16> to vector<36x256xbf16>
    %22 = arith.mulf %18, %21 : vector<36x256xbf16>
    %c2_23 = arith.constant 2 : index
    %c0_24 = arith.constant 0 : index
    %c0_25 = arith.constant 0 : index
    %23 = vector.load %arg3[%c2_23, %c0_24, %c0_25] : memref<9x128x36xbf16, #tpu.memory_space<vmem>>, vector<1x128x36xbf16>
    %24 = vector.shape_cast %23 : vector<1x128x36xbf16> to vector<128x36xbf16>
    %cst_26 = arith.constant dense<0.000000e+00> : vector<128x256xf32>
    %25 = tpu.matmul %24, %22, %cst_26 {dimension_numbers = #tpu.dot_dimension_numbers<[1], [0], [0], [1], [0, 0, 1, 1], [], []>} : vector<128x36xbf16>, vector<36x256xbf16>, vector<128x256xf32> -> vector<128x256xf32>
    %26 = arith.addf %16, %25 : vector<128x256xf32>
    %c0_27 = arith.constant 0 : index
    %c0_28 = arith.constant 0 : index
    %c0_29 = arith.constant 0 : index
    %c16 = arith.constant 16 : index
    %27 = vector.load %arg2[%c0_27, %c0_28, %c0_29, %c16] : memref<1x1x36x290xbf16, #tpu.memory_space<vmem>>, vector<1x1x36x256xbf16>
    %28 = vector.shape_cast %27 : vector<1x1x36x256xbf16> to vector<36x256xbf16>
    %c0_30 = arith.constant 0 : index
    %c0_31 = arith.constant 0 : index
    %c0_32 = arith.constant 0 : index
    %29 = vector.load %arg5[%c0_30, %c0_31, %c0_32] : memref<1x3x256xbf16, #tpu.memory_space<vmem>>, vector<1x1x256xbf16>
    %30 = vector.shape_cast %29 : vector<1x1x256xbf16> to vector<1x256xbf16>
    %31 = vector.broadcast %30 : vector<1x256xbf16> to vector<36x256xbf16>
    %32 = arith.mulf %28, %31 : vector<36x256xbf16>
    %c3 = arith.constant 3 : index
    %c0_33 = arith.constant 0 : index
    %c0_34 = arith.constant 0 : index
    %33 = vector.load %arg3[%c3, %c0_33, %c0_34] : memref<9x128x36xbf16, #tpu.memory_space<vmem>>, vector<1x128x36xbf16>
    %34 = vector.shape_cast %33 : vector<1x128x36xbf16> to vector<128x36xbf16>
    %cst_35 = arith.constant dense<0.000000e+00> : vector<128x256xf32>
    %35 = tpu.matmul %34, %32, %cst_35 {dimension_numbers = #tpu.dot_dimension_numbers<[1], [0], [0], [1], [0, 0, 1, 1], [], []>} : vector<128x36xbf16>, vector<36x256xbf16>, vector<128x256xf32> -> vector<128x256xf32>
    %36 = arith.addf %26, %35 : vector<128x256xf32>
    %c0_36 = arith.constant 0 : index
    %c0_37 = arith.constant 0 : index
    %c0_38 = arith.constant 0 : index
    %c17 = arith.constant 17 : index
    %37 = vector.load %arg2[%c0_36, %c0_37, %c0_38, %c17] : memref<1x1x36x290xbf16, #tpu.memory_space<vmem>>, vector<1x1x36x256xbf16>
    %38 = vector.shape_cast %37 : vector<1x1x36x256xbf16> to vector<36x256xbf16>
    %c4 = arith.constant 4 : index
    %c0_39 = arith.constant 0 : index
    %c0_40 = arith.constant 0 : index
    %39 = vector.load %arg3[%c4, %c0_39, %c0_40] : memref<9x128x36xbf16, #tpu.memory_space<vmem>>, vector<1x128x36xbf16>
    %40 = vector.shape_cast %39 : vector<1x128x36xbf16> to vector<128x36xbf16>
    %cst_41 = arith.constant dense<0.000000e+00> : vector<128x256xf32>
    %41 = tpu.matmul %40, %38, %cst_41 {dimension_numbers = #tpu.dot_dimension_numbers<[1], [0], [0], [1], [0, 0, 1, 1], [], []>} : vector<128x36xbf16>, vector<36x256xbf16>, vector<128x256xf32> -> vector<128x256xf32>
    %42 = arith.addf %36, %41 : vector<128x256xf32>
    %c0_42 = arith.constant 0 : index
    %c0_43 = arith.constant 0 : index
    %c0_44 = arith.constant 0 : index
    %c18 = arith.constant 18 : index
    %43 = vector.load %arg2[%c0_42, %c0_43, %c0_44, %c18] : memref<1x1x36x290xbf16, #tpu.memory_space<vmem>>, vector<1x1x36x256xbf16>
    %44 = vector.shape_cast %43 : vector<1x1x36x256xbf16> to vector<36x256xbf16>
    %c0_45 = arith.constant 0 : index
    %c2_46 = arith.constant 2 : index
    %c0_47 = arith.constant 0 : index
    %45 = vector.load %arg5[%c0_45, %c2_46, %c0_47] : memref<1x3x256xbf16, #tpu.memory_space<vmem>>, vector<1x1x256xbf16>
    %46 = vector.shape_cast %45 : vector<1x1x256xbf16> to vector<1x256xbf16>
    %47 = vector.broadcast %46 : vector<1x256xbf16> to vector<36x256xbf16>
    %48 = arith.mulf %44, %47 : vector<36x256xbf16>
    %c5 = arith.constant 5 : index
    %c0_48 = arith.constant 0 : index
    %c0_49 = arith.constant 0 : index
    %49 = vector.load %arg3[%c5, %c0_48, %c0_49] : memref<9x128x36xbf16, #tpu.memory_space<vmem>>, vector<1x128x36xbf16>
    %50 = vector.shape_cast %49 : vector<1x128x36xbf16> to vector<128x36xbf16>
    %cst_50 = arith.constant dense<0.000000e+00> : vector<128x256xf32>
    %51 = tpu.matmul %50, %48, %cst_50 {dimension_numbers = #tpu.dot_dimension_numbers<[1], [0], [0], [1], [0, 0, 1, 1], [], []>} : vector<128x36xbf16>, vector<36x256xbf16>, vector<128x256xf32> -> vector<128x256xf32>
    %52 = arith.addf %42, %51 : vector<128x256xf32>
    %c0_51 = arith.constant 0 : index
    %c0_52 = arith.constant 0 : index
    %c0_53 = arith.constant 0 : index
    %c32 = arith.constant 32 : index
    %53 = vector.load %arg2[%c0_51, %c0_52, %c0_53, %c32] : memref<1x1x36x290xbf16, #tpu.memory_space<vmem>>, vector<1x1x36x256xbf16>
    %54 = vector.shape_cast %53 : vector<1x1x36x256xbf16> to vector<36x256xbf16>
    %c0_54 = arith.constant 0 : index
    %c0_55 = arith.constant 0 : index
    %c0_56 = arith.constant 0 : index
    %55 = vector.load %arg5[%c0_54, %c0_55, %c0_56] : memref<1x3x256xbf16, #tpu.memory_space<vmem>>, vector<1x1x256xbf16>
    %56 = vector.shape_cast %55 : vector<1x1x256xbf16> to vector<1x256xbf16>
    %57 = vector.broadcast %56 : vector<1x256xbf16> to vector<36x256xbf16>
    %58 = arith.mulf %54, %57 : vector<36x256xbf16>
    %c6 = arith.constant 6 : index
    %c0_57 = arith.constant 0 : index
    %c0_58 = arith.constant 0 : index
    %59 = vector.load %arg3[%c6, %c0_57, %c0_58] : memref<9x128x36xbf16, #tpu.memory_space<vmem>>, vector<1x128x36xbf16>
    %60 = vector.shape_cast %59 : vector<1x128x36xbf16> to vector<128x36xbf16>
    %cst_59 = arith.constant dense<0.000000e+00> : vector<128x256xf32>
    %61 = tpu.matmul %60, %58, %cst_59 {dimension_numbers = #tpu.dot_dimension_numbers<[1], [0], [0], [1], [0, 0, 1, 1], [], []>} : vector<128x36xbf16>, vector<36x256xbf16>, vector<128x256xf32> -> vector<128x256xf32>
    %62 = arith.addf %52, %61 : vector<128x256xf32>
    %c0_60 = arith.constant 0 : index
    %c0_61 = arith.constant 0 : index
    %c0_62 = arith.constant 0 : index
    %c33 = arith.constant 33 : index
    %63 = vector.load %arg2[%c0_60, %c0_61, %c0_62, %c33] : memref<1x1x36x290xbf16, #tpu.memory_space<vmem>>, vector<1x1x36x256xbf16>
    %64 = vector.shape_cast %63 : vector<1x1x36x256xbf16> to vector<36x256xbf16>
    %c7 = arith.constant 7 : index
    %c0_63 = arith.constant 0 : index
    %c0_64 = arith.constant 0 : index
    %65 = vector.load %arg3[%c7, %c0_63, %c0_64] : memref<9x128x36xbf16, #tpu.memory_space<vmem>>, vector<1x128x36xbf16>
    %66 = vector.shape_cast %65 : vector<1x128x36xbf16> to vector<128x36xbf16>
    %cst_65 = arith.constant dense<0.000000e+00> : vector<128x256xf32>
    %67 = tpu.matmul %66, %64, %cst_65 {dimension_numbers = #tpu.dot_dimension_numbers<[1], [0], [0], [1], [0, 0, 1, 1], [], []>} : vector<128x36xbf16>, vector<36x256xbf16>, vector<128x256xf32> -> vector<128x256xf32>
    %68 = arith.addf %62, %67 : vector<128x256xf32>
    %c0_66 = arith.constant 0 : index
    %c0_67 = arith.constant 0 : index
    %c0_68 = arith.constant 0 : index
    %c34 = arith.constant 34 : index
    %69 = vector.load %arg2[%c0_66, %c0_67, %c0_68, %c34] : memref<1x1x36x290xbf16, #tpu.memory_space<vmem>>, vector<1x1x36x256xbf16>
    %70 = vector.shape_cast %69 : vector<1x1x36x256xbf16> to vector<36x256xbf16>
    %c0_69 = arith.constant 0 : index
    %c2_70 = arith.constant 2 : index
    %c0_71 = arith.constant 0 : index
    %71 = vector.load %arg5[%c0_69, %c2_70, %c0_71] : memref<1x3x256xbf16, #tpu.memory_space<vmem>>, vector<1x1x256xbf16>
    %72 = vector.shape_cast %71 : vector<1x1x256xbf16> to vector<1x256xbf16>
    %73 = vector.broadcast %72 : vector<1x256xbf16> to vector<36x256xbf16>
    %74 = arith.mulf %70, %73 : vector<36x256xbf16>
    %c8 = arith.constant 8 : index
    %c0_72 = arith.constant 0 : index
    %c0_73 = arith.constant 0 : index
    %75 = vector.load %arg3[%c8, %c0_72, %c0_73] : memref<9x128x36xbf16, #tpu.memory_space<vmem>>, vector<1x128x36xbf16>
    %76 = vector.shape_cast %75 : vector<1x128x36xbf16> to vector<128x36xbf16>
    %cst_74 = arith.constant dense<0.000000e+00> : vector<128x256xf32>
    %77 = tpu.matmul %76, %74, %cst_74 {dimension_numbers = #tpu.dot_dimension_numbers<[1], [0], [0], [1], [0, 0, 1, 1], [], []>} : vector<128x36xbf16>, vector<36x256xbf16>, vector<128x256xf32> -> vector<128x256xf32>
    %78 = arith.addf %68, %77 : vector<128x256xf32>
    %c0_75 = arith.constant 0 : index
    %c0_76 = arith.constant 0 : index
    %79 = vector.load %arg4[%c0_75, %c0_76] : memref<128x1xf32, #tpu.memory_space<vmem>>, vector<128x1xf32>
    %80 = vector.broadcast %79 : vector<128x1xf32> to vector<128x256xf32>
    %81 = arith.addf %78, %80 : vector<128x256xf32>
    %82 = vector.extract_strided_slice %81 {offsets = [0, 0], sizes = [32, 256], strides = [1, 1]} : vector<128x256xf32> to vector<32x256xf32>
    %83 = vector.extract_strided_slice %81 {offsets = [32, 0], sizes = [32, 256], strides = [1, 1]} : vector<128x256xf32> to vector<32x256xf32>
    %84 = vector.extract_strided_slice %81 {offsets = [64, 0], sizes = [32, 256], strides = [1, 1]} : vector<128x256xf32> to vector<32x256xf32>
    %85 = vector.extract_strided_slice %81 {offsets = [96, 0], sizes = [32, 256], strides = [1, 1]} : vector<128x256xf32> to vector<32x256xf32>
    %c0_77 = arith.constant 0 : index
    %c0_78 = arith.constant 0 : index
    %c0_79 = arith.constant 0 : index
    %86 = vector.load %arg6[%c0_77, %c0_78, %c0_79] : memref<1x32x256xf32, #tpu.memory_space<vmem>>, vector<1x32x256xf32>
    %87 = vector.shape_cast %86 : vector<1x32x256xf32> to vector<32x256xf32>
    %c0_80 = arith.constant 0 : index
    %c0_81 = arith.constant 0 : index
    %c0_82 = arith.constant 0 : index
    %88 = vector.load %arg7[%c0_80, %c0_81, %c0_82] : memref<3x32x256xbf16, #tpu.memory_space<vmem>>, vector<1x32x256xbf16>
    %89 = vector.shape_cast %88 : vector<1x32x256xbf16> to vector<32x256xbf16>
    %90 = arith.extf %89 : vector<32x256xbf16> to vector<32x256xf32>
    %c1_83 = arith.constant 1 : index
    %c0_84 = arith.constant 0 : index
    %c0_85 = arith.constant 0 : index
    %91 = vector.load %arg7[%c1_83, %c0_84, %c0_85] : memref<3x32x256xbf16, #tpu.memory_space<vmem>>, vector<1x32x256xbf16>
    %92 = vector.shape_cast %91 : vector<1x32x256xbf16> to vector<32x256xbf16>
    %93 = arith.extf %92 : vector<32x256xbf16> to vector<32x256xf32>
    %c2_86 = arith.constant 2 : index
    %c0_87 = arith.constant 0 : index
    %c0_88 = arith.constant 0 : index
    %94 = vector.load %arg7[%c2_86, %c0_87, %c0_88] : memref<3x32x256xbf16, #tpu.memory_space<vmem>>, vector<1x32x256xbf16>
    %95 = vector.shape_cast %94 : vector<1x32x256xbf16> to vector<32x256xbf16>
    %96 = arith.extf %95 : vector<32x256xbf16> to vector<32x256xf32>
    %97 = math.tanh %84 : vector<32x256xf32>
    %98 = arith.mulf %87, %90 : vector<32x256xf32>
    %99 = arith.addf %82, %98 : vector<32x256xf32>
    %cst_89 = arith.constant 5.000000e-01 : f32
    %100 = vector.broadcast %cst_89 : f32 to vector<32x256xf32>
    %101 = arith.mulf %100, %99 : vector<32x256xf32>
    %102 = math.tanh %101 : vector<32x256xf32>
    %cst_90 = arith.constant 1.000000e+00 : f32
    %103 = vector.broadcast %cst_90 : f32 to vector<32x256xf32>
    %104 = arith.addf %102, %103 : vector<32x256xf32>
    %cst_91 = arith.constant 5.000000e-01 : f32
    %105 = vector.broadcast %cst_91 : f32 to vector<32x256xf32>
    %106 = arith.mulf %105, %104 : vector<32x256xf32>
    %107 = arith.mulf %87, %93 : vector<32x256xf32>
    %108 = arith.addf %83, %107 : vector<32x256xf32>
    %cst_92 = arith.constant 5.000000e-01 : f32
    %109 = vector.broadcast %cst_92 : f32 to vector<32x256xf32>
    %110 = arith.mulf %109, %108 : vector<32x256xf32>
    %111 = math.tanh %110 : vector<32x256xf32>
    %cst_93 = arith.constant 1.000000e+00 : f32
    %112 = vector.broadcast %cst_93 : f32 to vector<32x256xf32>
    %113 = arith.addf %111, %112 : vector<32x256xf32>
    %cst_94 = arith.constant 5.000000e-01 : f32
    %114 = vector.broadcast %cst_94 : f32 to vector<32x256xf32>
    %115 = arith.mulf %114, %113 : vector<32x256xf32>
    %116 = arith.mulf %115, %87 : vector<32x256xf32>
    %117 = arith.mulf %106, %97 : vector<32x256xf32>
    %118 = arith.addf %116, %117 : vector<32x256xf32>
    %119 = arith.mulf %118, %96 : vector<32x256xf32>
    %120 = arith.addf %85, %119 : vector<32x256xf32>
    %cst_95 = arith.constant 5.000000e-01 : f32
    %121 = vector.broadcast %cst_95 : f32 to vector<32x256xf32>
    %122 = arith.mulf %121, %120 : vector<32x256xf32>
    %123 = math.tanh %122 : vector<32x256xf32>
    %cst_96 = arith.constant 1.000000e+00 : f32
    %124 = vector.broadcast %cst_96 : f32 to vector<32x256xf32>
    %125 = arith.addf %123, %124 : vector<32x256xf32>
    %cst_97 = arith.constant 5.000000e-01 : f32
    %126 = vector.broadcast %cst_97 : f32 to vector<32x256xf32>
    %127 = arith.mulf %126, %125 : vector<32x256xf32>
    %128 = math.tanh %118 : vector<32x256xf32>
    %129 = arith.mulf %127, %128 : vector<32x256xf32>
    %c0_98 = arith.constant 0 : index
    %c0_99 = arith.constant 0 : index
    %c0_100 = arith.constant 0 : index
    %130 = vector.load %arg8[%c0_98, %c0_99, %c0_100] : memref<1x32x256xf32, #tpu.memory_space<vmem>>, vector<1x32x256xf32>
    %131 = vector.shape_cast %130 : vector<1x32x256xf32> to vector<32x256xf32>
    %132 = vector.shape_cast %129 : vector<32x256xf32> to vector<1x32x256xf32>
    tpu.vector_store %arg8[%c0_98, %c0_99, %c0_100], %132 {strides = array<i32>} : memref<1x32x256xf32, #tpu.memory_space<vmem>>, vector<1x32x256xf32>,
    %c0_101 = arith.constant 0 : index
    %c0_102 = arith.constant 0 : index
    %c0_103 = arith.constant 0 : index
    %133 = vector.load %arg9[%c0_101, %c0_102, %c0_103] : memref<1x32x256xf32, #tpu.memory_space<vmem>>, vector<1x32x256xf32>
    %134 = vector.shape_cast %133 : vector<1x32x256xf32> to vector<32x256xf32>
    %135 = vector.shape_cast %118 : vector<32x256xf32> to vector<1x32x256xf32>
    tpu.vector_store %arg9[%c0_101, %c0_102, %c0_103], %135 {strides = array<i32>} : memref<1x32x256xf32, #tpu.memory_space<vmem>>, vector<1x32x256xf32>,
    return
  }
  func.func @transform_0(%arg0: i32, %arg1: i32) -> (i32, i32, i32, i32) {
    %c0_i32 = arith.constant 0 : i32
    %c0_i32_0 = arith.constant 0 : i32
    %c0_i32_1 = arith.constant 0 : i32
    return %arg0, %arg1, %c0_i32, %c0_i32_0 : i32, i32, i32, i32
  }
  func.func @transform_1(%arg0: i32, %arg1: i32) -> (i32, i32, i32) {
    %c0_i32 = arith.constant 0 : i32
    %c0_i32_0 = arith.constant 0 : i32
    %c0_i32_1 = arith.constant 0 : i32
    %c0_i32_2 = arith.constant 0 : i32
    return %c0_i32, %c0_i32_0, %c0_i32_1 : i32, i32, i32
  }
  func.func @transform_2(%arg0: i32, %arg1: i32) -> (i32, i32) {
    %c0_i32 = arith.constant 0 : i32
    %c0_i32_0 = arith.constant 0 : i32
    %c0_i32_1 = arith.constant 0 : i32
    return %c0_i32, %c0_i32_0 : i32, i32
  }
  func.func @transform_3(%arg0: i32, %arg1: i32) -> (i32, i32, i32) {
    %c0_i32 = arith.constant 0 : i32
    %c0_i32_0 = arith.constant 0 : i32
    %c0_i32_1 = arith.constant 0 : i32
    return %arg1, %c0_i32, %c0_i32_0 : i32, i32, i32
  }
  func.func @transform_4(%arg0: i32, %arg1: i32) -> (i32, i32, i32) {
    %c0_i32 = arith.constant 0 : i32
    %c0_i32_0 = arith.constant 0 : i32
    return %arg0, %c0_i32, %arg1 : i32, i32, i32
  }
  func.func @transform_5(%arg0: i32, %arg1: i32) -> (i32, i32, i32) {
    %c0_i32 = arith.constant 0 : i32
    %c0_i32_0 = arith.constant 0 : i32
    %c0_i32_1 = arith.constant 0 : i32
    return %c0_i32, %c0_i32_0, %arg1 : i32, i32, i32
  }
  func.func @transform_6(%arg0: i32, %arg1: i32) -> (i32, i32, i32) {
    %c0_i32 = arith.constant 0 : i32
    %c0_i32_0 = arith.constant 0 : i32
    return %arg0, %c0_i32, %arg1 : i32, i32, i32
  }
  func.func @transform_7(%arg0: i32, %arg1: i32) -> (i32, i32, i32) {
    %c0_i32 = arith.constant 0 : i32
    %c0_i32_0 = arith.constant 0 : i32
    return %arg0, %c0_i32, %arg1 : i32, i32, i32
  }
}

</mosaic_0001>

<llo_original>
// kernel: tpu_custom_call.1
$region0: #{tpu_custom_call.1}
  #allocation0 [shape = 'u32[]', space=smem, size = 0x4, offset = 0x4, fixed_abs, tag = 'smem constant byte address 0x4 - core index']
  #allocation1 [shape = 'u32[144,128]{1,0:T(1,128)}', space=vmem, size = 0x12000, scoped, tag = 'internal scratch']
  %s0 = inlined_call_operand.vmem [shape: bf16[2,1,36,290], index: 0, kind: input, shape index: {}]
  %s1 = inlined_call_operand.vmem [shape: bf16[9,128,36], index: 1, kind: input, shape index: {}]
  %s2 = inlined_call_operand.vmem [shape: f32[128,1], index: 2, kind: input, shape index: {}]
  %s3 = inlined_call_operand.vmem [shape: bf16[1,3,256], index: 3, kind: input, shape index: {}]
  %s4 = inlined_call_operand.vmem [shape: f32[2,32,256], index: 4, kind: input, shape index: {}]
  %s5 = inlined_call_operand.vmem [shape: bf16[3,32,256], index: 5, kind: input, shape index: {}]
  %s6 = inlined_call_operand.hbm [shape: f32[2,32,256], index: 6, kind: output, shape index: {0}]
  %s7 = inlined_call_operand.hbm [shape: f32[2,32,256], index: 7, kind: output, shape index: {1}]
  %8 = xla_tuple %s6, %s7
  %s9 = sld [smem:[#allocation0]]
  $region65: #{tpu_custom_call.1} parent=0
    _
  %s11 = ssub.s32 1, %s9
  %s12 = scalar_select 0, %s11, %s9
  $region1: #{tpu_custom_call.1} parent=0
    #allocation2 [shape = 'u8[65536]{0}', space=vmem, size = 0x10000, scoped, tag = 'output window, operand 0']
    #allocation3 [shape = 's32[2]{0}', space=sflag, size = 0x8, scoped, tag = 'scoped memory for tpu_custom_call.1']
    #allocation4 [shape = 'u8[65536]{0}', space=vmem, size = 0x10000, scoped, tag = 'output window, operand 1']
    #allocation5 [shape = 's32[2]{0}', space=sflag, size = 0x8, scoped, tag = 'scoped memory for tpu_custom_call.1']
    %13 = vsyncpa [#allocation3], 0
    %s14 = scalar_lea.sflag [#allocation3], 1
    %15 = vsyncpa %s14, 0
    %16 = vsyncpa [#allocation5], 0
    %s17 = scalar_lea.sflag [#allocation5], 1
    %18 = vsyncpa %s17, 0
    loop: start=0, step=1, limit=4
    $region2: #{tpu_custom_call.1} parent=1 // loop_pre_header
      _
    $region3: #{tpu_custom_call.1} parent=1 // loop_header
      %s20 = sphi 0, %s24
      %p21 = scmp.ge.s32.totalorder %s20, 4
      %s27 = sphi 0, %s39
      %s28 = sphi 0, %s35
      %s29 = sphi 0, %s27
      %s30 = sphi 0, %s28
      %s31 = sphi 0, %s29
      %s32 = sphi 0, %s30
      %s44 = sphi 0, %s46
      %s47 = sphi 0, %s44
      %s48 = sphi 0, %s47
      %s64 = sphi 0, %s48
      %s68 = sphi 0, %s68
      %s70 = sphi 0, %s68
      %s71 = sphi 0, %s70
      %s85 = sphi 0, %s71
      %s89 = sphi 0, %s89
      %s91 = sphi 0, %s89
      %s92 = sphi 0, %s91
      %s106 = sphi 0, %s92
      %s112 = sphi 0, %s114
      %s115 = sphi 0, %s112
      %s116 = sphi 0, %s115
      %s132 = sphi 0, %s116
      %s140 = sphi 0, %s142
      %s143 = sphi 0, %s140
      %s144 = sphi 0, %s143
      %s160 = sphi 0, %s144
      %s166 = sphi 0, %s168
      %s169 = sphi 0, %s166
      %s170 = sphi 0, %s169
      %s186 = sphi 0, %s170
      %s194 = sphi 0, %s196
      %s197 = sphi 0, %s194
      %s198 = sphi 0, %s197
      %s214 = sphi 0, %s198
      %s222 = sphi 0, %s224
      %s225 = sphi 0, %s222
      %s226 = sphi 0, %s225
      %s242 = sphi 0, %s226
    $region4: #{tpu_custom_call.1} parent=1 // loop_header_branch
      %23 = sbr.rel (%p21) target = $region8
    $region5: #{tpu_custom_call.1} parent=1 // loop_body
      %s25 = ssub.s32 %s20, 1
      %s26 = ssub.s32 %s20, 2
      %s33 = sadd.s32 1, %s28
      %p34 = scmp.ge.s32.totalorder %s33, 1
      %s35 = scalar_select %p34, 0, %s33
      %s36 = sadd.s32 1, %s27
      %s37 = scalar_select %p34, %s36, %s27
      %p38 = scmp.ge.s32.totalorder %s37, 2
      %s39 = scalar_select %p38, 0, %s37
      %s40 = ssub.s32 %s27, %s39
      %s41 = ssub.s32 %s28, %s35
      %s42 = sor.u32 %s40, %s41
      %p43 = scmp.eq.s32.totalorder %s42, 0
      %s45 = sadd.s32 %s44, 1
      %s46 = scalar_select %p43, %s44, %s45
      %p49 = pneg %p43
      %p50 = scmp.eq.s32.totalorder %s20, 1
      %p51 = por %p49, %p50
      %p52 = scmp.ne.s32.totalorder %s44, %s47
      %p53 = scmp.eq.s32.totalorder %s20, 0
      %p54 = por %p52, %p53
      %p55 = scmp.ne.s32.totalorder %s44, %s47
      %p56 = scmp.eq.s32.totalorder %s25, 1
      %p57 = por %p55, %p56
      %p58 = scmp.ne.s32.totalorder %s47, %s48
      %p59 = scmp.eq.s32.totalorder %s25, 0
      %p60 = por %p58, %p59
      %p61 = scmp.ne.s32.totalorder %s47, %s48
      %p62 = scmp.eq.s32.totalorder %s26, 1
      %p63 = por %p61, %p62
      %p65 = scmp.ne.s32.totalorder %s48, %s64
      %p66 = scmp.eq.s32.totalorder %s26, 0
      %p67 = por %p65, %p66
      %s69 = sadd.s32 %s68, 1
      %p72 = scmp.eq.s32.totalorder %s20, 1
      %p73 = scmp.ne.s32.totalorder %s68, %s70
      %p74 = scmp.eq.s32.totalorder %s20, 0
      %p75 = por %p73, %p74
      %p76 = scmp.ne.s32.totalorder %s68, %s70
      %p77 = scmp.eq.s32.totalorder %s25, 1
      %p78 = por %p76, %p77
      %p79 = scmp.ne.s32.totalorder %s70, %s71
      %p80 = scmp.eq.s32.totalorder %s25, 0
      %p81 = por %p79, %p80
      %p82 = scmp.ne.s32.totalorder %s70, %s71
      %p83 = scmp.eq.s32.totalorder %s26, 1
      %p84 = por %p82, %p83
      %p86 = scmp.ne.s32.totalorder %s71, %s85
      %p87 = scmp.eq.s32.totalorder %s26, 0
      %p88 = por %p86, %p87
      %s90 = sadd.s32 %s89, 1
      %p93 = scmp.eq.s32.totalorder %s20, 1
      %p94 = scmp.ne.s32.totalorder %s89, %s91
      %p95 = scmp.eq.s32.totalorder %s20, 0
      %p96 = por %p94, %p95
      %p97 = scmp.ne.s32.totalorder %s89, %s91
      %p98 = scmp.eq.s32.totalorder %s25, 1
      %p99 = por %p97, %p98
      %p100 = scmp.ne.s32.totalorder %s91, %s92
      %p101 = scmp.eq.s32.totalorder %s25, 0
      %p102 = por %p100, %p101
      %p103 = scmp.ne.s32.totalorder %s91, %s92
      %p104 = scmp.eq.s32.totalorder %s26, 1
      %p105 = por %p103, %p104
      %p107 = scmp.ne.s32.totalorder %s92, %s106
      %p108 = scmp.eq.s32.totalorder %s26, 0
      %p109 = por %p107, %p108
      %s110 = ssub.s32 %s28, %s35
      %p111 = scmp.eq.s32.totalorder %s110, 0
      %s113 = sadd.s32 %s112, 1
      %s114 = scalar_select %p111, %s112, %s113
      %p117 = pneg %p111
      %p118 = scmp.eq.s32.totalorder %s20, 1
      %p119 = por %p117, %p118
      %p120 = scmp.ne.s32.totalorder %s112, %s115
      %p121 = scmp.eq.s32.totalorder %s20, 0
      %p122 = por %p120, %p121
      %p123 = scmp.ne.s32.totalorder %s112, %s115
      %p124 = scmp.eq.s32.totalorder %s25, 1
      %p125 = por %p123, %p124
      %p126 = scmp.ne.s32.totalorder %s115, %s116
      %p127 = scmp.eq.s32.totalorder %s25, 0
      %p128 = por %p126, %p127
      %p129 = scmp.ne.s32.totalorder %s115, %s116
      %p130 = scmp.eq.s32.totalorder %s26, 1
      %p131 = por %p129, %p130
      %p133 = scmp.ne.s32.totalorder %s116, %s132
      %p134 = scmp.eq.s32.totalorder %s26, 0
      %p135 = por %p133, %p134
      %s136 = ssub.s32 %s27, %s39
      %s137 = ssub.s32 %s28, %s35
      %s138 = sor.u32 %s136, %s137
      %p139 = scmp.eq.s32.totalorder %s138, 0
      %s141 = sadd.s32 %s140, 1
      %s142 = scalar_select %p139, %s140, %s141
      %p145 = pneg %p139
      %p146 = scmp.eq.s32.totalorder %s20, 1
      %p147 = por %p145, %p146
      %p148 = scmp.ne.s32.totalorder %s140, %s143
      %p149 = scmp.eq.s32.totalorder %s20, 0
      %p150 = por %p148, %p149
      %p151 = scmp.ne.s32.totalorder %s140, %s143
      %p152 = scmp.eq.s32.totalorder %s25, 1
      %p153 = por %p151, %p152
      %p154 = scmp.ne.s32.totalorder %s143, %s144
      %p155 = scmp.eq.s32.totalorder %s25, 0
      %p156 = por %p154, %p155
      %p157 = scmp.ne.s32.totalorder %s143, %s144
      %p158 = scmp.eq.s32.totalorder %s26, 1
      %p159 = por %p157, %p158
      %p161 = scmp.ne.s32.totalorder %s144, %s160
      %p162 = scmp.eq.s32.totalorder %s26, 0
      %p163 = por %p161, %p162
      %s164 = ssub.s32 %s28, %s35
      %p165 = scmp.eq.s32.totalorder %s164, 0
      %s167 = sadd.s32 %s166, 1
      %s168 = scalar_select %p165, %s166, %s167
      %p171 = pneg %p165
      %p172 = scmp.eq.s32.totalorder %s20, 1
      %p173 = por %p171, %p172
      %p174 = scmp.ne.s32.totalorder %s166, %s169
      %p175 = scmp.eq.s32.totalorder %s20, 0
      %p176 = por %p174, %p175
      %p177 = scmp.ne.s32.totalorder %s166, %s169
      %p178 = scmp.eq.s32.totalorder %s25, 1
      %p179 = por %p177, %p178
      %p180 = scmp.ne.s32.totalorder %s169, %s170
      %p181 = scmp.eq.s32.totalorder %s25, 0
      %p182 = por %p180, %p181
      %p183 = scmp.ne.s32.totalorder %s169, %s170
      %p184 = scmp.eq.s32.totalorder %s26, 1
      %p185 = por %p183, %p184
      %p187 = scmp.ne.s32.totalorder %s170, %s186
      %p188 = scmp.eq.s32.totalorder %s26, 0
      %p189 = por %p187, %p188
      %s190 = ssub.s32 %s27, %s39
      %s191 = ssub.s32 %s28, %s35
      %s192 = sor.u32 %s190, %s191
      %p193 = scmp.eq.s32.totalorder %s192, 0
      %s195 = sadd.s32 %s194, 1
      %s196 = scalar_select %p193, %s194, %s195
      %p199 = pneg %p193
      %p200 = scmp.eq.s32.totalorder %s20, 1
      %p201 = por %p199, %p200
      %p202 = scmp.ne.s32.totalorder %s194, %s197
      %p203 = scmp.eq.s32.totalorder %s20, 0
      %p204 = por %p202, %p203
      %p205 = scmp.ne.s32.totalorder %s194, %s197
      %p206 = scmp.eq.s32.totalorder %s25, 1
      %p207 = por %p205, %p206
      %p208 = scmp.ne.s32.totalorder %s197, %s198
      %p209 = scmp.eq.s32.totalorder %s25, 0
      %p210 = por %p208, %p209
      %p211 = scmp.ne.s32.totalorder %s197, %s198
      %p212 = scmp.eq.s32.totalorder %s26, 1
      %p213 = por %p211, %p212
      %p215 = scmp.ne.s32.totalorder %s198, %s214
      %p216 = scmp.eq.s32.totalorder %s26, 0
      %p217 = por %p215, %p216
      %s218 = ssub.s32 %s27, %s39
      %s219 = ssub.s32 %s28, %s35
      %s220 = sor.u32 %s218, %s219
      %p221 = scmp.eq.s32.totalorder %s220, 0
      %s223 = sadd.s32 %s222, 1
      %s224 = scalar_select %p221, %s222, %s223
      %p227 = pneg %p221
      %p228 = scmp.eq.s32.totalorder %s20, 1
      %p229 = por %p227, %p228
      %p230 = scmp.ne.s32.totalorder %s222, %s225
      %p231 = scmp.eq.s32.totalorder %s20, 0
      %p232 = por %p230, %p231
      %p233 = scmp.ne.s32.totalorder %s222, %s225
      %p234 = scmp.eq.s32.totalorder %s25, 1
      %p235 = por %p233, %p234
      %p236 = scmp.ne.s32.totalorder %s225, %s226
      %p237 = scmp.eq.s32.totalorder %s25, 0
      %p238 = por %p236, %p237
      %p239 = scmp.ne.s32.totalorder %s225, %s226
      %p240 = scmp.eq.s32.totalorder %s26, 1
      %p241 = por %p239, %p240
      %p243 = scmp.ne.s32.totalorder %s226, %s242
      %p244 = scmp.eq.s32.totalorder %s26, 0
      %p245 = por %p243, %p244
      %p246 = scmp.le.s32.totalorder 1, %s20
      %p247 = scmp.lt.s32.totalorder %s20, 3
      %p248 = pnand %p246, %p247
      %p249 = pneg %p248
      // Predicated region
      $region9: #{tpu_custom_call.1} parent=5 // pred_check
        _
      $region10: #{tpu_custom_call.1} parent=5 // pred_check_branch
        %251 = sbr.rel (%p248) target = $region12
      $region11: #{tpu_custom_call.1} parent=5 // pred_region
        %s252 = ssub.s32 %s20, 1
        // Predicated region
        $region13: #{tpu_custom_call.1} parent=11 // pred_check
          %p253 = pneg %p81
        $region14: #{tpu_custom_call.1} parent=11 // pred_check_branch
          %255 = sbr.rel (%p253) target = $region16
        $region15: #{tpu_custom_call.1} parent=11 // pred_region
          _
        $region16: #{tpu_custom_call.1} parent=11 // pred_fallthru
          _
        // Predicated region
        $region17: #{tpu_custom_call.1} parent=11 // pred_check
          %p256 = pneg %p102
        $region18: #{tpu_custom_call.1} parent=11 // pred_check_branch
          %258 = sbr.rel (%p256) target = $region20
        $region19: #{tpu_custom_call.1} parent=11 // pred_region
          _
        $region20: #{tpu_custom_call.1} parent=11 // pred_fallthru
          _
        // Predicated region
        $region21: #{tpu_custom_call.1} parent=11 // pred_check
          %p259 = pneg %p128
        $region22: #{tpu_custom_call.1} parent=11 // pred_check_branch
          %261 = sbr.rel (%p259) target = $region24
        $region23: #{tpu_custom_call.1} parent=11 // pred_region
          %p262 = scmp.lt.s32.totalorder %s30, 0
          %s263 = scalar_select %p262, %s30, 0
          %s264 = smul.addr %s263, 2
          %s265 = smul.addr %s264, 2
          %s266 = scalar_lea.vmem %s3, %s265
        $region24: #{tpu_custom_call.1} parent=11 // pred_fallthru
          _
        // Predicated region
        $region25: #{tpu_custom_call.1} parent=11 // pred_check
          %p267 = pneg %p182
        $region26: #{tpu_custom_call.1} parent=11 // pred_check_branch
          %269 = sbr.rel (%p267) target = $region28
        $region27: #{tpu_custom_call.1} parent=11 // pred_region
          %s270 = smul.u32 2, %s30
          %p271 = scmp.lt.s32.totalorder %s270, 1
          %s272 = scalar_select %p271, %s270, 1
          %s273 = smul.addr %s272, 4
          %s274 = scalar_lea.vmem %s5, %s273
          %s275 = smul.u32 2, %s30
        $region28: #{tpu_custom_call.1} parent=11 // pred_fallthru
          _
      $region12: #{tpu_custom_call.1} parent=5 // pred_fallthru
        _
      %p276 = scmp.lt.s32.totalorder %s20, 2
      // Predicated region
      $region29: #{tpu_custom_call.1} parent=5 // pred_check
        %p277 = pneg %p276
      $region30: #{tpu_custom_call.1} parent=5 // pred_check_branch
        %279 = sbr.rel (%p277) target = $region32
      $region31: #{tpu_custom_call.1} parent=5 // pred_region
        // Predicated region
        $region33: #{tpu_custom_call.1} parent=31 // pred_check
          %p280 = pneg %p54
        $region34: #{tpu_custom_call.1} parent=31 // pred_check_branch
          %282 = sbr.rel (%p280) target = $region36
        $region35: #{tpu_custom_call.1} parent=31 // pred_region
          %p283 = scmp.lt.s32.totalorder %s27, 1
          %s284 = scalar_select %p283, %s27, 1
          %p285 = scmp.lt.s32.totalorder %s28, 0
          %s286 = scalar_select %p285, %s28, 0
          %s287 = smul.addr %s286, 15
          %s288 = smul.addr %s284, 15
          %s289 = sadd.s32 %s287, %s288
          %s290 = smul.addr %s289, 4
          %s291 = scalar_lea.vmem %s0, %s290
        $region36: #{tpu_custom_call.1} parent=31 // pred_fallthru
          _
        // Predicated region
        $region37: #{tpu_custom_call.1} parent=31 // pred_check
          %p292 = pneg %p150
        $region38: #{tpu_custom_call.1} parent=31 // pred_check_branch
          %294 = sbr.rel (%p292) target = $region40
        $region39: #{tpu_custom_call.1} parent=31 // pred_region
          %s295 = smul.u32 2, %s28
          %p296 = scmp.lt.s32.totalorder %s27, 1
          %s297 = scalar_select %p296, %s27, 1
          %p298 = scmp.lt.s32.totalorder %s295, 1
          %s299 = scalar_select %p298, %s295, 1
          %s300 = smul.addr %s297, 8
          %s301 = sadd.s32 %s299, %s300
          %s302 = smul.addr %s301, 8
          %s303 = scalar_lea.vmem %s4, %s302
          %s304 = smul.u32 2, %s28
        $region40: #{tpu_custom_call.1} parent=31 // pred_fallthru
          _
      $region32: #{tpu_custom_call.1} parent=5 // pred_fallthru
        _
      %p305 = scmp.le.s32.totalorder 1, %s20
      %p306 = scmp.lt.s32.totalorder %s20, 3
      %p307 = pnand %p305, %p306
      %p308 = pneg %p307
      // Predicated region
      $region41: #{tpu_custom_call.1} parent=5 // pred_check
        _
      $region42: #{tpu_custom_call.1} parent=5 // pred_check_branch
        %310 = sbr.rel (%p307) target = $region44
      $region43: #{tpu_custom_call.1} parent=5 // pred_region
        %s311 = ssub.s32 %s20, 1
        %p312 = scmp.lt.s32.totalorder %s29, 1
        %s313 = scalar_select %p312, %s29, 1
        %p314 = scmp.lt.s32.totalorder %s30, 0
        %s315 = scalar_select %p314, %s30, 0
        %s316 = smul.addr %s315, 15
        %s317 = smul.addr %s313, 15
        %s318 = sadd.s32 %s316, %s317
        %s319 = smul.addr %s318, 4
        %s320 = scalar_lea.vmem %s0, %s319
        %p321 = pneg %p60
        %p322 = pneg %p57
        %p323 = pneg %p81
        %p324 = pneg %p78
        %p325 = pneg %p102
        %p326 = pneg %p99
        %p327 = scmp.lt.s32.totalorder %s30, 0
        %s328 = scalar_select %p327, %s30, 0
        %s329 = smul.addr %s328, 2
        %s330 = smul.addr %s329, 2
        %s331 = scalar_lea.vmem %s3, %s330
        %p332 = pneg %p128
        %p333 = pneg %p125
        %s334 = smul.u32 2, %s30
        %p335 = scmp.lt.s32.totalorder %s29, 1
        %s336 = scalar_select %p335, %s29, 1
        %p337 = scmp.lt.s32.totalorder %s334, 1
        %s338 = scalar_select %p337, %s334, 1
        %s339 = smul.addr %s336, 8
        %s340 = sadd.s32 %s338, %s339
        %s341 = smul.addr %s340, 8
        %s342 = scalar_lea.vmem %s4, %s341
        %p343 = pneg %p156
        %p344 = pneg %p153
        %s345 = smul.u32 2, %s30
        %p346 = scmp.lt.s32.totalorder %s345, 1
        %s347 = scalar_select %p346, %s345, 1
        %s348 = smul.addr %s347, 4
        %s349 = scalar_lea.vmem %s5, %s348
        %p350 = pneg %p182
        %p351 = pneg %p179
        %p352 = pneg %p210
        %p353 = pneg %p207
        %s354 = sand.u32 %s197, 1
        %s355 = scalar_lea.sflag [#allocation3], %s354
        %s356 = sand.u32 %s197, 1
        %s357 = smul.addr %s356, 64
        %s358 = scalar_lea.vmem [#allocation2], %s357
        %p359 = pneg %p238
        %p360 = pneg %p235
        %s361 = sand.u32 %s225, 1
        %s362 = scalar_lea.sflag [#allocation5], %s361
        %s363 = sand.u32 %s225, 1
        %s364 = smul.addr %s363, 64
        %s365 = scalar_lea.vmem [#allocation4], %s364
        %p366 = scmp.lt.s32.totalorder %s29, 1
        %s367 = scalar_select %p366, %s29, 1
        %p368 = scmp.lt.s32.totalorder %s30, 0
        %s369 = scalar_select %p368, %s30, 0
        %s370 = smul.addr %s369, 15
        %s371 = smul.addr %s367, 15
        %s372 = sadd.s32 %s370, %s371
        %s373 = smul.addr %s372, 4
        %s374 = scalar_lea.vmem %s0, %s373
        %p375 = scmp.lt.s32.totalorder %s30, 0
        %s376 = scalar_select %p375, %s30, 0
        %s377 = smul.addr %s376, 2
        %s378 = smul.addr %s377, 2
        %s379 = scalar_lea.vmem %s3, %s378
        %s380 = smul.u32 2, %s30
        %p381 = scmp.lt.s32.totalorder %s29, 1
        %s382 = scalar_select %p381, %s29, 1
        %p383 = scmp.lt.s32.totalorder %s380, 1
        %s384 = scalar_select %p383, %s380, 1
        %s385 = smul.addr %s382, 8
        %s386 = sadd.s32 %s384, %s385
        %s387 = smul.addr %s386, 8
        %s388 = scalar_lea.vmem %s4, %s387
        %s389 = smul.u32 2, %s30
        %s390 = smul.u32 2, %s30
        %p391 = scmp.lt.s32.totalorder %s390, 1
        %s392 = scalar_select %p391, %s390, 1
        %s393 = smul.addr %s392, 4
        %s394 = scalar_lea.vmem %s5, %s393
        %s395 = smul.u32 2, %s30
        %s396 = smul.u32 2, %s30
        %s397 = smul.u32 2, %s30
        %v399 = vld [vmem:[%s374] sm:$0xff]
        %v400 = vld [vmem:[%s374 + $0xc] sm:$0xff]
        %v401 = vld [vmem:[%s374 + $0x18] sm:$0xff]
        %v402 = vld [vmem:[%s374 + $0x24] sm:$0xff]
        %v403 = vld [vmem:[%s374 + $0x30] sm:$0x33]
        %v404 = vld [vmem:[%s379] sm:$0x5]
        %v407 = vunpack.c.l.s4 1983009808
        %v408 = vunpack.c.0.s8 %v407
        %v409 = vlaneseq
        %v410 = vshrl.u32 %v409, 7
        %v411 = vsub.s32 %v408, %v410
        %v412 = vrot.slane %v404, %v411
        %v413 = vcombine.high %v412, %v412
        %v415 = vpack.i.b16 %v412, %v412
        %v417 = vlaneseq
        %v418 = vshrl.u32 %v417, 7
        %v419 = vsub.s32 0, %v418
        %v420 = vrot.slane %v415, %v419
        %v422 = vpack.i.b16 %v413, %v413
        %v424 = vlaneseq
        %v425 = vshrl.u32 %v424, 7
        %v426 = vsub.s32 0, %v425
        %v427 = vrot.slane %v422, %v426
        %v430 = vunpack.c.l.b16 %v420
        %v431 = vunpack.c.l.b16 %v427
        %v432 = vpack.c.b16 %v431, %v430
        %v434 = vmul.bf16 %v399, %v432
        %v435 = vmul.bf16 %v400, %v432
        %v436 = vmul.bf16 %v401, %v432
        %v437 = vmul.bf16 %v402, %v432
        %v438 = vmul.bf16 %v403, %v432
        %v439 = vld [vmem:[%s1] sm:$0xf]
        %v440 = vld [vmem:[%s1 + $0x4] sm:$0xf]
        %v441 = vld [vmem:[%s1 + $0x8] sm:$0xf]
        %v442 = vld [vmem:[%s1 + $0xc] sm:$0xf]
        %v443 = vld [vmem:[%s1 + $0x10] sm:$0xf]
        %v444 = vld [vmem:[%s1 + $0x14] sm:$0xf]
        %v445 = vld [vmem:[%s1 + $0x18] sm:$0xf]
        %v446 = vld [vmem:[%s1 + $0x1c] sm:$0xf]
        %v447 = vld [vmem:[%s1 + $0x20] sm:$0xf]
        %v448 = vld [vmem:[%s1 + $0x24] sm:$0xf]
        %v449 = vld [vmem:[%s1 + $0x28] sm:$0xf]
        %v450 = vld [vmem:[%s1 + $0x2c] sm:$0xf]
        %v451 = vld [vmem:[%s1 + $0x30] sm:$0xf]
        %v452 = vld [vmem:[%s1 + $0x34] sm:$0xf]
        %v453 = vld [vmem:[%s1 + $0x38] sm:$0xf]
        %v454 = vld [vmem:[%s1 + $0x3c] sm:$0xf]
        %v455 = vld [vmem:[%s374 + $0x8] sm:$0xf]
        %v456 = vld [vmem:[%s374 + $0x14] sm:$0xf]
        %v457 = vld [vmem:[%s374 + $0x20] sm:$0xf]
        %v458 = vld [vmem:[%s374 + $0x2c] sm:$0xf]
        %v459 = vld [vmem:[%s374 + $0x38] sm:$0x3]
        %s460 = scalar_lea.vmem %s1, 64
        %v461 = vld [vmem:[%s460] sm:$0xf]
        %v462 = vld [vmem:[%s460 + $0x4] sm:$0xf]
        %v463 = vld [vmem:[%s460 + $0x8] sm:$0xf]
        %v464 = vld [vmem:[%s460 + $0xc] sm:$0xf]
        %v465 = vld [vmem:[%s460 + $0x10] sm:$0xf]
        %v466 = vld [vmem:[%s460 + $0x14] sm:$0xf]
        %v467 = vld [vmem:[%s460 + $0x18] sm:$0xf]
        %v468 = vld [vmem:[%s460 + $0x1c] sm:$0xf]
        %v469 = vld [vmem:[%s460 + $0x20] sm:$0xf]
        %v470 = vld [vmem:[%s460 + $0x24] sm:$0xf]
        %v471 = vld [vmem:[%s460 + $0x28] sm:$0xf]
        %v472 = vld [vmem:[%s460 + $0x2c] sm:$0xf]
        %v473 = vld [vmem:[%s460 + $0x30] sm:$0xf]
        %v474 = vld [vmem:[%s460 + $0x34] sm:$0xf]
        %v475 = vld [vmem:[%s460 + $0x38] sm:$0xf]
        %v476 = vld [vmem:[%s460 + $0x3c] sm:$0xf]
        %v493 = vunpack.c.l.b16 %v461
        %v494 = vunpack.c.l.b16 %v462
        %v495 = vunpack.c.l.b16 %v463
        %v496 = vunpack.c.l.b16 %v464
        %v497 = vunpack.c.l.b16 %v465
        %v498 = vunpack.c.l.b16 %v466
        %v499 = vunpack.c.l.b16 %v467
        %v500 = vunpack.c.l.b16 %v468
        %v501 = vunpack.c.l.b16 %v469
        %v502 = vunpack.c.l.b16 %v470
        %v503 = vunpack.c.l.b16 %v471
        %v504 = vunpack.c.l.b16 %v472
        %v505 = vunpack.c.l.b16 %v473
        %v506 = vunpack.c.l.b16 %v474
        %v507 = vunpack.c.l.b16 %v475
        %v508 = vunpack.c.l.b16 %v476
        %v509 = vpack.c.b16 %v494, %v493
        %v510 = vpack.c.b16 %v496, %v495
        %v511 = vpack.c.b16 %v498, %v497
        %v512 = vpack.c.b16 %v500, %v499
        %v513 = vpack.c.b16 %v502, %v501
        %v514 = vpack.c.b16 %v504, %v503
        %v515 = vpack.c.b16 %v506, %v505
        %v516 = vpack.c.b16 %v508, %v507
        %v527 = vunpack.c.l.b16 %v399
        %v528 = vunpack.c.h.b16 %v399
        %v529 = vunpack.c.l.b16 %v455
        %v530 = vunpack.c.l.b16 %v400
        %v531 = vunpack.c.h.b16 %v400
        %v532 = vunpack.c.l.b16 %v456
        %v533 = vunpack.c.l.b16 %v401
        %v534 = vunpack.c.h.b16 %v401
        %v535 = vunpack.c.l.b16 %v457
        %v536 = vunpack.c.l.b16 %v402
        %v537 = vunpack.c.h.b16 %v402
        %v538 = vunpack.c.l.b16 %v458
        %v539 = vunpack.c.l.b16 %v403
        %v540 = vunpack.c.h.b16 %v403
        %v541 = vunpack.c.l.b16 %v459
        %v542 = vpack.c.b16 %v530, %v527
        %v543 = vpack.c.b16 %v531, %v528
        %v544 = vpack.c.b16 %v532, %v529
        %v545 = vpack.c.b16 %v536, %v533
        %v546 = vpack.c.b16 %v537, %v534
        %v547 = vpack.c.b16 %v538, %v535
        %v548 = vpack.c.b16 %v539, %v539
        %v549 = vpack.c.b16 %v540, %v540
        %v550 = vpack.c.b16 %v541, %v541
        %551 = vrot.lane.b32.xlu0 %v542, 127
        %v552 = vpop.permute.xlu0 %551
        %553 = vrot.lane.b32.xlu0 %v543, 127
        %v554 = vpop.permute.xlu0 %553
        %555 = vrot.lane.b32.xlu0 %v544, 127
        %v556 = vpop.permute.xlu0 %555
        %557 = vrot.lane.b32.xlu0 %v545, 127
        %v558 = vpop.permute.xlu0 %557
        %559 = vrot.lane.b32.xlu0 %v546, 127
        %v560 = vpop.permute.xlu0 %559
        %561 = vrot.lane.b32.xlu0 %v547, 127
        %v562 = vpop.permute.xlu0 %561
        %563 = vrot.lane.b32.xlu0 %v548, 127
        %v564 = vpop.permute.xlu0 %563
        %565 = vrot.lane.b32.xlu0 %v549, 127
        %v566 = vpop.permute.xlu0 %565
        %567 = vrot.lane.b32.xlu0 %v550, 127
        %v568 = vpop.permute.xlu0 %567
        %vm569 = vcmask 1039360
        %v570 = vsel %vm569, %v552, %v554
        %v571 = vsel %vm569, %v554, %v556
        %v572 = vsel %vm569, %v558, %v560
        %v573 = vsel %vm569, %v560, %v562
        %v574 = vsel %vm569, %v564, %v566
        %v575 = vsel %vm569, %v566, %v568
        %vm580 = vcmask 293888
        %v582 = vsel %vm580, %v509, 0
        %v585 = vsel %vm580, %v510, 0
        %v588 = vsel %vm580, %v511, 0
        %v591 = vsel %vm580, %v512, 0
        %v594 = vsel %vm580, %v513, 0
        %v597 = vsel %vm580, %v514, 0
        %v600 = vsel %vm580, %v515, 0
        %v603 = vsel %vm580, %v516, 0
        %vm605 = vcmask 1041408
        %v607 = vsel %vm605, %v574, 0
        %v610 = vsel %vm605, %v575, 0
        %612 = vmatprep.subr.bf16.mxu0 0
        %613 = vmatpush1.bf16.msra.mxu0 0
        %614 = vmatprep.subr.bf16.mxu0 0
        %615 = vmatpush1.bf16.msra.mxu0 0
        %616 = vmatprep.subr.bf16.mxu0 0
        %617 = vmatpush1.bf16.msra.mxu0 0
        %618 = vmatprep.subr.bf16.mxu0 0
        %619 = vmatpush1.bf16.msra.mxu0 0
        %620 = vmatprep.subr.bf16.mxu0 0
        %621 = vmatpush1.bf16.msra.mxu0 0
        %622 = vmatprep.subr.bf16.mxu0 %v610
        %623 = vmatpush1.bf16.msra.mxu0 %v607
        %624 = vmatprep.subr.bf16.mxu0 %v573
        %625 = vmatpush1.bf16.msra.mxu0 %v572
        %626 = vmatprep.subr.bf16.mxu0 %v571
        %627 = vmatpush1.bf16.msra.mxu0 %v570
        %628 = vmatprep.subr.bf16.mxu0 0
        %629 = vmatpush2.bf16.msra.mxu0 0
        %630 = vmatprep.subr.bf16.mxu0 0
        %631 = vmatpush2.bf16.msra.mxu0 0
        %632 = vmatprep.subr.bf16.mxu0 0
        %633 = vmatpush2.bf16.msra.mxu0 0
        %634 = vmatprep.subr.bf16.mxu0 0
        %635 = vmatpush2.bf16.msra.mxu0 0
        %636 = vmatprep.subr.bf16.mxu0 0
        %637 = vmatpush2.bf16.msra.mxu0 0
        %638 = vmatprep.subr.bf16.mxu0 0
        %639 = vmatpush2.bf16.msra.mxu0 0
        %640 = vmatprep.subr.bf16.mxu0 0
        %641 = vmatpush2.bf16.msra.mxu0 0
        %642 = vmatprep.subr.bf16.mxu0 0
        %643 = vmatpush2.bf16.msra.mxu0 0
        %644 = vmatprep.mubr.bf16.mxu0 0
        %645 = vmatmul.mubr.bf16.gmra.mxu0 %v582
        %v646 = vpop.f32.mrf.mxu0
        %v647 = vadd.f32 0.0, %v646
        %v648 = vpop.f32.mrf.mxu0
        %v649 = vadd.f32 0.0, %v648
        %v650 = vpop.f32.mrf.mxu0
        %v651 = vadd.f32 0.0, %v650
        %v652 = vpop.f32.mrf.mxu0
        %v653 = vadd.f32 0.0, %v652
        %654 = vmatprep.mubr.bf16.mxu0 0
        %655 = vmatmul.mubr.bf16.gmra.mxu0 %v585
        %v656 = vpop.f32.mrf.mxu0
        %v657 = vadd.f32 0.0, %v656
        %v658 = vpop.f32.mrf.mxu0
        %v659 = vadd.f32 0.0, %v658
        %v660 = vpop.f32.mrf.mxu0
        %v661 = vadd.f32 0.0, %v660
        %v662 = vpop.f32.mrf.mxu0
        %v663 = vadd.f32 0.0, %v662
        %664 = vmatprep.mubr.bf16.mxu0 0
        %665 = vmatmul.mubr.bf16.gmra.mxu0 %v588
        %v666 = vpop.f32.mrf.mxu0
        %v667 = vadd.f32 0.0, %v666
        %v668 = vpop.f32.mrf.mxu0
        %v669 = vadd.f32 0.0, %v668
        %v670 = vpop.f32.mrf.mxu0
        %v671 = vadd.f32 0.0, %v670
        %v672 = vpop.f32.mrf.mxu0
        %v673 = vadd.f32 0.0, %v672
        %674 = vmatprep.mubr.bf16.mxu0 0
        %675 = vmatmul.mubr.bf16.gmra.mxu0 %v591
        %v676 = vpop.f32.mrf.mxu0
        %v677 = vadd.f32 0.0, %v676
        %v678 = vpop.f32.mrf.mxu0
        %v679 = vadd.f32 0.0, %v678
        %v680 = vpop.f32.mrf.mxu0
        %v681 = vadd.f32 0.0, %v680
        %v682 = vpop.f32.mrf.mxu0
        %v683 = vadd.f32 0.0, %v682
        %684 = vmatprep.mubr.bf16.mxu0 0
        %685 = vmatmul.mubr.bf16.gmra.mxu0 %v594
        %v686 = vpop.f32.mrf.mxu0
        %v687 = vadd.f32 0.0, %v686
        %v688 = vpop.f32.mrf.mxu0
        %v689 = vadd.f32 0.0, %v688
        %v690 = vpop.f32.mrf.mxu0
        %v691 = vadd.f32 0.0, %v690
        %v692 = vpop.f32.mrf.mxu0
        %v693 = vadd.f32 0.0, %v692
        %694 = vmatprep.mubr.bf16.mxu0 0
        %695 = vmatmul.mubr.bf16.gmra.mxu0 %v597
        %v696 = vpop.f32.mrf.mxu0
        %v697 = vadd.f32 0.0, %v696
        %v698 = vpop.f32.mrf.mxu0
        %v699 = vadd.f32 0.0, %v698
        %v700 = vpop.f32.mrf.mxu0
        %v701 = vadd.f32 0.0, %v700
        %v702 = vpop.f32.mrf.mxu0
        %v703 = vadd.f32 0.0, %v702
        %704 = vmatprep.mubr.bf16.mxu0 0
        %705 = vmatmul.mubr.bf16.gmra.mxu0 %v600
        %v706 = vpop.f32.mrf.mxu0
        %v707 = vadd.f32 0.0, %v706
        %v708 = vpop.f32.mrf.mxu0
        %v709 = vadd.f32 0.0, %v708
        %v710 = vpop.f32.mrf.mxu0
        %v711 = vadd.f32 0.0, %v710
        %v712 = vpop.f32.mrf.mxu0
        %v713 = vadd.f32 0.0, %v712
        %714 = vmatprep.mubr.bf16.mxu0 0
        %715 = vmatmul.mubr.bf16.gmra.mxu0 %v603
        %v716 = vpop.f32.mrf.mxu0
        %v717 = vadd.f32 0.0, %v716
        %v718 = vpop.f32.mrf.mxu0
        %v719 = vadd.f32 0.0, %v718
        %v720 = vpop.f32.mrf.mxu0
        %v721 = vadd.f32 0.0, %v720
        %v722 = vpop.f32.mrf.mxu0
        %v723 = vadd.f32 0.0, %v722
        %724 = vdwg.mxu0
        %v741 = vunpack.c.l.b16 %v439
        %v742 = vunpack.c.l.b16 %v440
        %v743 = vunpack.c.l.b16 %v441
        %v744 = vunpack.c.l.b16 %v442
        %v745 = vunpack.c.l.b16 %v443
        %v746 = vunpack.c.l.b16 %v444
        %v747 = vunpack.c.l.b16 %v445
        %v748 = vunpack.c.l.b16 %v446
        %v749 = vunpack.c.l.b16 %v447
        %v750 = vunpack.c.l.b16 %v448
        %v751 = vunpack.c.l.b16 %v449
        %v752 = vunpack.c.l.b16 %v450
        %v753 = vunpack.c.l.b16 %v451
        %v754 = vunpack.c.l.b16 %v452
        %v755 = vunpack.c.l.b16 %v453
        %v756 = vunpack.c.l.b16 %v454
        %v757 = vpack.c.b16 %v742, %v741
        %v758 = vpack.c.b16 %v744, %v743
        %v759 = vpack.c.b16 %v746, %v745
        %v760 = vpack.c.b16 %v748, %v747
        %v761 = vpack.c.b16 %v750, %v749
        %v762 = vpack.c.b16 %v752, %v751
        %v763 = vpack.c.b16 %v754, %v753
        %v764 = vpack.c.b16 %v756, %v755
        %v770 = vunpack.c.l.b16 %v434
        %v771 = vunpack.c.h.b16 %v434
        %v772 = vunpack.c.l.b16 %v435
        %v773 = vunpack.c.h.b16 %v435
        %v774 = vunpack.c.l.b16 %v436
        %v775 = vunpack.c.h.b16 %v436
        %v776 = vunpack.c.l.b16 %v437
        %v777 = vunpack.c.h.b16 %v437
        %v778 = vunpack.c.l.b16 %v438
        %v779 = vunpack.c.h.b16 %v438
        %v780 = vpack.c.b16 %v772, %v770
        %v781 = vpack.c.b16 %v773, %v771
        %v782 = vpack.c.b16 %v776, %v774
        %v783 = vpack.c.b16 %v777, %v775
        %v784 = vpack.c.b16 %v778, %v778
        %v785 = vpack.c.b16 %v779, %v779
        %v791 = vsel %vm580, %v757, 0
        %v794 = vsel %vm580, %v758, 0
        %v797 = vsel %vm580, %v759, 0
        %v800 = vsel %vm580, %v760, 0
        %v803 = vsel %vm580, %v761, 0
        %v806 = vsel %vm580, %v762, 0
        %v809 = vsel %vm580, %v763, 0
        %v812 = vsel %vm580, %v764, 0
        %v815 = vsel %vm605, %v784, 0
        %v818 = vsel %vm605, %v785, 0
        %820 = vmatprep.subr.bf16.mxu0 0
        %821 = vmatpush1.bf16.msra.mxu0 0
        %822 = vmatprep.subr.bf16.mxu0 0
        %823 = vmatpush1.bf16.msra.mxu0 0
        %824 = vmatprep.subr.bf16.mxu0 0
        %825 = vmatpush1.bf16.msra.mxu0 0
        %826 = vmatprep.subr.bf16.mxu0 0
        %827 = vmatpush1.bf16.msra.mxu0 0
        %828 = vmatprep.subr.bf16.mxu0 0
        %829 = vmatpush1.bf16.msra.mxu0 0
        %830 = vmatprep.subr.bf16.mxu0 %v818
        %831 = vmatpush1.bf16.msra.mxu0 %v815
        %832 = vmatprep.subr.bf16.mxu0 %v783
        %833 = vmatpush1.bf16.msra.mxu0 %v782
        %834 = vmatprep.subr.bf16.mxu0 %v781
        %835 = vmatpush1.bf16.msra.mxu0 %v780
        %836 = vmatprep.subr.bf16.mxu0 0
        %837 = vmatpush2.bf16.msra.mxu0 0
        %838 = vmatprep.subr.bf16.mxu0 0
        %839 = vmatpush2.bf16.msra.mxu0 0
        %840 = vmatprep.subr.bf16.mxu0 0
        %841 = vmatpush2.bf16.msra.mxu0 0
        %842 = vmatprep.subr.bf16.mxu0 0
        %843 = vmatpush2.bf16.msra.mxu0 0
        %844 = vmatprep.subr.bf16.mxu0 0
        %845 = vmatpush2.bf16.msra.mxu0 0
        %846 = vmatprep.subr.bf16.mxu0 0
        %847 = vmatpush2.bf16.msra.mxu0 0
        %848 = vmatprep.subr.bf16.mxu0 0
        %849 = vmatpush2.bf16.msra.mxu0 0
        %850 = vmatprep.subr.bf16.mxu0 0
        %851 = vmatpush2.bf16.msra.mxu0 0
        %852 = vmatprep.mubr.bf16.mxu0 0
        %853 = vmatmul.mubr.bf16.gmra.mxu0 %v791
        %v854 = vpop.f32.mrf.mxu0
        %v855 = vadd.f32 %v647, %v854
        %v856 = vpop.f32.mrf.mxu0
        %v857 = vadd.f32 %v649, %v856
        %v858 = vpop.f32.mrf.mxu0
        %v859 = vadd.f32 %v651, %v858
        %v860 = vpop.f32.mrf.mxu0
        %v861 = vadd.f32 %v653, %v860
        %862 = vmatprep.mubr.bf16.mxu0 0
        %863 = vmatmul.mubr.bf16.gmra.mxu0 %v794
        %v864 = vpop.f32.mrf.mxu0
        %v865 = vadd.f32 %v657, %v864
        %v866 = vpop.f32.mrf.mxu0
        %v867 = vadd.f32 %v659, %v866
        %v868 = vpop.f32.mrf.mxu0
        %v869 = vadd.f32 %v661, %v868
        %v870 = vpop.f32.mrf.mxu0
        %v871 = vadd.f32 %v663, %v870
        %872 = vmatprep.mubr.bf16.mxu0 0
        %873 = vmatmul.mubr.bf16.gmra.mxu0 %v797
        %v874 = vpop.f32.mrf.mxu0
        %v875 = vadd.f32 %v667, %v874
        %v876 = vpop.f32.mrf.mxu0
        %v877 = vadd.f32 %v669, %v876
        %v878 = vpop.f32.mrf.mxu0
        %v879 = vadd.f32 %v671, %v878
        %v880 = vpop.f32.mrf.mxu0
        %v881 = vadd.f32 %v673, %v880
        %882 = vmatprep.mubr.bf16.mxu0 0
        %883 = vmatmul.mubr.bf16.gmra.mxu0 %v800
        %v884 = vpop.f32.mrf.mxu0
        %v885 = vadd.f32 %v677, %v884
        %v886 = vpop.f32.mrf.mxu0
        %v887 = vadd.f32 %v679, %v886
        %v888 = vpop.f32.mrf.mxu0
        %v889 = vadd.f32 %v681, %v888
        %v890 = vpop.f32.mrf.mxu0
        %v891 = vadd.f32 %v683, %v890
        %892 = vmatprep.mubr.bf16.mxu0 0
        %893 = vmatmul.mubr.bf16.gmra.mxu0 %v803
        %v894 = vpop.f32.mrf.mxu0
        %v895 = vadd.f32 %v687, %v894
        %v896 = vpop.f32.mrf.mxu0
        %v897 = vadd.f32 %v689, %v896
        %v898 = vpop.f32.mrf.mxu0
        %v899 = vadd.f32 %v691, %v898
        %v900 = vpop.f32.mrf.mxu0
        %v901 = vadd.f32 %v693, %v900
        %902 = vmatprep.mubr.bf16.mxu0 0
        %903 = vmatmul.mubr.bf16.gmra.mxu0 %v806
        %v904 = vpop.f32.mrf.mxu0
        %v905 = vadd.f32 %v697, %v904
        %v906 = vpop.f32.mrf.mxu0
        %v907 = vadd.f32 %v699, %v906
        %v908 = vpop.f32.mrf.mxu0
        %v909 = vadd.f32 %v701, %v908
        %v910 = vpop.f32.mrf.mxu0
        %v911 = vadd.f32 %v703, %v910
        %912 = vmatprep.mubr.bf16.mxu0 0
        %913 = vmatmul.mubr.bf16.gmra.mxu0 %v809
        %v914 = vpop.f32.mrf.mxu0
        %v915 = vadd.f32 %v707, %v914
        %v916 = vpop.f32.mrf.mxu0
        %v917 = vadd.f32 %v709, %v916
        %v918 = vpop.f32.mrf.mxu0
        %v919 = vadd.f32 %v711, %v918
        %v920 = vpop.f32.mrf.mxu0
        %v921 = vadd.f32 %v713, %v920
        %922 = vmatprep.mubr.bf16.mxu0 0
        %923 = vmatmul.mubr.bf16.gmra.mxu0 %v812
        %v924 = vpop.f32.mrf.mxu0
        %v925 = vadd.f32 %v717, %v924
        %v926 = vpop.f32.mrf.mxu0
        %v927 = vadd.f32 %v719, %v926
        %v928 = vpop.f32.mrf.mxu0
        %v929 = vadd.f32 %v721, %v928
        %v930 = vpop.f32.mrf.mxu0
        %v931 = vadd.f32 %v723, %v930
        %932 = vdwg.mxu0
        %v933 = vld [vmem:[%s379] sm:$0xa]
        %v936 = vunpack.c.l.s4 1983009808
        %v937 = vunpack.c.0.s8 %v936
        %v938 = vlaneseq
        %v939 = vshrl.u32 %v938, 7
        %v940 = vsub.s32 %v937, %v939
        %v941 = vrot.slane %v933, %v940
        %v942 = vcombine.high %v941, %v941
        %v944 = vpack.i.b16 %v941, %v941
        %v946 = vlaneseq
        %v947 = vshrl.u32 %v946, 7
        %v948 = vsub.s32 1, %v947
        %v949 = vrot.slane %v944, %v948
        %v951 = vpack.i.b16 %v942, %v942
        %v953 = vlaneseq
        %v954 = vshrl.u32 %v953, 7
        %v955 = vsub.s32 1, %v954
        %v956 = vrot.slane %v951, %v955
        %v959 = vunpack.c.l.b16 %v949
        %v960 = vunpack.c.l.b16 %v956
        %v961 = vpack.c.b16 %v960, %v959
        %962 = vrot.lane.b32.xlu0 %v961, 2
        %v963 = vpop.permute.xlu0 %962
        %v964 = vrot.slane %v963, 4
        %vm965 = vcmask 15360
        %v966 = vsel %vm965, %v964, %v963
        %v969 = vmul.bf16 %v399, %v966
        %v970 = vmul.bf16 %v455, %v964
        %v971 = vmul.bf16 %v400, %v966
        %v972 = vmul.bf16 %v456, %v964
        %v973 = vmul.bf16 %v401, %v966
        %v974 = vmul.bf16 %v457, %v964
        %v975 = vmul.bf16 %v402, %v966
        %v976 = vmul.bf16 %v458, %v964
        %v977 = vmul.bf16 %v403, %v966
        %v978 = vmul.bf16 %v459, %v964
        %s979 = scalar_lea.vmem %s1, 128
        %v980 = vld [vmem:[%s979] sm:$0xf]
        %v981 = vld [vmem:[%s979 + $0x4] sm:$0xf]
        %v982 = vld [vmem:[%s979 + $0x8] sm:$0xf]
        %v983 = vld [vmem:[%s979 + $0xc] sm:$0xf]
        %v984 = vld [vmem:[%s979 + $0x10] sm:$0xf]
        %v985 = vld [vmem:[%s979 + $0x14] sm:$0xf]
        %v986 = vld [vmem:[%s979 + $0x18] sm:$0xf]
        %v987 = vld [vmem:[%s979 + $0x1c] sm:$0xf]
        %v988 = vld [vmem:[%s979 + $0x20] sm:$0xf]
        %v989 = vld [vmem:[%s979 + $0x24] sm:$0xf]
        %v990 = vld [vmem:[%s979 + $0x28] sm:$0xf]
        %v991 = vld [vmem:[%s979 + $0x2c] sm:$0xf]
        %v992 = vld [vmem:[%s979 + $0x30] sm:$0xf]
        %v993 = vld [vmem:[%s979 + $0x34] sm:$0xf]
        %v994 = vld [vmem:[%s979 + $0x38] sm:$0xf]
        %v995 = vld [vmem:[%s979 + $0x3c] sm:$0xf]
        %v1012 = vunpack.c.l.b16 %v980
        %v1013 = vunpack.c.l.b16 %v981
        %v1014 = vunpack.c.l.b16 %v982
        %v1015 = vunpack.c.l.b16 %v983
        %v1016 = vunpack.c.l.b16 %v984
        %v1017 = vunpack.c.l.b16 %v985
        %v1018 = vunpack.c.l.b16 %v986
        %v1019 = vunpack.c.l.b16 %v987
        %v1020 = vunpack.c.l.b16 %v988
        %v1021 = vunpack.c.l.b16 %v989
        %v1022 = vunpack.c.l.b16 %v990
        %v1023 = vunpack.c.l.b16 %v991
        %v1024 = vunpack.c.l.b16 %v992
        %v1025 = vunpack.c.l.b16 %v993
        %v1026 = vunpack.c.l.b16 %v994
        %v1027 = vunpack.c.l.b16 %v995
        %v1028 = vpack.c.b16 %v1013, %v1012
        %v1029 = vpack.c.b16 %v1015, %v1014
        %v1030 = vpack.c.b16 %v1017, %v1016
        %v1031 = vpack.c.b16 %v1019, %v1018
        %v1032 = vpack.c.b16 %v1021, %v1020
        %v1033 = vpack.c.b16 %v1023, %v1022
        %v1034 = vpack.c.b16 %v1025, %v1024
        %v1035 = vpack.c.b16 %v1027, %v1026
        %v1046 = vunpack.c.l.b16 %v969
        %v1047 = vunpack.c.h.b16 %v969
        %v1048 = vunpack.c.l.b16 %v970
        %v1049 = vunpack.c.l.b16 %v971
        %v1050 = vunpack.c.h.b16 %v971
        %v1051 = vunpack.c.l.b16 %v972
        %v1052 = vunpack.c.l.b16 %v973
        %v1053 = vunpack.c.h.b16 %v973
        %v1054 = vunpack.c.l.b16 %v974
        %v1055 = vunpack.c.l.b16 %v975
        %v1056 = vunpack.c.h.b16 %v975
        %v1057 = vunpack.c.l.b16 %v976
        %v1058 = vunpack.c.l.b16 %v977
        %v1059 = vunpack.c.h.b16 %v977
        %v1060 = vunpack.c.l.b16 %v978
        %v1061 = vpack.c.b16 %v1049, %v1046
        %v1062 = vpack.c.b16 %v1050, %v1047
        %v1063 = vpack.c.b16 %v1051, %v1048
        %v1064 = vpack.c.b16 %v1055, %v1052
        %v1065 = vpack.c.b16 %v1056, %v1053
        %v1066 = vpack.c.b16 %v1057, %v1054
        %v1067 = vpack.c.b16 %v1058, %v1058
        %v1068 = vpack.c.b16 %v1059, %v1059
        %v1069 = vpack.c.b16 %v1060, %v1060
        %1070 = vrot.lane.b32.xlu0 %v1061, 126
        %v1071 = vpop.permute.xlu0 %1070
        %1072 = vrot.lane.b32.xlu0 %v1062, 126
        %v1073 = vpop.permute.xlu0 %1072
        %1074 = vrot.lane.b32.xlu0 %v1063, 126
        %v1075 = vpop.permute.xlu0 %1074
        %1076 = vrot.lane.b32.xlu0 %v1064, 126
        %v1077 = vpop.permute.xlu0 %1076
        %1078 = vrot.lane.b32.xlu0 %v1065, 126
        %v1079 = vpop.permute.xlu0 %1078
        %1080 = vrot.lane.b32.xlu0 %v1066, 126
        %v1081 = vpop.permute.xlu0 %1080
        %1082 = vrot.lane.b32.xlu0 %v1067, 126
        %v1083 = vpop.permute.xlu0 %1082
        %1084 = vrot.lane.b32.xlu0 %v1068, 126
        %v1085 = vpop.permute.xlu0 %1084
        %1086 = vrot.lane.b32.xlu0 %v1069, 126
        %v1087 = vpop.permute.xlu0 %1086
        %vm1088 = vcmask 1031168
        %v1089 = vsel %vm1088, %v1071, %v1073
        %v1090 = vsel %vm1088, %v1073, %v1075
        %v1091 = vsel %vm1088, %v1077, %v1079
        %v1092 = vsel %vm1088, %v1079, %v1081
        %v1093 = vsel %vm1088, %v1083, %v1085
        %v1094 = vsel %vm1088, %v1085, %v1087
        %v1100 = vsel %vm580, %v1028, 0
        %v1103 = vsel %vm580, %v1029, 0
        %v1106 = vsel %vm580, %v1030, 0
        %v1109 = vsel %vm580, %v1031, 0
        %v1112 = vsel %vm580, %v1032, 0
        %v1115 = vsel %vm580, %v1033, 0
        %v1118 = vsel %vm580, %v1034, 0
        %v1121 = vsel %vm580, %v1035, 0
        %v1124 = vsel %vm605, %v1093, 0
        %v1127 = vsel %vm605, %v1094, 0
        %1129 = vmatprep.subr.bf16.mxu0 0
        %1130 = vmatpush1.bf16.msra.mxu0 0
        %1131 = vmatprep.subr.bf16.mxu0 0
        %1132 = vmatpush1.bf16.msra.mxu0 0
        %1133 = vmatprep.subr.bf16.mxu0 0
        %1134 = vmatpush1.bf16.msra.mxu0 0
        %1135 = vmatprep.subr.bf16.mxu0 0
        %1136 = vmatpush1.bf16.msra.mxu0 0
        %1137 = vmatprep.subr.bf16.mxu0 0
        %1138 = vmatpush1.bf16.msra.mxu0 0
        %1139 = vmatprep.subr.bf16.mxu0 %v1127
        %1140 = vmatpush1.bf16.msra.mxu0 %v1124
        %1141 = vmatprep.subr.bf16.mxu0 %v1092
        %1142 = vmatpush1.bf16.msra.mxu0 %v1091
        %1143 = vmatprep.subr.bf16.mxu0 %v1090
        %1144 = vmatpush1.bf16.msra.mxu0 %v1089
        %1145 = vmatprep.subr.bf16.mxu0 0
        %1146 = vmatpush2.bf16.msra.mxu0 0
        %1147 = vmatprep.subr.bf16.mxu0 0
        %1148 = vmatpush2.bf16.msra.mxu0 0
        %1149 = vmatprep.subr.bf16.mxu0 0
        %1150 = vmatpush2.bf16.msra.mxu0 0
        %1151 = vmatprep.subr.bf16.mxu0 0
        %1152 = vmatpush2.bf16.msra.mxu0 0
        %1153 = vmatprep.subr.bf16.mxu0 0
        %1154 = vmatpush2.bf16.msra.mxu0 0
        %1155 = vmatprep.subr.bf16.mxu0 0
        %1156 = vmatpush2.bf16.msra.mxu0 0
        %1157 = vmatprep.subr.bf16.mxu0 0
        %1158 = vmatpush2.bf16.msra.mxu0 0
        %1159 = vmatprep.subr.bf16.mxu0 0
        %1160 = vmatpush2.bf16.msra.mxu0 0
        %1161 = vmatprep.mubr.bf16.mxu0 0
        %1162 = vmatmul.mubr.bf16.gmra.mxu0 %v1100
        %v1163 = vpop.f32.mrf.mxu0
        %v1164 = vadd.f32 0.0, %v1163
        %v1165 = vpop.f32.mrf.mxu0
        %v1166 = vadd.f32 0.0, %v1165
        %v1167 = vpop.f32.mrf.mxu0
        %v1168 = vadd.f32 0.0, %v1167
        %v1169 = vpop.f32.mrf.mxu0
        %v1170 = vadd.f32 0.0, %v1169
        %1171 = vmatprep.mubr.bf16.mxu0 0
        %1172 = vmatmul.mubr.bf16.gmra.mxu0 %v1103
        %v1173 = vpop.f32.mrf.mxu0
        %v1174 = vadd.f32 0.0, %v1173
        %v1175 = vpop.f32.mrf.mxu0
        %v1176 = vadd.f32 0.0, %v1175
        %v1177 = vpop.f32.mrf.mxu0
        %v1178 = vadd.f32 0.0, %v1177
        %v1179 = vpop.f32.mrf.mxu0
        %v1180 = vadd.f32 0.0, %v1179
        %1181 = vmatprep.mubr.bf16.mxu0 0
        %1182 = vmatmul.mubr.bf16.gmra.mxu0 %v1106
        %v1183 = vpop.f32.mrf.mxu0
        %v1184 = vadd.f32 0.0, %v1183
        %v1185 = vpop.f32.mrf.mxu0
        %v1186 = vadd.f32 0.0, %v1185
        %v1187 = vpop.f32.mrf.mxu0
        %v1188 = vadd.f32 0.0, %v1187
        %v1189 = vpop.f32.mrf.mxu0
        %v1190 = vadd.f32 0.0, %v1189
        %1191 = vmatprep.mubr.bf16.mxu0 0
        %1192 = vmatmul.mubr.bf16.gmra.mxu0 %v1109
        %v1193 = vpop.f32.mrf.mxu0
        %v1194 = vadd.f32 0.0, %v1193
        %v1195 = vpop.f32.mrf.mxu0
        %v1196 = vadd.f32 0.0, %v1195
        %v1197 = vpop.f32.mrf.mxu0
        %v1198 = vadd.f32 0.0, %v1197
        %v1199 = vpop.f32.mrf.mxu0
        %v1200 = vadd.f32 0.0, %v1199
        %1201 = vmatprep.mubr.bf16.mxu0 0
        %1202 = vmatmul.mubr.bf16.gmra.mxu0 %v1112
        %v1203 = vpop.f32.mrf.mxu0
        %v1204 = vadd.f32 0.0, %v1203
        %v1205 = vpop.f32.mrf.mxu0
        %v1206 = vadd.f32 0.0, %v1205
        %v1207 = vpop.f32.mrf.mxu0
        %v1208 = vadd.f32 0.0, %v1207
        %v1209 = vpop.f32.mrf.mxu0
        %v1210 = vadd.f32 0.0, %v1209
        %1211 = vmatprep.mubr.bf16.mxu0 0
        %1212 = vmatmul.mubr.bf16.gmra.mxu0 %v1115
        %v1213 = vpop.f32.mrf.mxu0
        %v1214 = vadd.f32 0.0, %v1213
        %v1215 = vpop.f32.mrf.mxu0
        %v1216 = vadd.f32 0.0, %v1215
        %v1217 = vpop.f32.mrf.mxu0
        %v1218 = vadd.f32 0.0, %v1217
        %v1219 = vpop.f32.mrf.mxu0
        %v1220 = vadd.f32 0.0, %v1219
        %1221 = vmatprep.mubr.bf16.mxu0 0
        %1222 = vmatmul.mubr.bf16.gmra.mxu0 %v1118
        %v1223 = vpop.f32.mrf.mxu0
        %v1224 = vadd.f32 0.0, %v1223
        %v1225 = vpop.f32.mrf.mxu0
        %v1226 = vadd.f32 0.0, %v1225
        %v1227 = vpop.f32.mrf.mxu0
        %v1228 = vadd.f32 0.0, %v1227
        %v1229 = vpop.f32.mrf.mxu0
        %v1230 = vadd.f32 0.0, %v1229
        %1231 = vmatprep.mubr.bf16.mxu0 0
        %1232 = vmatmul.mubr.bf16.gmra.mxu0 %v1121
        %v1233 = vpop.f32.mrf.mxu0
        %v1234 = vadd.f32 0.0, %v1233
        %v1235 = vpop.f32.mrf.mxu0
        %v1236 = vadd.f32 0.0, %v1235
        %v1237 = vpop.f32.mrf.mxu0
        %v1238 = vadd.f32 0.0, %v1237
        %v1239 = vpop.f32.mrf.mxu0
        %v1240 = vadd.f32 0.0, %v1239
        %1241 = vdwg.mxu0
        %v1242 = vadd.f32 %v855, %v1164
        %v1243 = vadd.f32 %v857, %v1166
        %v1244 = vadd.f32 %v859, %v1168
        %v1245 = vadd.f32 %v861, %v1170
        %v1246 = vadd.f32 %v865, %v1174
        %v1247 = vadd.f32 %v867, %v1176
        %v1248 = vadd.f32 %v869, %v1178
        %v1249 = vadd.f32 %v871, %v1180
        %v1250 = vadd.f32 %v875, %v1184
        %v1251 = vadd.f32 %v877, %v1186
        %v1252 = vadd.f32 %v879, %v1188
        %v1253 = vadd.f32 %v881, %v1190
        %v1254 = vadd.f32 %v885, %v1194
        %v1255 = vadd.f32 %v887, %v1196
        %v1256 = vadd.f32 %v889, %v1198
        %v1257 = vadd.f32 %v891, %v1200
        %v1258 = vadd.f32 %v895, %v1204
        %v1259 = vadd.f32 %v897, %v1206
        %v1260 = vadd.f32 %v899, %v1208
        %v1261 = vadd.f32 %v901, %v1210
        %v1262 = vadd.f32 %v905, %v1214
        %v1263 = vadd.f32 %v907, %v1216
        %v1264 = vadd.f32 %v909, %v1218
        %v1265 = vadd.f32 %v911, %v1220
        %v1266 = vadd.f32 %v915, %v1224
        %v1267 = vadd.f32 %v917, %v1226
        %v1268 = vadd.f32 %v919, %v1228
        %v1269 = vadd.f32 %v921, %v1230
        %v1270 = vadd.f32 %v925, %v1234
        %v1271 = vadd.f32 %v927, %v1236
        %v1272 = vadd.f32 %v929, %v1238
        %v1273 = vadd.f32 %v931, %v1240
        %v1274 = vld [vmem:[%s374] sm:$0xff]
        %v1275 = vld [vmem:[%s374 + $0x8] sm:$0xf]
        %v1276 = vld [vmem:[%s374 + $0xc] sm:$0xff]
        %v1277 = vld [vmem:[%s374 + $0x14] sm:$0xf]
        %v1278 = vld [vmem:[%s374 + $0x18] sm:$0xff]
        %v1279 = vld [vmem:[%s374 + $0x20] sm:$0xf]
        %v1280 = vld [vmem:[%s374 + $0x24] sm:$0xff]
        %v1281 = vld [vmem:[%s374 + $0x2c] sm:$0xf]
        %v1282 = vld [vmem:[%s374 + $0x30] sm:$0x33]
        %v1283 = vld [vmem:[%s374 + $0x38] sm:$0x3]
        %1284 = vrot.lane.b32.xlu0 %v432, 16
        %v1285 = vpop.permute.xlu0 %1284
        %v1286 = vrot.slane %v1285, 4
        %vm1287 = vcmask 130048
        %v1288 = vsel %vm1287, %v1286, %v1285
        %v1291 = vmul.bf16 %v1274, %v1288
        %v1292 = vmul.bf16 %v1275, %v1286
        %v1293 = vmul.bf16 %v1276, %v1288
        %v1294 = vmul.bf16 %v1277, %v1286
        %v1295 = vmul.bf16 %v1278, %v1288
        %v1296 = vmul.bf16 %v1279, %v1286
        %v1297 = vmul.bf16 %v1280, %v1288
        %v1298 = vmul.bf16 %v1281, %v1286
        %v1299 = vmul.bf16 %v1282, %v1288
        %v1300 = vmul.bf16 %v1283, %v1286
        %s1301 = scalar_lea.vmem %s1, 192
        %v1302 = vld [vmem:[%s1301] sm:$0xf]
        %v1303 = vld [vmem:[%s1301 + $0x4] sm:$0xf]
        %v1304 = vld [vmem:[%s1301 + $0x8] sm:$0xf]
        %v1305 = vld [vmem:[%s1301 + $0xc] sm:$0xf]
        %v1306 = vld [vmem:[%s1301 + $0x10] sm:$0xf]
        %v1307 = vld [vmem:[%s1301 + $0x14] sm:$0xf]
        %v1308 = vld [vmem:[%s1301 + $0x18] sm:$0xf]
        %v1309 = vld [vmem:[%s1301 + $0x1c] sm:$0xf]
        %v1310 = vld [vmem:[%s1301 + $0x20] sm:$0xf]
        %v1311 = vld [vmem:[%s1301 + $0x24] sm:$0xf]
        %v1312 = vld [vmem:[%s1301 + $0x28] sm:$0xf]
        %v1313 = vld [vmem:[%s1301 + $0x2c] sm:$0xf]
        %v1314 = vld [vmem:[%s1301 + $0x30] sm:$0xf]
        %v1315 = vld [vmem:[%s1301 + $0x34] sm:$0xf]
        %v1316 = vld [vmem:[%s1301 + $0x38] sm:$0xf]
        %v1317 = vld [vmem:[%s1301 + $0x3c] sm:$0xf]
        %v1334 = vunpack.c.l.b16 %v1302
        %v1335 = vunpack.c.l.b16 %v1303
        %v1336 = vunpack.c.l.b16 %v1304
        %v1337 = vunpack.c.l.b16 %v1305
        %v1338 = vunpack.c.l.b16 %v1306
        %v1339 = vunpack.c.l.b16 %v1307
        %v1340 = vunpack.c.l.b16 %v1308
        %v1341 = vunpack.c.l.b16 %v1309
        %v1342 = vunpack.c.l.b16 %v1310
        %v1343 = vunpack.c.l.b16 %v1311
        %v1344 = vunpack.c.l.b16 %v1312
        %v1345 = vunpack.c.l.b16 %v1313
        %v1346 = vunpack.c.l.b16 %v1314
        %v1347 = vunpack.c.l.b16 %v1315
        %v1348 = vunpack.c.l.b16 %v1316
        %v1349 = vunpack.c.l.b16 %v1317
        %v1350 = vpack.c.b16 %v1335, %v1334
        %v1351 = vpack.c.b16 %v1337, %v1336
        %v1352 = vpack.c.b16 %v1339, %v1338
        %v1353 = vpack.c.b16 %v1341, %v1340
        %v1354 = vpack.c.b16 %v1343, %v1342
        %v1355 = vpack.c.b16 %v1345, %v1344
        %v1356 = vpack.c.b16 %v1347, %v1346
        %v1357 = vpack.c.b16 %v1349, %v1348
        %v1368 = vunpack.c.l.b16 %v1291
        %v1369 = vunpack.c.h.b16 %v1291
        %v1370 = vunpack.c.l.b16 %v1292
        %v1371 = vunpack.c.l.b16 %v1293
        %v1372 = vunpack.c.h.b16 %v1293
        %v1373 = vunpack.c.l.b16 %v1294
        %v1374 = vunpack.c.l.b16 %v1295
        %v1375 = vunpack.c.h.b16 %v1295
        %v1376 = vunpack.c.l.b16 %v1296
        %v1377 = vunpack.c.l.b16 %v1297
        %v1378 = vunpack.c.h.b16 %v1297
        %v1379 = vunpack.c.l.b16 %v1298
        %v1380 = vunpack.c.l.b16 %v1299
        %v1381 = vunpack.c.h.b16 %v1299
        %v1382 = vunpack.c.l.b16 %v1300
        %v1383 = vpack.c.b16 %v1371, %v1368
        %v1384 = vpack.c.b16 %v1372, %v1369
        %v1385 = vpack.c.b16 %v1373, %v1370
        %v1386 = vpack.c.b16 %v1377, %v1374
        %v1387 = vpack.c.b16 %v1378, %v1375
        %v1388 = vpack.c.b16 %v1379, %v1376
        %v1389 = vpack.c.b16 %v1380, %v1380
        %v1390 = vpack.c.b16 %v1381, %v1381
        %v1391 = vpack.c.b16 %v1382, %v1382
        %1392 = vrot.lane.b32.xlu0 %v1383, 112
        %v1393 = vpop.permute.xlu0 %1392
        %1394 = vrot.lane.b32.xlu0 %v1384, 112
        %v1395 = vpop.permute.xlu0 %1394
        %1396 = vrot.lane.b32.xlu0 %v1385, 112
        %v1397 = vpop.permute.xlu0 %1396
        %1398 = vrot.lane.b32.xlu0 %v1386, 112
        %v1399 = vpop.permute.xlu0 %1398
        %1400 = vrot.lane.b32.xlu0 %v1387, 112
        %v1401 = vpop.permute.xlu0 %1400
        %1402 = vrot.lane.b32.xlu0 %v1388, 112
        %v1403 = vpop.permute.xlu0 %1402
        %1404 = vrot.lane.b32.xlu0 %v1389, 112
        %v1405 = vpop.permute.xlu0 %1404
        %1406 = vrot.lane.b32.xlu0 %v1390, 112
        %v1407 = vpop.permute.xlu0 %1406
        %1408 = vrot.lane.b32.xlu0 %v1391, 112
        %v1409 = vpop.permute.xlu0 %1408
        %vm1410 = vcmask 916480
        %v1411 = vsel %vm1410, %v1393, %v1395
        %v1412 = vsel %vm1410, %v1395, %v1397
        %v1413 = vsel %vm1410, %v1399, %v1401
        %v1414 = vsel %vm1410, %v1401, %v1403
        %v1415 = vsel %vm1410, %v1405, %v1407
        %v1416 = vsel %vm1410, %v1407, %v1409
        %v1422 = vsel %vm580, %v1350, 0
        %v1425 = vsel %vm580, %v1351, 0
        %v1428 = vsel %vm580, %v1352, 0
        %v1431 = vsel %vm580, %v1353, 0
        %v1434 = vsel %vm580, %v1354, 0
        %v1437 = vsel %vm580, %v1355, 0
        %v1440 = vsel %vm580, %v1356, 0
        %v1443 = vsel %vm580, %v1357, 0
        %v1446 = vsel %vm605, %v1415, 0
        %v1449 = vsel %vm605, %v1416, 0
        %1451 = vmatprep.subr.bf16.mxu0 0
        %1452 = vmatpush1.bf16.msra.mxu0 0
        %1453 = vmatprep.subr.bf16.mxu0 0
        %1454 = vmatpush1.bf16.msra.mxu0 0
        %1455 = vmatprep.subr.bf16.mxu0 0
        %1456 = vmatpush1.bf16.msra.mxu0 0
        %1457 = vmatprep.subr.bf16.mxu0 0
        %1458 = vmatpush1.bf16.msra.mxu0 0
        %1459 = vmatprep.subr.bf16.mxu0 0
        %1460 = vmatpush1.bf16.msra.mxu0 0
        %1461 = vmatprep.subr.bf16.mxu0 %v1449
        %1462 = vmatpush1.bf16.msra.mxu0 %v1446
        %1463 = vmatprep.subr.bf16.mxu0 %v1414
        %1464 = vmatpush1.bf16.msra.mxu0 %v1413
        %1465 = vmatprep.subr.bf16.mxu0 %v1412
        %1466 = vmatpush1.bf16.msra.mxu0 %v1411
        %1467 = vmatprep.subr.bf16.mxu0 0
        %1468 = vmatpush2.bf16.msra.mxu0 0
        %1469 = vmatprep.subr.bf16.mxu0 0
        %1470 = vmatpush2.bf16.msra.mxu0 0
        %1471 = vmatprep.subr.bf16.mxu0 0
        %1472 = vmatpush2.bf16.msra.mxu0 0
        %1473 = vmatprep.subr.bf16.mxu0 0
        %1474 = vmatpush2.bf16.msra.mxu0 0
        %1475 = vmatprep.subr.bf16.mxu0 0
        %1476 = vmatpush2.bf16.msra.mxu0 0
        %1477 = vmatprep.subr.bf16.mxu0 0
        %1478 = vmatpush2.bf16.msra.mxu0 0
        %1479 = vmatprep.subr.bf16.mxu0 0
        %1480 = vmatpush2.bf16.msra.mxu0 0
        %1481 = vmatprep.subr.bf16.mxu0 0
        %1482 = vmatpush2.bf16.msra.mxu0 0
        %1483 = vmatprep.mubr.bf16.mxu0 0
        %1484 = vmatmul.mubr.bf16.gmra.mxu0 %v1422
        %v1485 = vpop.f32.mrf.mxu0
        %v1486 = vadd.f32 0.0, %v1485
        %v1487 = vpop.f32.mrf.mxu0
        %v1488 = vadd.f32 0.0, %v1487
        %v1489 = vpop.f32.mrf.mxu0
        %v1490 = vadd.f32 0.0, %v1489
        %v1491 = vpop.f32.mrf.mxu0
        %v1492 = vadd.f32 0.0, %v1491
        %1493 = vmatprep.mubr.bf16.mxu0 0
        %1494 = vmatmul.mubr.bf16.gmra.mxu0 %v1425
        %v1495 = vpop.f32.mrf.mxu0
        %v1496 = vadd.f32 0.0, %v1495
        %v1497 = vpop.f32.mrf.mxu0
        %v1498 = vadd.f32 0.0, %v1497
        %v1499 = vpop.f32.mrf.mxu0
        %v1500 = vadd.f32 0.0, %v1499
        %v1501 = vpop.f32.mrf.mxu0
        %v1502 = vadd.f32 0.0, %v1501
        %1503 = vmatprep.mubr.bf16.mxu0 0
        %1504 = vmatmul.mubr.bf16.gmra.mxu0 %v1428
        %v1505 = vpop.f32.mrf.mxu0
        %v1506 = vadd.f32 0.0, %v1505
        %v1507 = vpop.f32.mrf.mxu0
        %v1508 = vadd.f32 0.0, %v1507
        %v1509 = vpop.f32.mrf.mxu0
        %v1510 = vadd.f32 0.0, %v1509
        %v1511 = vpop.f32.mrf.mxu0
        %v1512 = vadd.f32 0.0, %v1511
        %1513 = vmatprep.mubr.bf16.mxu0 0
        %1514 = vmatmul.mubr.bf16.gmra.mxu0 %v1431
        %v1515 = vpop.f32.mrf.mxu0
        %v1516 = vadd.f32 0.0, %v1515
        %v1517 = vpop.f32.mrf.mxu0
        %v1518 = vadd.f32 0.0, %v1517
        %v1519 = vpop.f32.mrf.mxu0
        %v1520 = vadd.f32 0.0, %v1519
        %v1521 = vpop.f32.mrf.mxu0
        %v1522 = vadd.f32 0.0, %v1521
        %1523 = vmatprep.mubr.bf16.mxu0 0
        %1524 = vmatmul.mubr.bf16.gmra.mxu0 %v1434
        %v1525 = vpop.f32.mrf.mxu0
        %v1526 = vadd.f32 0.0, %v1525
        %v1527 = vpop.f32.mrf.mxu0
        %v1528 = vadd.f32 0.0, %v1527
        %v1529 = vpop.f32.mrf.mxu0
        %v1530 = vadd.f32 0.0, %v1529
        %v1531 = vpop.f32.mrf.mxu0
        %v1532 = vadd.f32 0.0, %v1531
        %1533 = vmatprep.mubr.bf16.mxu0 0
        %1534 = vmatmul.mubr.bf16.gmra.mxu0 %v1437
        %v1535 = vpop.f32.mrf.mxu0
        %v1536 = vadd.f32 0.0, %v1535
        %v1537 = vpop.f32.mrf.mxu0
        %v1538 = vadd.f32 0.0, %v1537
        %v1539 = vpop.f32.mrf.mxu0
        %v1540 = vadd.f32 0.0, %v1539
        %v1541 = vpop.f32.mrf.mxu0
        %v1542 = vadd.f32 0.0, %v1541
        %1543 = vmatprep.mubr.bf16.mxu0 0
        %1544 = vmatmul.mubr.bf16.gmra.mxu0 %v1440
        %v1545 = vpop.f32.mrf.mxu0
        %v1546 = vadd.f32 0.0, %v1545
        %v1547 = vpop.f32.mrf.mxu0
        %v1548 = vadd.f32 0.0, %v1547
        %v1549 = vpop.f32.mrf.mxu0
        %v1550 = vadd.f32 0.0, %v1549
        %v1551 = vpop.f32.mrf.mxu0
        %v1552 = vadd.f32 0.0, %v1551
        %1553 = vmatprep.mubr.bf16.mxu0 0
        %1554 = vmatmul.mubr.bf16.gmra.mxu0 %v1443
        %v1555 = vpop.f32.mrf.mxu0
        %v1556 = vadd.f32 0.0, %v1555
        %v1557 = vpop.f32.mrf.mxu0
        %v1558 = vadd.f32 0.0, %v1557
        %v1559 = vpop.f32.mrf.mxu0
        %v1560 = vadd.f32 0.0, %v1559
        %v1561 = vpop.f32.mrf.mxu0
        %v1562 = vadd.f32 0.0, %v1561
        %1563 = vdwg.mxu0
        %v1564 = vadd.f32 %v1242, %v1486
        %v1565 = vadd.f32 %v1243, %v1488
        %v1566 = vadd.f32 %v1244, %v1490
        %v1567 = vadd.f32 %v1245, %v1492
        %v1568 = vadd.f32 %v1246, %v1496
        %v1569 = vadd.f32 %v1247, %v1498
        %v1570 = vadd.f32 %v1248, %v1500
        %v1571 = vadd.f32 %v1249, %v1502
        %v1572 = vadd.f32 %v1250, %v1506
        %v1573 = vadd.f32 %v1251, %v1508
        %v1574 = vadd.f32 %v1252, %v1510
        %v1575 = vadd.f32 %v1253, %v1512
        %v1576 = vadd.f32 %v1254, %v1516
        %v1577 = vadd.f32 %v1255, %v1518
        %v1578 = vadd.f32 %v1256, %v1520
        %v1579 = vadd.f32 %v1257, %v1522
        %v1580 = vadd.f32 %v1258, %v1526
        %v1581 = vadd.f32 %v1259, %v1528
        %v1582 = vadd.f32 %v1260, %v1530
        %v1583 = vadd.f32 %v1261, %v1532
        %v1584 = vadd.f32 %v1262, %v1536
        %v1585 = vadd.f32 %v1263, %v1538
        %v1586 = vadd.f32 %v1264, %v1540
        %v1587 = vadd.f32 %v1265, %v1542
        %v1588 = vadd.f32 %v1266, %v1546
        %v1589 = vadd.f32 %v1267, %v1548
        %v1590 = vadd.f32 %v1268, %v1550
        %v1591 = vadd.f32 %v1269, %v1552
        %v1592 = vadd.f32 %v1270, %v1556
        %v1593 = vadd.f32 %v1271, %v1558
        %v1594 = vadd.f32 %v1272, %v1560
        %v1595 = vadd.f32 %v1273, %v1562
        %s1596 = scalar_lea.vmem %s1, 256
        %v1597 = vld [vmem:[%s1596] sm:$0xf]
        %v1598 = vld [vmem:[%s1596 + $0x4] sm:$0xf]
        %v1599 = vld [vmem:[%s1596 + $0x8] sm:$0xf]
        %v1600 = vld [vmem:[%s1596 + $0xc] sm:$0xf]
        %v1601 = vld [vmem:[%s1596 + $0x10] sm:$0xf]
        %v1602 = vld [vmem:[%s1596 + $0x14] sm:$0xf]
        %v1603 = vld [vmem:[%s1596 + $0x18] sm:$0xf]
        %v1604 = vld [vmem:[%s1596 + $0x1c] sm:$0xf]
        %v1605 = vld [vmem:[%s1596 + $0x20] sm:$0xf]
        %v1606 = vld [vmem:[%s1596 + $0x24] sm:$0xf]
        %v1607 = vld [vmem:[%s1596 + $0x28] sm:$0xf]
        %v1608 = vld [vmem:[%s1596 + $0x2c] sm:$0xf]
        %v1609 = vld [vmem:[%s1596 + $0x30] sm:$0xf]
        %v1610 = vld [vmem:[%s1596 + $0x34] sm:$0xf]
        %v1611 = vld [vmem:[%s1596 + $0x38] sm:$0xf]
        %v1612 = vld [vmem:[%s1596 + $0x3c] sm:$0xf]
        %v1629 = vunpack.c.l.b16 %v1597
        %v1630 = vunpack.c.l.b16 %v1598
        %v1631 = vunpack.c.l.b16 %v1599
        %v1632 = vunpack.c.l.b16 %v1600
        %v1633 = vunpack.c.l.b16 %v1601
        %v1634 = vunpack.c.l.b16 %v1602
        %v1635 = vunpack.c.l.b16 %v1603
        %v1636 = vunpack.c.l.b16 %v1604
        %v1637 = vunpack.c.l.b16 %v1605
        %v1638 = vunpack.c.l.b16 %v1606
        %v1639 = vunpack.c.l.b16 %v1607
        %v1640 = vunpack.c.l.b16 %v1608
        %v1641 = vunpack.c.l.b16 %v1609
        %v1642 = vunpack.c.l.b16 %v1610
        %v1643 = vunpack.c.l.b16 %v1611
        %v1644 = vunpack.c.l.b16 %v1612
        %v1645 = vpack.c.b16 %v1630, %v1629
        %v1646 = vpack.c.b16 %v1632, %v1631
        %v1647 = vpack.c.b16 %v1634, %v1633
        %v1648 = vpack.c.b16 %v1636, %v1635
        %v1649 = vpack.c.b16 %v1638, %v1637
        %v1650 = vpack.c.b16 %v1640, %v1639
        %v1651 = vpack.c.b16 %v1642, %v1641
        %v1652 = vpack.c.b16 %v1644, %v1643
        %v1663 = vunpack.c.l.b16 %v1274
        %v1664 = vunpack.c.h.b16 %v1274
        %v1665 = vunpack.c.l.b16 %v1275
        %v1666 = vunpack.c.l.b16 %v1276
        %v1667 = vunpack.c.h.b16 %v1276
        %v1668 = vunpack.c.l.b16 %v1277
        %v1669 = vunpack.c.l.b16 %v1278
        %v1670 = vunpack.c.h.b16 %v1278
        %v1671 = vunpack.c.l.b16 %v1279
        %v1672 = vunpack.c.l.b16 %v1280
        %v1673 = vunpack.c.h.b16 %v1280
        %v1674 = vunpack.c.l.b16 %v1281
        %v1675 = vunpack.c.l.b16 %v1282
        %v1676 = vunpack.c.h.b16 %v1282
        %v1677 = vunpack.c.l.b16 %v1283
        %v1678 = vpack.c.b16 %v1666, %v1663
        %v1679 = vpack.c.b16 %v1667, %v1664
        %v1680 = vpack.c.b16 %v1668, %v1665
        %v1681 = vpack.c.b16 %v1672, %v1669
        %v1682 = vpack.c.b16 %v1673, %v1670
        %v1683 = vpack.c.b16 %v1674, %v1671
        %v1684 = vpack.c.b16 %v1675, %v1675
        %v1685 = vpack.c.b16 %v1676, %v1676
        %v1686 = vpack.c.b16 %v1677, %v1677
        %1687 = vrot.lane.b32.xlu0 %v1678, 111
        %v1688 = vpop.permute.xlu0 %1687
        %1689 = vrot.lane.b32.xlu0 %v1679, 111
        %v1690 = vpop.permute.xlu0 %1689
        %1691 = vrot.lane.b32.xlu0 %v1680, 111
        %v1692 = vpop.permute.xlu0 %1691
        %1693 = vrot.lane.b32.xlu0 %v1681, 111
        %v1694 = vpop.permute.xlu0 %1693
        %1695 = vrot.lane.b32.xlu0 %v1682, 111
        %v1696 = vpop.permute.xlu0 %1695
        %1697 = vrot.lane.b32.xlu0 %v1683, 111
        %v1698 = vpop.permute.xlu0 %1697
        %1699 = vrot.lane.b32.xlu0 %v1684, 111
        %v1700 = vpop.permute.xlu0 %1699
        %1701 = vrot.lane.b32.xlu0 %v1685, 111
        %v1702 = vpop.permute.xlu0 %1701
        %1703 = vrot.lane.b32.xlu0 %v1686, 111
        %v1704 = vpop.permute.xlu0 %1703
        %vm1705 = vcmask 908288
        %v1706 = vsel %vm1705, %v1688, %v1690
        %v1707 = vsel %vm1705, %v1690, %v1692
        %v1708 = vsel %vm1705, %v1694, %v1696
        %v1709 = vsel %vm1705, %v1696, %v1698
        %v1710 = vsel %vm1705, %v1700, %v1702
        %v1711 = vsel %vm1705, %v1702, %v1704
        %v1717 = vsel %vm580, %v1645, 0
        %v1720 = vsel %vm580, %v1646, 0
        %v1723 = vsel %vm580, %v1647, 0
        %v1726 = vsel %vm580, %v1648, 0
        %v1729 = vsel %vm580, %v1649, 0
        %v1732 = vsel %vm580, %v1650, 0
        %v1735 = vsel %vm580, %v1651, 0
        %v1738 = vsel %vm580, %v1652, 0
        %v1741 = vsel %vm605, %v1710, 0
        %v1744 = vsel %vm605, %v1711, 0
        %1746 = vmatprep.subr.bf16.mxu0 0
        %1747 = vmatpush1.bf16.msra.mxu0 0
        %1748 = vmatprep.subr.bf16.mxu0 0
        %1749 = vmatpush1.bf16.msra.mxu0 0
        %1750 = vmatprep.subr.bf16.mxu0 0
        %1751 = vmatpush1.bf16.msra.mxu0 0
        %1752 = vmatprep.subr.bf16.mxu0 0
        %1753 = vmatpush1.bf16.msra.mxu0 0
        %1754 = vmatprep.subr.bf16.mxu0 0
        %1755 = vmatpush1.bf16.msra.mxu0 0
        %1756 = vmatprep.subr.bf16.mxu0 %v1744
        %1757 = vmatpush1.bf16.msra.mxu0 %v1741
        %1758 = vmatprep.subr.bf16.mxu0 %v1709
        %1759 = vmatpush1.bf16.msra.mxu0 %v1708
        %1760 = vmatprep.subr.bf16.mxu0 %v1707
        %1761 = vmatpush1.bf16.msra.mxu0 %v1706
        %1762 = vmatprep.subr.bf16.mxu0 0
        %1763 = vmatpush2.bf16.msra.mxu0 0
        %1764 = vmatprep.subr.bf16.mxu0 0
        %1765 = vmatpush2.bf16.msra.mxu0 0
        %1766 = vmatprep.subr.bf16.mxu0 0
        %1767 = vmatpush2.bf16.msra.mxu0 0
        %1768 = vmatprep.subr.bf16.mxu0 0
        %1769 = vmatpush2.bf16.msra.mxu0 0
        %1770 = vmatprep.subr.bf16.mxu0 0
        %1771 = vmatpush2.bf16.msra.mxu0 0
        %1772 = vmatprep.subr.bf16.mxu0 0
        %1773 = vmatpush2.bf16.msra.mxu0 0
        %1774 = vmatprep.subr.bf16.mxu0 0
        %1775 = vmatpush2.bf16.msra.mxu0 0
        %1776 = vmatprep.subr.bf16.mxu0 0
        %1777 = vmatpush2.bf16.msra.mxu0 0
        %1778 = vmatprep.mubr.bf16.mxu0 0
        %1779 = vmatmul.mubr.bf16.gmra.mxu0 %v1717
        %v1780 = vpop.f32.mrf.mxu0
        %v1781 = vadd.f32 0.0, %v1780
        %v1782 = vpop.f32.mrf.mxu0
        %v1783 = vadd.f32 0.0, %v1782
        %v1784 = vpop.f32.mrf.mxu0
        %v1785 = vadd.f32 0.0, %v1784
        %v1786 = vpop.f32.mrf.mxu0
        %v1787 = vadd.f32 0.0, %v1786
        %1788 = vmatprep.mubr.bf16.mxu0 0
        %1789 = vmatmul.mubr.bf16.gmra.mxu0 %v1720
        %v1790 = vpop.f32.mrf.mxu0
        %v1791 = vadd.f32 0.0, %v1790
        %v1792 = vpop.f32.mrf.mxu0
        %v1793 = vadd.f32 0.0, %v1792
        %v1794 = vpop.f32.mrf.mxu0
        %v1795 = vadd.f32 0.0, %v1794
        %v1796 = vpop.f32.mrf.mxu0
        %v1797 = vadd.f32 0.0, %v1796
        %1798 = vmatprep.mubr.bf16.mxu0 0
        %1799 = vmatmul.mubr.bf16.gmra.mxu0 %v1723
        %v1800 = vpop.f32.mrf.mxu0
        %v1801 = vadd.f32 0.0, %v1800
        %v1802 = vpop.f32.mrf.mxu0
        %v1803 = vadd.f32 0.0, %v1802
        %v1804 = vpop.f32.mrf.mxu0
        %v1805 = vadd.f32 0.0, %v1804
        %v1806 = vpop.f32.mrf.mxu0
        %v1807 = vadd.f32 0.0, %v1806
        %1808 = vmatprep.mubr.bf16.mxu0 0
        %1809 = vmatmul.mubr.bf16.gmra.mxu0 %v1726
        %v1810 = vpop.f32.mrf.mxu0
        %v1811 = vadd.f32 0.0, %v1810
        %v1812 = vpop.f32.mrf.mxu0
        %v1813 = vadd.f32 0.0, %v1812
        %v1814 = vpop.f32.mrf.mxu0
        %v1815 = vadd.f32 0.0, %v1814
        %v1816 = vpop.f32.mrf.mxu0
        %v1817 = vadd.f32 0.0, %v1816
        %1818 = vmatprep.mubr.bf16.mxu0 0
        %1819 = vmatmul.mubr.bf16.gmra.mxu0 %v1729
        %v1820 = vpop.f32.mrf.mxu0
        %v1821 = vadd.f32 0.0, %v1820
        %v1822 = vpop.f32.mrf.mxu0
        %v1823 = vadd.f32 0.0, %v1822
        %v1824 = vpop.f32.mrf.mxu0
        %v1825 = vadd.f32 0.0, %v1824
        %v1826 = vpop.f32.mrf.mxu0
        %v1827 = vadd.f32 0.0, %v1826
        %1828 = vmatprep.mubr.bf16.mxu0 0
        %1829 = vmatmul.mubr.bf16.gmra.mxu0 %v1732
        %v1830 = vpop.f32.mrf.mxu0
        %v1831 = vadd.f32 0.0, %v1830
        %v1832 = vpop.f32.mrf.mxu0
        %v1833 = vadd.f32 0.0, %v1832
        %v1834 = vpop.f32.mrf.mxu0
        %v1835 = vadd.f32 0.0, %v1834
        %v1836 = vpop.f32.mrf.mxu0
        %v1837 = vadd.f32 0.0, %v1836
        %1838 = vmatprep.mubr.bf16.mxu0 0
        %1839 = vmatmul.mubr.bf16.gmra.mxu0 %v1735
        %v1840 = vpop.f32.mrf.mxu0
        %v1841 = vadd.f32 0.0, %v1840
        %v1842 = vpop.f32.mrf.mxu0
        %v1843 = vadd.f32 0.0, %v1842
        %v1844 = vpop.f32.mrf.mxu0
        %v1845 = vadd.f32 0.0, %v1844
        %v1846 = vpop.f32.mrf.mxu0
        %v1847 = vadd.f32 0.0, %v1846
        %1848 = vmatprep.mubr.bf16.mxu0 0
        %1849 = vmatmul.mubr.bf16.gmra.mxu0 %v1738
        %v1850 = vpop.f32.mrf.mxu0
        %v1851 = vadd.f32 0.0, %v1850
        %v1852 = vpop.f32.mrf.mxu0
        %v1853 = vadd.f32 0.0, %v1852
        %v1854 = vpop.f32.mrf.mxu0
        %v1855 = vadd.f32 0.0, %v1854
        %v1856 = vpop.f32.mrf.mxu0
        %v1857 = vadd.f32 0.0, %v1856
        %1858 = vdwg.mxu0
        %v1859 = vadd.f32 %v1564, %v1781
        %v1860 = vadd.f32 %v1565, %v1783
        %v1861 = vadd.f32 %v1566, %v1785
        %v1862 = vadd.f32 %v1567, %v1787
        %v1863 = vadd.f32 %v1568, %v1791
        %v1864 = vadd.f32 %v1569, %v1793
        %v1865 = vadd.f32 %v1570, %v1795
        %v1866 = vadd.f32 %v1571, %v1797
        %v1867 = vadd.f32 %v1572, %v1801
        %v1868 = vadd.f32 %v1573, %v1803
        %v1869 = vadd.f32 %v1574, %v1805
        %v1870 = vadd.f32 %v1575, %v1807
        %v1871 = vadd.f32 %v1576, %v1811
        %v1872 = vadd.f32 %v1577, %v1813
        %v1873 = vadd.f32 %v1578, %v1815
        %v1874 = vadd.f32 %v1579, %v1817
        %v1875 = vadd.f32 %v1580, %v1821
        %v1876 = vadd.f32 %v1581, %v1823
        %v1877 = vadd.f32 %v1582, %v1825
        %v1878 = vadd.f32 %v1583, %v1827
        %v1879 = vadd.f32 %v1584, %v1831
        %v1880 = vadd.f32 %v1585, %v1833
        %v1881 = vadd.f32 %v1586, %v1835
        %v1882 = vadd.f32 %v1587, %v1837
        %v1883 = vadd.f32 %v1588, %v1841
        %v1884 = vadd.f32 %v1589, %v1843
        %v1885 = vadd.f32 %v1590, %v1845
        %v1886 = vadd.f32 %v1591, %v1847
        %v1887 = vadd.f32 %v1592, %v1851
        %v1888 = vadd.f32 %v1593, %v1853
        %v1889 = vadd.f32 %v1594, %v1855
        %v1890 = vadd.f32 %v1595, %v1857
        %1891 = vrot.lane.b32.xlu0 %v961, 18
        %v1892 = vpop.permute.xlu0 %1891
        %v1893 = vrot.slane %v1892, 4
        %vm1894 = vcmask 146432
        %v1895 = vsel %vm1894, %v1893, %v1892
        %v1898 = vmul.bf16 %v1274, %v1895
        %v1899 = vmul.bf16 %v1275, %v1893
        %v1900 = vmul.bf16 %v1276, %v1895
        %v1901 = vmul.bf16 %v1277, %v1893
        %v1902 = vmul.bf16 %v1278, %v1895
        %v1903 = vmul.bf16 %v1279, %v1893
        %v1904 = vmul.bf16 %v1280, %v1895
        %v1905 = vmul.bf16 %v1281, %v1893
        %v1906 = vmul.bf16 %v1282, %v1895
        %v1907 = vmul.bf16 %v1283, %v1893
        %s1908 = scalar_lea.vmem %s1, 320
        %v1909 = vld [vmem:[%s1908] sm:$0xf]
        %v1910 = vld [vmem:[%s1908 + $0x4] sm:$0xf]
        %v1911 = vld [vmem:[%s1908 + $0x8] sm:$0xf]
        %v1912 = vld [vmem:[%s1908 + $0xc] sm:$0xf]
        %v1913 = vld [vmem:[%s1908 + $0x10] sm:$0xf]
        %v1914 = vld [vmem:[%s1908 + $0x14] sm:$0xf]
        %v1915 = vld [vmem:[%s1908 + $0x18] sm:$0xf]
        %v1916 = vld [vmem:[%s1908 + $0x1c] sm:$0xf]
        %v1917 = vld [vmem:[%s1908 + $0x20] sm:$0xf]
        %v1918 = vld [vmem:[%s1908 + $0x24] sm:$0xf]
        %v1919 = vld [vmem:[%s1908 + $0x28] sm:$0xf]
        %v1920 = vld [vmem:[%s1908 + $0x2c] sm:$0xf]
        %v1921 = vld [vmem:[%s1908 + $0x30] sm:$0xf]
        %v1922 = vld [vmem:[%s1908 + $0x34] sm:$0xf]
        %v1923 = vld [vmem:[%s1908 + $0x38] sm:$0xf]
        %v1924 = vld [vmem:[%s1908 + $0x3c] sm:$0xf]
        %v1941 = vunpack.c.l.b16 %v1909
        %v1942 = vunpack.c.l.b16 %v1910
        %v1943 = vunpack.c.l.b16 %v1911
        %v1944 = vunpack.c.l.b16 %v1912
        %v1945 = vunpack.c.l.b16 %v1913
        %v1946 = vunpack.c.l.b16 %v1914
        %v1947 = vunpack.c.l.b16 %v1915
        %v1948 = vunpack.c.l.b16 %v1916
        %v1949 = vunpack.c.l.b16 %v1917
        %v1950 = vunpack.c.l.b16 %v1918
        %v1951 = vunpack.c.l.b16 %v1919
        %v1952 = vunpack.c.l.b16 %v1920
        %v1953 = vunpack.c.l.b16 %v1921
        %v1954 = vunpack.c.l.b16 %v1922
        %v1955 = vunpack.c.l.b16 %v1923
        %v1956 = vunpack.c.l.b16 %v1924
        %v1957 = vpack.c.b16 %v1942, %v1941
        %v1958 = vpack.c.b16 %v1944, %v1943
        %v1959 = vpack.c.b16 %v1946, %v1945
        %v1960 = vpack.c.b16 %v1948, %v1947
        %v1961 = vpack.c.b16 %v1950, %v1949
        %v1962 = vpack.c.b16 %v1952, %v1951
        %v1963 = vpack.c.b16 %v1954, %v1953
        %v1964 = vpack.c.b16 %v1956, %v1955
        %v1975 = vunpack.c.l.b16 %v1898
        %v1976 = vunpack.c.h.b16 %v1898
        %v1977 = vunpack.c.l.b16 %v1899
        %v1978 = vunpack.c.l.b16 %v1900
        %v1979 = vunpack.c.h.b16 %v1900
        %v1980 = vunpack.c.l.b16 %v1901
        %v1981 = vunpack.c.l.b16 %v1902
        %v1982 = vunpack.c.h.b16 %v1902
        %v1983 = vunpack.c.l.b16 %v1903
        %v1984 = vunpack.c.l.b16 %v1904
        %v1985 = vunpack.c.h.b16 %v1904
        %v1986 = vunpack.c.l.b16 %v1905
        %v1987 = vunpack.c.l.b16 %v1906
        %v1988 = vunpack.c.h.b16 %v1906
        %v1989 = vunpack.c.l.b16 %v1907
        %v1990 = vpack.c.b16 %v1978, %v1975
        %v1991 = vpack.c.b16 %v1979, %v1976
        %v1992 = vpack.c.b16 %v1980, %v1977
        %v1993 = vpack.c.b16 %v1984, %v1981
        %v1994 = vpack.c.b16 %v1985, %v1982
        %v1995 = vpack.c.b16 %v1986, %v1983
        %v1996 = vpack.c.b16 %v1987, %v1987
        %v1997 = vpack.c.b16 %v1988, %v1988
        %v1998 = vpack.c.b16 %v1989, %v1989
        %1999 = vrot.lane.b32.xlu0 %v1990, 110
        %v2000 = vpop.permute.xlu0 %1999
        %2001 = vrot.lane.b32.xlu0 %v1991, 110
        %v2002 = vpop.permute.xlu0 %2001
        %2003 = vrot.lane.b32.xlu0 %v1992, 110
        %v2004 = vpop.permute.xlu0 %2003
        %2005 = vrot.lane.b32.xlu0 %v1993, 110
        %v2006 = vpop.permute.xlu0 %2005
        %2007 = vrot.lane.b32.xlu0 %v1994, 110
        %v2008 = vpop.permute.xlu0 %2007
        %2009 = vrot.lane.b32.xlu0 %v1995, 110
        %v2010 = vpop.permute.xlu0 %2009
        %2011 = vrot.lane.b32.xlu0 %v1996, 110
        %v2012 = vpop.permute.xlu0 %2011
        %2013 = vrot.lane.b32.xlu0 %v1997, 110
        %v2014 = vpop.permute.xlu0 %2013
        %2015 = vrot.lane.b32.xlu0 %v1998, 110
        %v2016 = vpop.permute.xlu0 %2015
        %vm2017 = vcmask 900096
        %v2018 = vsel %vm2017, %v2000, %v2002
        %v2019 = vsel %vm2017, %v2002, %v2004
        %v2020 = vsel %vm2017, %v2006, %v2008
        %v2021 = vsel %vm2017, %v2008, %v2010
        %v2022 = vsel %vm2017, %v2012, %v2014
        %v2023 = vsel %vm2017, %v2014, %v2016
        %v2029 = vsel %vm580, %v1957, 0
        %v2032 = vsel %vm580, %v1958, 0
        %v2035 = vsel %vm580, %v1959, 0
        %v2038 = vsel %vm580, %v1960, 0
        %v2041 = vsel %vm580, %v1961, 0
        %v2044 = vsel %vm580, %v1962, 0
        %v2047 = vsel %vm580, %v1963, 0
        %v2050 = vsel %vm580, %v1964, 0
        %v2053 = vsel %vm605, %v2022, 0
        %v2056 = vsel %vm605, %v2023, 0
        %2058 = vmatprep.subr.bf16.mxu0 0
        %2059 = vmatpush1.bf16.msra.mxu0 0
        %2060 = vmatprep.subr.bf16.mxu0 0
        %2061 = vmatpush1.bf16.msra.mxu0 0
        %2062 = vmatprep.subr.bf16.mxu0 0
        %2063 = vmatpush1.bf16.msra.mxu0 0
        %2064 = vmatprep.subr.bf16.mxu0 0
        %2065 = vmatpush1.bf16.msra.mxu0 0
        %2066 = vmatprep.subr.bf16.mxu0 0
        %2067 = vmatpush1.bf16.msra.mxu0 0
        %2068 = vmatprep.subr.bf16.mxu0 %v2056
        %2069 = vmatpush1.bf16.msra.mxu0 %v2053
        %2070 = vmatprep.subr.bf16.mxu0 %v2021
        %2071 = vmatpush1.bf16.msra.mxu0 %v2020
        %2072 = vmatprep.subr.bf16.mxu0 %v2019
        %2073 = vmatpush1.bf16.msra.mxu0 %v2018
        %2074 = vmatprep.subr.bf16.mxu0 0
        %2075 = vmatpush2.bf16.msra.mxu0 0
        %2076 = vmatprep.subr.bf16.mxu0 0
        %2077 = vmatpush2.bf16.msra.mxu0 0
        %2078 = vmatprep.subr.bf16.mxu0 0
        %2079 = vmatpush2.bf16.msra.mxu0 0
        %2080 = vmatprep.subr.bf16.mxu0 0
        %2081 = vmatpush2.bf16.msra.mxu0 0
        %2082 = vmatprep.subr.bf16.mxu0 0
        %2083 = vmatpush2.bf16.msra.mxu0 0
        %2084 = vmatprep.subr.bf16.mxu0 0
        %2085 = vmatpush2.bf16.msra.mxu0 0
        %2086 = vmatprep.subr.bf16.mxu0 0
        %2087 = vmatpush2.bf16.msra.mxu0 0
        %2088 = vmatprep.subr.bf16.mxu0 0
        %2089 = vmatpush2.bf16.msra.mxu0 0
        %2090 = vmatprep.mubr.bf16.mxu0 0
        %2091 = vmatmul.mubr.bf16.gmra.mxu0 %v2029
        %v2092 = vpop.f32.mrf.mxu0
        %v2093 = vadd.f32 0.0, %v2092
        %v2094 = vpop.f32.mrf.mxu0
        %v2095 = vadd.f32 0.0, %v2094
        %v2096 = vpop.f32.mrf.mxu0
        %v2097 = vadd.f32 0.0, %v2096
        %v2098 = vpop.f32.mrf.mxu0
        %v2099 = vadd.f32 0.0, %v2098
        %2100 = vmatprep.mubr.bf16.mxu0 0
        %2101 = vmatmul.mubr.bf16.gmra.mxu0 %v2032
        %v2102 = vpop.f32.mrf.mxu0
        %v2103 = vadd.f32 0.0, %v2102
        %v2104 = vpop.f32.mrf.mxu0
        %v2105 = vadd.f32 0.0, %v2104
        %v2106 = vpop.f32.mrf.mxu0
        %v2107 = vadd.f32 0.0, %v2106
        %v2108 = vpop.f32.mrf.mxu0
        %v2109 = vadd.f32 0.0, %v2108
        %2110 = vmatprep.mubr.bf16.mxu0 0
        %2111 = vmatmul.mubr.bf16.gmra.mxu0 %v2035
        %v2112 = vpop.f32.mrf.mxu0
        %v2113 = vadd.f32 0.0, %v2112
        %v2114 = vpop.f32.mrf.mxu0
        %v2115 = vadd.f32 0.0, %v2114
        %v2116 = vpop.f32.mrf.mxu0
        %v2117 = vadd.f32 0.0, %v2116
        %v2118 = vpop.f32.mrf.mxu0
        %v2119 = vadd.f32 0.0, %v2118
        %2120 = vmatprep.mubr.bf16.mxu0 0
        %2121 = vmatmul.mubr.bf16.gmra.mxu0 %v2038
        %v2122 = vpop.f32.mrf.mxu0
        %v2123 = vadd.f32 0.0, %v2122
        %v2124 = vpop.f32.mrf.mxu0
        %v2125 = vadd.f32 0.0, %v2124
        %v2126 = vpop.f32.mrf.mxu0
        %v2127 = vadd.f32 0.0, %v2126
        %v2128 = vpop.f32.mrf.mxu0
        %v2129 = vadd.f32 0.0, %v2128
        %2130 = vmatprep.mubr.bf16.mxu0 0
        %2131 = vmatmul.mubr.bf16.gmra.mxu0 %v2041
        %v2132 = vpop.f32.mrf.mxu0
        %v2133 = vadd.f32 0.0, %v2132
        %v2134 = vpop.f32.mrf.mxu0
        %v2135 = vadd.f32 0.0, %v2134
        %v2136 = vpop.f32.mrf.mxu0
        %v2137 = vadd.f32 0.0, %v2136
        %v2138 = vpop.f32.mrf.mxu0
        %v2139 = vadd.f32 0.0, %v2138
        %2140 = vmatprep.mubr.bf16.mxu0 0
        %2141 = vmatmul.mubr.bf16.gmra.mxu0 %v2044
        %v2142 = vpop.f32.mrf.mxu0
        %v2143 = vadd.f32 0.0, %v2142
        %v2144 = vpop.f32.mrf.mxu0
        %v2145 = vadd.f32 0.0, %v2144
        %v2146 = vpop.f32.mrf.mxu0
        %v2147 = vadd.f32 0.0, %v2146
        %v2148 = vpop.f32.mrf.mxu0
        %v2149 = vadd.f32 0.0, %v2148
        %2150 = vmatprep.mubr.bf16.mxu0 0
        %2151 = vmatmul.mubr.bf16.gmra.mxu0 %v2047
        %v2152 = vpop.f32.mrf.mxu0
        %v2153 = vadd.f32 0.0, %v2152
        %v2154 = vpop.f32.mrf.mxu0
        %v2155 = vadd.f32 0.0, %v2154
        %v2156 = vpop.f32.mrf.mxu0
        %v2157 = vadd.f32 0.0, %v2156
        %v2158 = vpop.f32.mrf.mxu0
        %v2159 = vadd.f32 0.0, %v2158
        %2160 = vmatprep.mubr.bf16.mxu0 0
        %2161 = vmatmul.mubr.bf16.gmra.mxu0 %v2050
        %v2162 = vpop.f32.mrf.mxu0
        %v2163 = vadd.f32 0.0, %v2162
        %v2164 = vpop.f32.mrf.mxu0
        %v2165 = vadd.f32 0.0, %v2164
        %v2166 = vpop.f32.mrf.mxu0
        %v2167 = vadd.f32 0.0, %v2166
        %v2168 = vpop.f32.mrf.mxu0
        %v2169 = vadd.f32 0.0, %v2168
        %2170 = vdwg.mxu0
        %v2171 = vadd.f32 %v1859, %v2093
        %v2172 = vadd.f32 %v1860, %v2095
        %v2173 = vadd.f32 %v1861, %v2097
        %v2174 = vadd.f32 %v1862, %v2099
        %v2175 = vadd.f32 %v1863, %v2103
        %v2176 = vadd.f32 %v1864, %v2105
        %v2177 = vadd.f32 %v1865, %v2107
        %v2178 = vadd.f32 %v1866, %v2109
        %v2179 = vadd.f32 %v1867, %v2113
        %v2180 = vadd.f32 %v1868, %v2115
        %v2181 = vadd.f32 %v1869, %v2117
        %v2182 = vadd.f32 %v1870, %v2119
        %v2183 = vadd.f32 %v1871, %v2123
        %v2184 = vadd.f32 %v1872, %v2125
        %v2185 = vadd.f32 %v1873, %v2127
        %v2186 = vadd.f32 %v1874, %v2129
        %v2187 = vadd.f32 %v1875, %v2133
        %v2188 = vadd.f32 %v1876, %v2135
        %v2189 = vadd.f32 %v1877, %v2137
        %v2190 = vadd.f32 %v1878, %v2139
        %v2191 = vadd.f32 %v1879, %v2143
        %v2192 = vadd.f32 %v1880, %v2145
        %v2193 = vadd.f32 %v1881, %v2147
        %v2194 = vadd.f32 %v1882, %v2149
        %v2195 = vadd.f32 %v1883, %v2153
        %v2196 = vadd.f32 %v1884, %v2155
        %v2197 = vadd.f32 %v1885, %v2157
        %v2198 = vadd.f32 %v1886, %v2159
        %v2199 = vadd.f32 %v1887, %v2163
        %v2200 = vadd.f32 %v1888, %v2165
        %v2201 = vadd.f32 %v1889, %v2167
        %v2202 = vadd.f32 %v1890, %v2169
        %2203 = vrot.lane.b32.xlu0 %v432, 32
        %v2204 = vpop.permute.xlu0 %2203
        %v2205 = vrot.slane %v2204, 4
        %vm2206 = vcmask 261120
        %v2207 = vsel %vm2206, %v2205, %v2204
        %v2210 = vmul.bf16 %v1274, %v2207
        %v2211 = vmul.bf16 %v1275, %v2205
        %v2212 = vmul.bf16 %v1276, %v2207
        %v2213 = vmul.bf16 %v1277, %v2205
        %v2214 = vmul.bf16 %v1278, %v2207
        %v2215 = vmul.bf16 %v1279, %v2205
        %v2216 = vmul.bf16 %v1280, %v2207
        %v2217 = vmul.bf16 %v1281, %v2205
        %v2218 = vmul.bf16 %v1282, %v2207
        %v2219 = vmul.bf16 %v1283, %v2205
        %s2220 = scalar_lea.vmem %s1, 384
        %v2221 = vld [vmem:[%s2220] sm:$0xf]
        %v2222 = vld [vmem:[%s2220 + $0x4] sm:$0xf]
        %v2223 = vld [vmem:[%s2220 + $0x8] sm:$0xf]
        %v2224 = vld [vmem:[%s2220 + $0xc] sm:$0xf]
        %v2225 = vld [vmem:[%s2220 + $0x10] sm:$0xf]
        %v2226 = vld [vmem:[%s2220 + $0x14] sm:$0xf]
        %v2227 = vld [vmem:[%s2220 + $0x18] sm:$0xf]
        %v2228 = vld [vmem:[%s2220 + $0x1c] sm:$0xf]
        %v2229 = vld [vmem:[%s2220 + $0x20] sm:$0xf]
        %v2230 = vld [vmem:[%s2220 + $0x24] sm:$0xf]
        %v2231 = vld [vmem:[%s2220 + $0x28] sm:$0xf]
        %v2232 = vld [vmem:[%s2220 + $0x2c] sm:$0xf]
        %v2233 = vld [vmem:[%s2220 + $0x30] sm:$0xf]
        %v2234 = vld [vmem:[%s2220 + $0x34] sm:$0xf]
        %v2235 = vld [vmem:[%s2220 + $0x38] sm:$0xf]
        %v2236 = vld [vmem:[%s2220 + $0x3c] sm:$0xf]
        %v2253 = vunpack.c.l.b16 %v2221
        %v2254 = vunpack.c.l.b16 %v2222
        %v2255 = vunpack.c.l.b16 %v2223
        %v2256 = vunpack.c.l.b16 %v2224
        %v2257 = vunpack.c.l.b16 %v2225
        %v2258 = vunpack.c.l.b16 %v2226
        %v2259 = vunpack.c.l.b16 %v2227
        %v2260 = vunpack.c.l.b16 %v2228
        %v2261 = vunpack.c.l.b16 %v2229
        %v2262 = vunpack.c.l.b16 %v2230
        %v2263 = vunpack.c.l.b16 %v2231
        %v2264 = vunpack.c.l.b16 %v2232
        %v2265 = vunpack.c.l.b16 %v2233
        %v2266 = vunpack.c.l.b16 %v2234
        %v2267 = vunpack.c.l.b16 %v2235
        %v2268 = vunpack.c.l.b16 %v2236
        %v2269 = vpack.c.b16 %v2254, %v2253
        %v2270 = vpack.c.b16 %v2256, %v2255
        %v2271 = vpack.c.b16 %v2258, %v2257
        %v2272 = vpack.c.b16 %v2260, %v2259
        %v2273 = vpack.c.b16 %v2262, %v2261
        %v2274 = vpack.c.b16 %v2264, %v2263
        %v2275 = vpack.c.b16 %v2266, %v2265
        %v2276 = vpack.c.b16 %v2268, %v2267
        %v2287 = vunpack.c.l.b16 %v2210
        %v2288 = vunpack.c.h.b16 %v2210
        %v2289 = vunpack.c.l.b16 %v2211
        %v2290 = vunpack.c.l.b16 %v2212
        %v2291 = vunpack.c.h.b16 %v2212
        %v2292 = vunpack.c.l.b16 %v2213
        %v2293 = vunpack.c.l.b16 %v2214
        %v2294 = vunpack.c.h.b16 %v2214
        %v2295 = vunpack.c.l.b16 %v2215
        %v2296 = vunpack.c.l.b16 %v2216
        %v2297 = vunpack.c.h.b16 %v2216
        %v2298 = vunpack.c.l.b16 %v2217
        %v2299 = vunpack.c.l.b16 %v2218
        %v2300 = vunpack.c.h.b16 %v2218
        %v2301 = vunpack.c.l.b16 %v2219
        %v2302 = vpack.c.b16 %v2290, %v2287
        %v2303 = vpack.c.b16 %v2291, %v2288
        %v2304 = vpack.c.b16 %v2292, %v2289
        %v2305 = vpack.c.b16 %v2296, %v2293
        %v2306 = vpack.c.b16 %v2297, %v2294
        %v2307 = vpack.c.b16 %v2298, %v2295
        %v2308 = vpack.c.b16 %v2299, %v2299
        %v2309 = vpack.c.b16 %v2300, %v2300
        %v2310 = vpack.c.b16 %v2301, %v2301
        %2311 = vrot.lane.b32.xlu0 %v2302, 96
        %v2312 = vpop.permute.xlu0 %2311
        %2313 = vrot.lane.b32.xlu0 %v2303, 96
        %v2314 = vpop.permute.xlu0 %2313
        %2315 = vrot.lane.b32.xlu0 %v2304, 96
        %v2316 = vpop.permute.xlu0 %2315
        %2317 = vrot.lane.b32.xlu0 %v2305, 96
        %v2318 = vpop.permute.xlu0 %2317
        %2319 = vrot.lane.b32.xlu0 %v2306, 96
        %v2320 = vpop.permute.xlu0 %2319
        %2321 = vrot.lane.b32.xlu0 %v2307, 96
        %v2322 = vpop.permute.xlu0 %2321
        %2323 = vrot.lane.b32.xlu0 %v2308, 96
        %v2324 = vpop.permute.xlu0 %2323
        %2325 = vrot.lane.b32.xlu0 %v2309, 96
        %v2326 = vpop.permute.xlu0 %2325
        %2327 = vrot.lane.b32.xlu0 %v2310, 96
        %v2328 = vpop.permute.xlu0 %2327
        %vm2329 = vcmask 785408
        %v2330 = vsel %vm2329, %v2312, %v2314
        %v2331 = vsel %vm2329, %v2314, %v2316
        %v2332 = vsel %vm2329, %v2318, %v2320
        %v2333 = vsel %vm2329, %v2320, %v2322
        %v2334 = vsel %vm2329, %v2324, %v2326
        %v2335 = vsel %vm2329, %v2326, %v2328
        %v2341 = vsel %vm580, %v2269, 0
        %v2344 = vsel %vm580, %v2270, 0
        %v2347 = vsel %vm580, %v2271, 0
        %v2350 = vsel %vm580, %v2272, 0
        %v2353 = vsel %vm580, %v2273, 0
        %v2356 = vsel %vm580, %v2274, 0
        %v2359 = vsel %vm580, %v2275, 0
        %v2362 = vsel %vm580, %v2276, 0
        %v2365 = vsel %vm605, %v2334, 0
        %v2368 = vsel %vm605, %v2335, 0
        %2370 = vmatprep.subr.bf16.mxu0 0
        %2371 = vmatpush1.bf16.msra.mxu0 0
        %2372 = vmatprep.subr.bf16.mxu0 0
        %2373 = vmatpush1.bf16.msra.mxu0 0
        %2374 = vmatprep.subr.bf16.mxu0 0
        %2375 = vmatpush1.bf16.msra.mxu0 0
        %2376 = vmatprep.subr.bf16.mxu0 0
        %2377 = vmatpush1.bf16.msra.mxu0 0
        %2378 = vmatprep.subr.bf16.mxu0 0
        %2379 = vmatpush1.bf16.msra.mxu0 0
        %2380 = vmatprep.subr.bf16.mxu0 %v2368
        %2381 = vmatpush1.bf16.msra.mxu0 %v2365
        %2382 = vmatprep.subr.bf16.mxu0 %v2333
        %2383 = vmatpush1.bf16.msra.mxu0 %v2332
        %2384 = vmatprep.subr.bf16.mxu0 %v2331
        %2385 = vmatpush1.bf16.msra.mxu0 %v2330
        %2386 = vmatprep.subr.bf16.mxu0 0
        %2387 = vmatpush2.bf16.msra.mxu0 0
        %2388 = vmatprep.subr.bf16.mxu0 0
        %2389 = vmatpush2.bf16.msra.mxu0 0
        %2390 = vmatprep.subr.bf16.mxu0 0
        %2391 = vmatpush2.bf16.msra.mxu0 0
        %2392 = vmatprep.subr.bf16.mxu0 0
        %2393 = vmatpush2.bf16.msra.mxu0 0
        %2394 = vmatprep.subr.bf16.mxu0 0
        %2395 = vmatpush2.bf16.msra.mxu0 0
        %2396 = vmatprep.subr.bf16.mxu0 0
        %2397 = vmatpush2.bf16.msra.mxu0 0
        %2398 = vmatprep.subr.bf16.mxu0 0
        %2399 = vmatpush2.bf16.msra.mxu0 0
        %2400 = vmatprep.subr.bf16.mxu0 0
        %2401 = vmatpush2.bf16.msra.mxu0 0
        %2402 = vmatprep.mubr.bf16.mxu0 0
        %2403 = vmatmul.mubr.bf16.gmra.mxu0 %v2341
        %v2404 = vpop.f32.mrf.mxu0
        %v2405 = vadd.f32 0.0, %v2404
        %v2406 = vpop.f32.mrf.mxu0
        %v2407 = vadd.f32 0.0, %v2406
        %v2408 = vpop.f32.mrf.mxu0
        %v2409 = vadd.f32 0.0, %v2408
        %v2410 = vpop.f32.mrf.mxu0
        %v2411 = vadd.f32 0.0, %v2410
        %2412 = vmatprep.mubr.bf16.mxu0 0
        %2413 = vmatmul.mubr.bf16.gmra.mxu0 %v2344
        %v2414 = vpop.f32.mrf.mxu0
        %v2415 = vadd.f32 0.0, %v2414
        %v2416 = vpop.f32.mrf.mxu0
        %v2417 = vadd.f32 0.0, %v2416
        %v2418 = vpop.f32.mrf.mxu0
        %v2419 = vadd.f32 0.0, %v2418
        %v2420 = vpop.f32.mrf.mxu0
        %v2421 = vadd.f32 0.0, %v2420
        %2422 = vmatprep.mubr.bf16.mxu0 0
        %2423 = vmatmul.mubr.bf16.gmra.mxu0 %v2347
        %v2424 = vpop.f32.mrf.mxu0
        %v2425 = vadd.f32 0.0, %v2424
        %v2426 = vpop.f32.mrf.mxu0
        %v2427 = vadd.f32 0.0, %v2426
        %v2428 = vpop.f32.mrf.mxu0
        %v2429 = vadd.f32 0.0, %v2428
        %v2430 = vpop.f32.mrf.mxu0
        %v2431 = vadd.f32 0.0, %v2430
        %2432 = vmatprep.mubr.bf16.mxu0 0
        %2433 = vmatmul.mubr.bf16.gmra.mxu0 %v2350
        %v2434 = vpop.f32.mrf.mxu0
        %v2435 = vadd.f32 0.0, %v2434
        %v2436 = vpop.f32.mrf.mxu0
        %v2437 = vadd.f32 0.0, %v2436
        %v2438 = vpop.f32.mrf.mxu0
        %v2439 = vadd.f32 0.0, %v2438
        %v2440 = vpop.f32.mrf.mxu0
        %v2441 = vadd.f32 0.0, %v2440
        %2442 = vmatprep.mubr.bf16.mxu0 0
        %2443 = vmatmul.mubr.bf16.gmra.mxu0 %v2353
        %v2444 = vpop.f32.mrf.mxu0
        %v2445 = vadd.f32 0.0, %v2444
        %v2446 = vpop.f32.mrf.mxu0
        %v2447 = vadd.f32 0.0, %v2446
        %v2448 = vpop.f32.mrf.mxu0
        %v2449 = vadd.f32 0.0, %v2448
        %v2450 = vpop.f32.mrf.mxu0
        %v2451 = vadd.f32 0.0, %v2450
        %2452 = vmatprep.mubr.bf16.mxu0 0
        %2453 = vmatmul.mubr.bf16.gmra.mxu0 %v2356
        %v2454 = vpop.f32.mrf.mxu0
        %v2455 = vadd.f32 0.0, %v2454
        %v2456 = vpop.f32.mrf.mxu0
        %v2457 = vadd.f32 0.0, %v2456
        %v2458 = vpop.f32.mrf.mxu0
        %v2459 = vadd.f32 0.0, %v2458
        %v2460 = vpop.f32.mrf.mxu0
        %v2461 = vadd.f32 0.0, %v2460
        %2462 = vmatprep.mubr.bf16.mxu0 0
        %2463 = vmatmul.mubr.bf16.gmra.mxu0 %v2359
        %v2464 = vpop.f32.mrf.mxu0
        %v2465 = vadd.f32 0.0, %v2464
        %v2466 = vpop.f32.mrf.mxu0
        %v2467 = vadd.f32 0.0, %v2466
        %v2468 = vpop.f32.mrf.mxu0
        %v2469 = vadd.f32 0.0, %v2468
        %v2470 = vpop.f32.mrf.mxu0
        %v2471 = vadd.f32 0.0, %v2470
        %2472 = vmatprep.mubr.bf16.mxu0 0
        %2473 = vmatmul.mubr.bf16.gmra.mxu0 %v2362
        %v2474 = vpop.f32.mrf.mxu0
        %v2475 = vadd.f32 0.0, %v2474
        %v2476 = vpop.f32.mrf.mxu0
        %v2477 = vadd.f32 0.0, %v2476
        %v2478 = vpop.f32.mrf.mxu0
        %v2479 = vadd.f32 0.0, %v2478
        %v2480 = vpop.f32.mrf.mxu0
        %v2481 = vadd.f32 0.0, %v2480
        %2482 = vdwg.mxu0
        %v2483 = vadd.f32 %v2171, %v2405
        %v2484 = vadd.f32 %v2172, %v2407
        %v2485 = vadd.f32 %v2173, %v2409
        %v2486 = vadd.f32 %v2174, %v2411
        %v2487 = vadd.f32 %v2175, %v2415
        %v2488 = vadd.f32 %v2176, %v2417
        %v2489 = vadd.f32 %v2177, %v2419
        %v2490 = vadd.f32 %v2178, %v2421
        %v2491 = vadd.f32 %v2179, %v2425
        %v2492 = vadd.f32 %v2180, %v2427
        %v2493 = vadd.f32 %v2181, %v2429
        %v2494 = vadd.f32 %v2182, %v2431
        %v2495 = vadd.f32 %v2183, %v2435
        %v2496 = vadd.f32 %v2184, %v2437
        %v2497 = vadd.f32 %v2185, %v2439
        %v2498 = vadd.f32 %v2186, %v2441
        %v2499 = vadd.f32 %v2187, %v2445
        %v2500 = vadd.f32 %v2188, %v2447
        %v2501 = vadd.f32 %v2189, %v2449
        %v2502 = vadd.f32 %v2190, %v2451
        %v2503 = vadd.f32 %v2191, %v2455
        %v2504 = vadd.f32 %v2192, %v2457
        %v2505 = vadd.f32 %v2193, %v2459
        %v2506 = vadd.f32 %v2194, %v2461
        %v2507 = vadd.f32 %v2195, %v2465
        %v2508 = vadd.f32 %v2196, %v2467
        %v2509 = vadd.f32 %v2197, %v2469
        %v2510 = vadd.f32 %v2198, %v2471
        %v2511 = vadd.f32 %v2199, %v2475
        %v2512 = vadd.f32 %v2200, %v2477
        %v2513 = vadd.f32 %v2201, %v2479
        %v2514 = vadd.f32 %v2202, %v2481
        %s2515 = scalar_lea.vmem %s1, 448
        %v2516 = vld [vmem:[%s2515] sm:$0xf]
        %v2517 = vld [vmem:[%s2515 + $0x4] sm:$0xf]
        %v2518 = vld [vmem:[%s2515 + $0x8] sm:$0xf]
        %v2519 = vld [vmem:[%s2515 + $0xc] sm:$0xf]
        %v2520 = vld [vmem:[%s2515 + $0x10] sm:$0xf]
        %v2521 = vld [vmem:[%s2515 + $0x14] sm:$0xf]
        %v2522 = vld [vmem:[%s2515 + $0x18] sm:$0xf]
        %v2523 = vld [vmem:[%s2515 + $0x1c] sm:$0xf]
        %v2524 = vld [vmem:[%s2515 + $0x20] sm:$0xf]
        %v2525 = vld [vmem:[%s2515 + $0x24] sm:$0xf]
        %v2526 = vld [vmem:[%s2515 + $0x28] sm:$0xf]
        %v2527 = vld [vmem:[%s2515 + $0x2c] sm:$0xf]
        %v2528 = vld [vmem:[%s2515 + $0x30] sm:$0xf]
        %v2529 = vld [vmem:[%s2515 + $0x34] sm:$0xf]
        %v2530 = vld [vmem:[%s2515 + $0x38] sm:$0xf]
        %v2531 = vld [vmem:[%s2515 + $0x3c] sm:$0xf]
        %v2548 = vunpack.c.l.b16 %v2516
        %v2549 = vunpack.c.l.b16 %v2517
        %v2550 = vunpack.c.l.b16 %v2518
        %v2551 = vunpack.c.l.b16 %v2519
        %v2552 = vunpack.c.l.b16 %v2520
        %v2553 = vunpack.c.l.b16 %v2521
        %v2554 = vunpack.c.l.b16 %v2522
        %v2555 = vunpack.c.l.b16 %v2523
        %v2556 = vunpack.c.l.b16 %v2524
        %v2557 = vunpack.c.l.b16 %v2525
        %v2558 = vunpack.c.l.b16 %v2526
        %v2559 = vunpack.c.l.b16 %v2527
        %v2560 = vunpack.c.l.b16 %v2528
        %v2561 = vunpack.c.l.b16 %v2529
        %v2562 = vunpack.c.l.b16 %v2530
        %v2563 = vunpack.c.l.b16 %v2531
        %v2564 = vpack.c.b16 %v2549, %v2548
        %v2565 = vpack.c.b16 %v2551, %v2550
        %v2566 = vpack.c.b16 %v2553, %v2552
        %v2567 = vpack.c.b16 %v2555, %v2554
        %v2568 = vpack.c.b16 %v2557, %v2556
        %v2569 = vpack.c.b16 %v2559, %v2558
        %v2570 = vpack.c.b16 %v2561, %v2560
        %v2571 = vpack.c.b16 %v2563, %v2562
        %2572 = vrot.lane.b32.xlu0 %v1678, 95
        %v2573 = vpop.permute.xlu0 %2572
        %2574 = vrot.lane.b32.xlu0 %v1679, 95
        %v2575 = vpop.permute.xlu0 %2574
        %2576 = vrot.lane.b32.xlu0 %v1680, 95
        %v2577 = vpop.permute.xlu0 %2576
        %2578 = vrot.lane.b32.xlu0 %v1681, 95
        %v2579 = vpop.permute.xlu0 %2578
        %2580 = vrot.lane.b32.xlu0 %v1682, 95
        %v2581 = vpop.permute.xlu0 %2580
        %2582 = vrot.lane.b32.xlu0 %v1683, 95
        %v2583 = vpop.permute.xlu0 %2582
        %2584 = vrot.lane.b32.xlu0 %v1684, 95
        %v2585 = vpop.permute.xlu0 %2584
        %2586 = vrot.lane.b32.xlu0 %v1685, 95
        %v2587 = vpop.permute.xlu0 %2586
        %2588 = vrot.lane.b32.xlu0 %v1686, 95
        %v2589 = vpop.permute.xlu0 %2588
        %vm2590 = vcmask 777216
        %v2591 = vsel %vm2590, %v2573, %v2575
        %v2592 = vsel %vm2590, %v2575, %v2577
        %v2593 = vsel %vm2590, %v2579, %v2581
        %v2594 = vsel %vm2590, %v2581, %v2583
        %v2595 = vsel %vm2590, %v2585, %v2587
        %v2596 = vsel %vm2590, %v2587, %v2589
        %v2602 = vsel %vm580, %v2564, 0
        %v2605 = vsel %vm580, %v2565, 0
        %v2608 = vsel %vm580, %v2566, 0
        %v2611 = vsel %vm580, %v2567, 0
        %v2614 = vsel %vm580, %v2568, 0
        %v2617 = vsel %vm580, %v2569, 0
        %v2620 = vsel %vm580, %v2570, 0
        %v2623 = vsel %vm580, %v2571, 0
        %v2626 = vsel %vm605, %v2595, 0
        %v2629 = vsel %vm605, %v2596, 0
        %2631 = vmatprep.subr.bf16.mxu0 0
        %2632 = vmatpush1.bf16.msra.mxu0 0
        %2633 = vmatprep.subr.bf16.mxu0 0
        %2634 = vmatpush1.bf16.msra.mxu0 0
        %2635 = vmatprep.subr.bf16.mxu0 0
        %2636 = vmatpush1.bf16.msra.mxu0 0
        %2637 = vmatprep.subr.bf16.mxu0 0
        %2638 = vmatpush1.bf16.msra.mxu0 0
        %2639 = vmatprep.subr.bf16.mxu0 0
        %2640 = vmatpush1.bf16.msra.mxu0 0
        %2641 = vmatprep.subr.bf16.mxu0 %v2629
        %2642 = vmatpush1.bf16.msra.mxu0 %v2626
        %2643 = vmatprep.subr.bf16.mxu0 %v2594
        %2644 = vmatpush1.bf16.msra.mxu0 %v2593
        %2645 = vmatprep.subr.bf16.mxu0 %v2592
        %2646 = vmatpush1.bf16.msra.mxu0 %v2591
        %2647 = vmatprep.subr.bf16.mxu0 0
        %2648 = vmatpush2.bf16.msra.mxu0 0
        %2649 = vmatprep.subr.bf16.mxu0 0
        %2650 = vmatpush2.bf16.msra.mxu0 0
        %2651 = vmatprep.subr.bf16.mxu0 0
        %2652 = vmatpush2.bf16.msra.mxu0 0
        %2653 = vmatprep.subr.bf16.mxu0 0
        %2654 = vmatpush2.bf16.msra.mxu0 0
        %2655 = vmatprep.subr.bf16.mxu0 0
        %2656 = vmatpush2.bf16.msra.mxu0 0
        %2657 = vmatprep.subr.bf16.mxu0 0
        %2658 = vmatpush2.bf16.msra.mxu0 0
        %2659 = vmatprep.subr.bf16.mxu0 0
        %2660 = vmatpush2.bf16.msra.mxu0 0
        %2661 = vmatprep.subr.bf16.mxu0 0
        %2662 = vmatpush2.bf16.msra.mxu0 0
        %2663 = vmatprep.mubr.bf16.mxu0 0
        %2664 = vmatmul.mubr.bf16.gmra.mxu0 %v2602
        %v2665 = vpop.f32.mrf.mxu0
        %v2666 = vadd.f32 0.0, %v2665
        %v2667 = vpop.f32.mrf.mxu0
        %v2668 = vadd.f32 0.0, %v2667
        %v2669 = vpop.f32.mrf.mxu0
        %v2670 = vadd.f32 0.0, %v2669
        %v2671 = vpop.f32.mrf.mxu0
        %v2672 = vadd.f32 0.0, %v2671
        %2673 = vmatprep.mubr.bf16.mxu0 0
        %2674 = vmatmul.mubr.bf16.gmra.mxu0 %v2605
        %v2675 = vpop.f32.mrf.mxu0
        %v2676 = vadd.f32 0.0, %v2675
        %v2677 = vpop.f32.mrf.mxu0
        %v2678 = vadd.f32 0.0, %v2677
        %v2679 = vpop.f32.mrf.mxu0
        %v2680 = vadd.f32 0.0, %v2679
        %v2681 = vpop.f32.mrf.mxu0
        %v2682 = vadd.f32 0.0, %v2681
        %2683 = vmatprep.mubr.bf16.mxu0 0
        %2684 = vmatmul.mubr.bf16.gmra.mxu0 %v2608
        %v2685 = vpop.f32.mrf.mxu0
        %v2686 = vadd.f32 0.0, %v2685
        %v2687 = vpop.f32.mrf.mxu0
        %v2688 = vadd.f32 0.0, %v2687
        %v2689 = vpop.f32.mrf.mxu0
        %v2690 = vadd.f32 0.0, %v2689
        %v2691 = vpop.f32.mrf.mxu0
        %v2692 = vadd.f32 0.0, %v2691
        %2693 = vmatprep.mubr.bf16.mxu0 0
        %2694 = vmatmul.mubr.bf16.gmra.mxu0 %v2611
        %v2695 = vpop.f32.mrf.mxu0
        %v2696 = vadd.f32 0.0, %v2695
        %v2697 = vpop.f32.mrf.mxu0
        %v2698 = vadd.f32 0.0, %v2697
        %v2699 = vpop.f32.mrf.mxu0
        %v2700 = vadd.f32 0.0, %v2699
        %v2701 = vpop.f32.mrf.mxu0
        %v2702 = vadd.f32 0.0, %v2701
        %2703 = vmatprep.mubr.bf16.mxu0 0
        %2704 = vmatmul.mubr.bf16.gmra.mxu0 %v2614
        %v2705 = vpop.f32.mrf.mxu0
        %v2706 = vadd.f32 0.0, %v2705
        %v2707 = vpop.f32.mrf.mxu0
        %v2708 = vadd.f32 0.0, %v2707
        %v2709 = vpop.f32.mrf.mxu0
        %v2710 = vadd.f32 0.0, %v2709
        %v2711 = vpop.f32.mrf.mxu0
        %v2712 = vadd.f32 0.0, %v2711
        %2713 = vmatprep.mubr.bf16.mxu0 0
        %2714 = vmatmul.mubr.bf16.gmra.mxu0 %v2617
        %v2715 = vpop.f32.mrf.mxu0
        %v2716 = vadd.f32 0.0, %v2715
        %v2717 = vpop.f32.mrf.mxu0
        %v2718 = vadd.f32 0.0, %v2717
        %v2719 = vpop.f32.mrf.mxu0
        %v2720 = vadd.f32 0.0, %v2719
        %v2721 = vpop.f32.mrf.mxu0
        %v2722 = vadd.f32 0.0, %v2721
        %2723 = vmatprep.mubr.bf16.mxu0 0
        %2724 = vmatmul.mubr.bf16.gmra.mxu0 %v2620
        %v2725 = vpop.f32.mrf.mxu0
        %v2726 = vadd.f32 0.0, %v2725
        %v2727 = vpop.f32.mrf.mxu0
        %v2728 = vadd.f32 0.0, %v2727
        %v2729 = vpop.f32.mrf.mxu0
        %v2730 = vadd.f32 0.0, %v2729
        %v2731 = vpop.f32.mrf.mxu0
        %v2732 = vadd.f32 0.0, %v2731
        %2733 = vmatprep.mubr.bf16.mxu0 0
        %2734 = vmatmul.mubr.bf16.gmra.mxu0 %v2623
        %v2735 = vpop.f32.mrf.mxu0
        %v2736 = vadd.f32 0.0, %v2735
        %v2737 = vpop.f32.mrf.mxu0
        %v2738 = vadd.f32 0.0, %v2737
        %v2739 = vpop.f32.mrf.mxu0
        %v2740 = vadd.f32 0.0, %v2739
        %v2741 = vpop.f32.mrf.mxu0
        %v2742 = vadd.f32 0.0, %v2741
        %2743 = vdwg.mxu0
        %v2744 = vadd.f32 %v2483, %v2666
        %v2745 = vadd.f32 %v2484, %v2668
        %v2746 = vadd.f32 %v2485, %v2670
        %v2747 = vadd.f32 %v2486, %v2672
        %v2748 = vadd.f32 %v2487, %v2676
        %v2749 = vadd.f32 %v2488, %v2678
        %v2750 = vadd.f32 %v2489, %v2680
        %v2751 = vadd.f32 %v2490, %v2682
        %v2752 = vadd.f32 %v2491, %v2686
        %v2753 = vadd.f32 %v2492, %v2688
        %v2754 = vadd.f32 %v2493, %v2690
        %v2755 = vadd.f32 %v2494, %v2692
        %v2756 = vadd.f32 %v2495, %v2696
        %v2757 = vadd.f32 %v2496, %v2698
        %v2758 = vadd.f32 %v2497, %v2700
        %v2759 = vadd.f32 %v2498, %v2702
        %v2760 = vadd.f32 %v2499, %v2706
        %v2761 = vadd.f32 %v2500, %v2708
        %v2762 = vadd.f32 %v2501, %v2710
        %v2763 = vadd.f32 %v2502, %v2712
        %v2764 = vadd.f32 %v2503, %v2716
        %v2765 = vadd.f32 %v2504, %v2718
        %v2766 = vadd.f32 %v2505, %v2720
        %v2767 = vadd.f32 %v2506, %v2722
        %v2768 = vadd.f32 %v2507, %v2726
        %v2769 = vadd.f32 %v2508, %v2728
        %v2770 = vadd.f32 %v2509, %v2730
        %v2771 = vadd.f32 %v2510, %v2732
        %v2772 = vadd.f32 %v2511, %v2736
        %v2773 = vadd.f32 %v2512, %v2738
        %v2774 = vadd.f32 %v2513, %v2740
        %v2775 = vadd.f32 %v2514, %v2742
        %2776 = vrot.lane.b32.xlu0 %v961, 34
        %v2777 = vpop.permute.xlu0 %2776
        %v2778 = vrot.slane %v2777, 4
        %vm2779 = vcmask 277504
        %v2780 = vsel %vm2779, %v2778, %v2777
        %v2783 = vmul.bf16 %v1274, %v2780
        %v2784 = vmul.bf16 %v1275, %v2778
        %v2785 = vmul.bf16 %v1276, %v2780
        %v2786 = vmul.bf16 %v1277, %v2778
        %v2787 = vmul.bf16 %v1278, %v2780
        %v2788 = vmul.bf16 %v1279, %v2778
        %v2789 = vmul.bf16 %v1280, %v2780
        %v2790 = vmul.bf16 %v1281, %v2778
        %v2791 = vmul.bf16 %v1282, %v2780
        %v2792 = vmul.bf16 %v1283, %v2778
        %s2793 = scalar_lea.vmem %s1, 512
        %v2794 = vld [vmem:[%s2793] sm:$0xf]
        %v2795 = vld [vmem:[%s2793 + $0x4] sm:$0xf]
        %v2796 = vld [vmem:[%s2793 + $0x8] sm:$0xf]
        %v2797 = vld [vmem:[%s2793 + $0xc] sm:$0xf]
        %v2798 = vld [vmem:[%s2793 + $0x10] sm:$0xf]
        %v2799 = vld [vmem:[%s2793 + $0x14] sm:$0xf]
        %v2800 = vld [vmem:[%s2793 + $0x18] sm:$0xf]
        %v2801 = vld [vmem:[%s2793 + $0x1c] sm:$0xf]
        %v2802 = vld [vmem:[%s2793 + $0x20] sm:$0xf]
        %v2803 = vld [vmem:[%s2793 + $0x24] sm:$0xf]
        %v2804 = vld [vmem:[%s2793 + $0x28] sm:$0xf]
        %v2805 = vld [vmem:[%s2793 + $0x2c] sm:$0xf]
        %v2806 = vld [vmem:[%s2793 + $0x30] sm:$0xf]
        %v2807 = vld [vmem:[%s2793 + $0x34] sm:$0xf]
        %v2808 = vld [vmem:[%s2793 + $0x38] sm:$0xf]
        %v2809 = vld [vmem:[%s2793 + $0x3c] sm:$0xf]
        %v2826 = vunpack.c.l.b16 %v2794
        %v2827 = vunpack.c.l.b16 %v2795
        %v2828 = vunpack.c.l.b16 %v2796
        %v2829 = vunpack.c.l.b16 %v2797
        %v2830 = vunpack.c.l.b16 %v2798
        %v2831 = vunpack.c.l.b16 %v2799
        %v2832 = vunpack.c.l.b16 %v2800
        %v2833 = vunpack.c.l.b16 %v2801
        %v2834 = vunpack.c.l.b16 %v2802
        %v2835 = vunpack.c.l.b16 %v2803
        %v2836 = vunpack.c.l.b16 %v2804
        %v2837 = vunpack.c.l.b16 %v2805
        %v2838 = vunpack.c.l.b16 %v2806
        %v2839 = vunpack.c.l.b16 %v2807
        %v2840 = vunpack.c.l.b16 %v2808
        %v2841 = vunpack.c.l.b16 %v2809
        %v2842 = vpack.c.b16 %v2827, %v2826
        %v2843 = vpack.c.b16 %v2829, %v2828
        %v2844 = vpack.c.b16 %v2831, %v2830
        %v2845 = vpack.c.b16 %v2833, %v2832
        %v2846 = vpack.c.b16 %v2835, %v2834
        %v2847 = vpack.c.b16 %v2837, %v2836
        %v2848 = vpack.c.b16 %v2839, %v2838
        %v2849 = vpack.c.b16 %v2841, %v2840
        %v2860 = vunpack.c.l.b16 %v2783
        %v2861 = vunpack.c.h.b16 %v2783
        %v2862 = vunpack.c.l.b16 %v2784
        %v2863 = vunpack.c.l.b16 %v2785
        %v2864 = vunpack.c.h.b16 %v2785
        %v2865 = vunpack.c.l.b16 %v2786
        %v2866 = vunpack.c.l.b16 %v2787
        %v2867 = vunpack.c.h.b16 %v2787
        %v2868 = vunpack.c.l.b16 %v2788
        %v2869 = vunpack.c.l.b16 %v2789
        %v2870 = vunpack.c.h.b16 %v2789
        %v2871 = vunpack.c.l.b16 %v2790
        %v2872 = vunpack.c.l.b16 %v2791
        %v2873 = vunpack.c.h.b16 %v2791
        %v2874 = vunpack.c.l.b16 %v2792
        %v2875 = vpack.c.b16 %v2863, %v2860
        %v2876 = vpack.c.b16 %v2864, %v2861
        %v2877 = vpack.c.b16 %v2865, %v2862
        %v2878 = vpack.c.b16 %v2869, %v2866
        %v2879 = vpack.c.b16 %v2870, %v2867
        %v2880 = vpack.c.b16 %v2871, %v2868
        %v2881 = vpack.c.b16 %v2872, %v2872
        %v2882 = vpack.c.b16 %v2873, %v2873
        %v2883 = vpack.c.b16 %v2874, %v2874
        %2884 = vrot.lane.b32.xlu0 %v2875, 94
        %v2885 = vpop.permute.xlu0 %2884
        %2886 = vrot.lane.b32.xlu0 %v2876, 94
        %v2887 = vpop.permute.xlu0 %2886
        %2888 = vrot.lane.b32.xlu0 %v2877, 94
        %v2889 = vpop.permute.xlu0 %2888
        %2890 = vrot.lane.b32.xlu0 %v2878, 94
        %v2891 = vpop.permute.xlu0 %2890
        %2892 = vrot.lane.b32.xlu0 %v2879, 94
        %v2893 = vpop.permute.xlu0 %2892
        %2894 = vrot.lane.b32.xlu0 %v2880, 94
        %v2895 = vpop.permute.xlu0 %2894
        %2896 = vrot.lane.b32.xlu0 %v2881, 94
        %v2897 = vpop.permute.xlu0 %2896
        %2898 = vrot.lane.b32.xlu0 %v2882, 94
        %v2899 = vpop.permute.xlu0 %2898
        %2900 = vrot.lane.b32.xlu0 %v2883, 94
        %v2901 = vpop.permute.xlu0 %2900
        %vm2902 = vcmask 769024
        %v2903 = vsel %vm2902, %v2885, %v2887
        %v2904 = vsel %vm2902, %v2887, %v2889
        %v2905 = vsel %vm2902, %v2891, %v2893
        %v2906 = vsel %vm2902, %v2893, %v2895
        %v2907 = vsel %vm2902, %v2897, %v2899
        %v2908 = vsel %vm2902, %v2899, %v2901
        %v2914 = vsel %vm580, %v2842, 0
        %v2917 = vsel %vm580, %v2843, 0
        %v2920 = vsel %vm580, %v2844, 0
        %v2923 = vsel %vm580, %v2845, 0
        %v2926 = vsel %vm580, %v2846, 0
        %v2929 = vsel %vm580, %v2847, 0
        %v2932 = vsel %vm580, %v2848, 0
        %v2935 = vsel %vm580, %v2849, 0
        %v2938 = vsel %vm605, %v2907, 0
        %v2941 = vsel %vm605, %v2908, 0
        %2943 = vmatprep.subr.bf16.mxu0 0
        %2944 = vmatpush1.bf16.msra.mxu0 0
        %2945 = vmatprep.subr.bf16.mxu0 0
        %2946 = vmatpush1.bf16.msra.mxu0 0
        %2947 = vmatprep.subr.bf16.mxu0 0
        %2948 = vmatpush1.bf16.msra.mxu0 0
        %2949 = vmatprep.subr.bf16.mxu0 0
        %2950 = vmatpush1.bf16.msra.mxu0 0
        %2951 = vmatprep.subr.bf16.mxu0 0
        %2952 = vmatpush1.bf16.msra.mxu0 0
        %2953 = vmatprep.subr.bf16.mxu0 %v2941
        %2954 = vmatpush1.bf16.msra.mxu0 %v2938
        %2955 = vmatprep.subr.bf16.mxu0 %v2906
        %2956 = vmatpush1.bf16.msra.mxu0 %v2905
        %2957 = vmatprep.subr.bf16.mxu0 %v2904
        %2958 = vmatpush1.bf16.msra.mxu0 %v2903
        %2959 = vmatprep.subr.bf16.mxu0 0
        %2960 = vmatpush2.bf16.msra.mxu0 0
        %2961 = vmatprep.subr.bf16.mxu0 0
        %2962 = vmatpush2.bf16.msra.mxu0 0
        %2963 = vmatprep.subr.bf16.mxu0 0
        %2964 = vmatpush2.bf16.msra.mxu0 0
        %2965 = vmatprep.subr.bf16.mxu0 0
        %2966 = vmatpush2.bf16.msra.mxu0 0
        %2967 = vmatprep.subr.bf16.mxu0 0
        %2968 = vmatpush2.bf16.msra.mxu0 0
        %2969 = vmatprep.subr.bf16.mxu0 0
        %2970 = vmatpush2.bf16.msra.mxu0 0
        %2971 = vmatprep.subr.bf16.mxu0 0
        %2972 = vmatpush2.bf16.msra.mxu0 0
        %2973 = vmatprep.subr.bf16.mxu0 0
        %2974 = vmatpush2.bf16.msra.mxu0 0
        %2975 = vmatprep.mubr.bf16.mxu0 0
        %2976 = vmatmul.mubr.bf16.gmra.mxu0 %v2914
        %v2977 = vpop.f32.mrf.mxu0
        %v2978 = vadd.f32 0.0, %v2977
        %v2979 = vpop.f32.mrf.mxu0
        %v2980 = vadd.f32 0.0, %v2979
        %v2981 = vpop.f32.mrf.mxu0
        %v2982 = vadd.f32 0.0, %v2981
        %v2983 = vpop.f32.mrf.mxu0
        %v2984 = vadd.f32 0.0, %v2983
        %2985 = vmatprep.mubr.bf16.mxu0 0
        %2986 = vmatmul.mubr.bf16.gmra.mxu0 %v2917
        %v2987 = vpop.f32.mrf.mxu0
        %v2988 = vadd.f32 0.0, %v2987
        %v2989 = vpop.f32.mrf.mxu0
        %v2990 = vadd.f32 0.0, %v2989
        %v2991 = vpop.f32.mrf.mxu0
        %v2992 = vadd.f32 0.0, %v2991
        %v2993 = vpop.f32.mrf.mxu0
        %v2994 = vadd.f32 0.0, %v2993
        %2995 = vmatprep.mubr.bf16.mxu0 0
        %2996 = vmatmul.mubr.bf16.gmra.mxu0 %v2920
        %v2997 = vpop.f32.mrf.mxu0
        %v2998 = vadd.f32 0.0, %v2997
        %v2999 = vpop.f32.mrf.mxu0
        %v3000 = vadd.f32 0.0, %v2999
        %v3001 = vpop.f32.mrf.mxu0
        %v3002 = vadd.f32 0.0, %v3001
        %v3003 = vpop.f32.mrf.mxu0
        %v3004 = vadd.f32 0.0, %v3003
        %3005 = vmatprep.mubr.bf16.mxu0 0
        %3006 = vmatmul.mubr.bf16.gmra.mxu0 %v2923
        %v3007 = vpop.f32.mrf.mxu0
        %v3008 = vadd.f32 0.0, %v3007
        %v3009 = vpop.f32.mrf.mxu0
        %v3010 = vadd.f32 0.0, %v3009
        %v3011 = vpop.f32.mrf.mxu0
        %v3012 = vadd.f32 0.0, %v3011
        %v3013 = vpop.f32.mrf.mxu0
        %v3014 = vadd.f32 0.0, %v3013
        %3015 = vmatprep.mubr.bf16.mxu0 0
        %3016 = vmatmul.mubr.bf16.gmra.mxu0 %v2926
        %v3017 = vpop.f32.mrf.mxu0
        %v3018 = vadd.f32 0.0, %v3017
        %v3019 = vpop.f32.mrf.mxu0
        %v3020 = vadd.f32 0.0, %v3019
        %v3021 = vpop.f32.mrf.mxu0
        %v3022 = vadd.f32 0.0, %v3021
        %v3023 = vpop.f32.mrf.mxu0
        %v3024 = vadd.f32 0.0, %v3023
        %3025 = vmatprep.mubr.bf16.mxu0 0
        %3026 = vmatmul.mubr.bf16.gmra.mxu0 %v2929
        %v3027 = vpop.f32.mrf.mxu0
        %v3028 = vadd.f32 0.0, %v3027
        %v3029 = vpop.f32.mrf.mxu0
        %v3030 = vadd.f32 0.0, %v3029
        %v3031 = vpop.f32.mrf.mxu0
        %v3032 = vadd.f32 0.0, %v3031
        %v3033 = vpop.f32.mrf.mxu0
        %v3034 = vadd.f32 0.0, %v3033
        %3035 = vmatprep.mubr.bf16.mxu0 0
        %3036 = vmatmul.mubr.bf16.gmra.mxu0 %v2932
        %v3037 = vpop.f32.mrf.mxu0
        %v3038 = vadd.f32 0.0, %v3037
        %v3039 = vpop.f32.mrf.mxu0
        %v3040 = vadd.f32 0.0, %v3039
        %v3041 = vpop.f32.mrf.mxu0
        %v3042 = vadd.f32 0.0, %v3041
        %v3043 = vpop.f32.mrf.mxu0
        %v3044 = vadd.f32 0.0, %v3043
        %3045 = vmatprep.mubr.bf16.mxu0 0
        %3046 = vmatmul.mubr.bf16.gmra.mxu0 %v2935
        %v3047 = vpop.f32.mrf.mxu0
        %v3048 = vadd.f32 0.0, %v3047
        %v3049 = vpop.f32.mrf.mxu0
        %v3050 = vadd.f32 0.0, %v3049
        %v3051 = vpop.f32.mrf.mxu0
        %v3052 = vadd.f32 0.0, %v3051
        %v3053 = vpop.f32.mrf.mxu0
        %v3054 = vadd.f32 0.0, %v3053
        %3055 = vdwg.mxu0
        %v3056 = vadd.f32 %v2744, %v2978
        %v3057 = vadd.f32 %v2745, %v2980
        %v3058 = vadd.f32 %v2746, %v2982
        %v3059 = vadd.f32 %v2747, %v2984
        %v3060 = vadd.f32 %v2748, %v2988
        %v3061 = vadd.f32 %v2749, %v2990
        %v3062 = vadd.f32 %v2750, %v2992
        %v3063 = vadd.f32 %v2751, %v2994
        %v3064 = vadd.f32 %v2752, %v2998
        %v3065 = vadd.f32 %v2753, %v3000
        %v3066 = vadd.f32 %v2754, %v3002
        %v3067 = vadd.f32 %v2755, %v3004
        %v3068 = vadd.f32 %v2756, %v3008
        %v3069 = vadd.f32 %v2757, %v3010
        %v3070 = vadd.f32 %v2758, %v3012
        %v3071 = vadd.f32 %v2759, %v3014
        %v3072 = vadd.f32 %v2760, %v3018
        %v3073 = vadd.f32 %v2761, %v3020
        %v3074 = vadd.f32 %v2762, %v3022
        %v3075 = vadd.f32 %v2763, %v3024
        %v3076 = vadd.f32 %v2764, %v3028
        %v3077 = vadd.f32 %v2765, %v3030
        %v3078 = vadd.f32 %v2766, %v3032
        %v3079 = vadd.f32 %v2767, %v3034
        %v3080 = vadd.f32 %v2768, %v3038
        %v3081 = vadd.f32 %v2769, %v3040
        %v3082 = vadd.f32 %v2770, %v3042
        %v3083 = vadd.f32 %v2771, %v3044
        %v3084 = vadd.f32 %v2772, %v3048
        %v3085 = vadd.f32 %v2773, %v3050
        %v3086 = vadd.f32 %v2774, %v3052
        %v3087 = vadd.f32 %v2775, %v3054
        %v3088 = vld [vmem:[%s2] sm:$0xff]
        %v3089 = vld [vmem:[%s2 + $0x8] sm:$0xff]
        %v3090 = vld [vmem:[%s2 + $0x10] sm:$0xff]
        %v3091 = vld [vmem:[%s2 + $0x18] sm:$0xff]
        %v3092 = vld [vmem:[%s2 + $0x20] sm:$0xff]
        %v3093 = vld [vmem:[%s2 + $0x28] sm:$0xff]
        %v3094 = vld [vmem:[%s2 + $0x30] sm:$0xff]
        %v3095 = vld [vmem:[%s2 + $0x38] sm:$0xff]
        %v3096 = vld [vmem:[%s2 + $0x40] sm:$0xff]
        %v3097 = vld [vmem:[%s2 + $0x48] sm:$0xff]
        %v3098 = vld [vmem:[%s2 + $0x50] sm:$0xff]
        %v3099 = vld [vmem:[%s2 + $0x58] sm:$0xff]
        %v3100 = vld [vmem:[%s2 + $0x60] sm:$0xff]
        %v3101 = vld [vmem:[%s2 + $0x68] sm:$0xff]
        %v3102 = vld [vmem:[%s2 + $0x70] sm:$0xff]
        %v3103 = vld [vmem:[%s2 + $0x78] sm:$0xff]
        %3105 = vset.pattern.permute.xlu0 0
        %3106 = vperm.xlu0 %3105, %v3088
        %v3107 = vpop.permute.xlu0 %3106
        %3110 = vset.pattern.permute.xlu0 0
        %3111 = vperm.xlu0 %3110, %v3089
        %v3112 = vpop.permute.xlu0 %3111
        %3115 = vset.pattern.permute.xlu0 0
        %3116 = vperm.xlu0 %3115, %v3090
        %v3117 = vpop.permute.xlu0 %3116
        %3120 = vset.pattern.permute.xlu0 0
        %3121 = vperm.xlu0 %3120, %v3091
        %v3122 = vpop.permute.xlu0 %3121
        %3125 = vset.pattern.permute.xlu0 0
        %3126 = vperm.xlu0 %3125, %v3092
        %v3127 = vpop.permute.xlu0 %3126
        %3130 = vset.pattern.permute.xlu0 0
        %3131 = vperm.xlu0 %3130, %v3093
        %v3132 = vpop.permute.xlu0 %3131
        %3135 = vset.pattern.permute.xlu0 0
        %3136 = vperm.xlu0 %3135, %v3094
        %v3137 = vpop.permute.xlu0 %3136
        %3140 = vset.pattern.permute.xlu0 0
        %3141 = vperm.xlu0 %3140, %v3095
        %v3142 = vpop.permute.xlu0 %3141
        %3145 = vset.pattern.permute.xlu0 0
        %3146 = vperm.xlu0 %3145, %v3096
        %v3147 = vpop.permute.xlu0 %3146
        %3150 = vset.pattern.permute.xlu0 0
        %3151 = vperm.xlu0 %3150, %v3097
        %v3152 = vpop.permute.xlu0 %3151
        %3155 = vset.pattern.permute.xlu0 0
        %3156 = vperm.xlu0 %3155, %v3098
        %v3157 = vpop.permute.xlu0 %3156
        %3160 = vset.pattern.permute.xlu0 0
        %3161 = vperm.xlu0 %3160, %v3099
        %v3162 = vpop.permute.xlu0 %3161
        %3165 = vset.pattern.permute.xlu0 0
        %3166 = vperm.xlu0 %3165, %v3100
        %v3167 = vpop.permute.xlu0 %3166
        %3170 = vset.pattern.permute.xlu0 0
        %3171 = vperm.xlu0 %3170, %v3101
        %v3172 = vpop.permute.xlu0 %3171
        %3175 = vset.pattern.permute.xlu0 0
        %3176 = vperm.xlu0 %3175, %v3102
        %v3177 = vpop.permute.xlu0 %3176
        %3180 = vset.pattern.permute.xlu0 0
        %3181 = vperm.xlu0 %3180, %v3103
        %v3182 = vpop.permute.xlu0 %3181
        %v3184 = vadd.f32 %v3056, %v3107
        %v3185 = vadd.f32 %v3057, %v3107
        %v3186 = vadd.f32 %v3058, %v3112
        %v3187 = vadd.f32 %v3059, %v3112
        %v3188 = vadd.f32 %v3060, %v3117
        %v3189 = vadd.f32 %v3061, %v3117
        %v3190 = vadd.f32 %v3062, %v3122
        %v3191 = vadd.f32 %v3063, %v3122
        %v3192 = vadd.f32 %v3064, %v3127
        %v3193 = vadd.f32 %v3065, %v3127
        %v3194 = vadd.f32 %v3066, %v3132
        %v3195 = vadd.f32 %v3067, %v3132
        %v3196 = vadd.f32 %v3068, %v3137
        %v3197 = vadd.f32 %v3069, %v3137
        %v3198 = vadd.f32 %v3070, %v3142
        %v3199 = vadd.f32 %v3071, %v3142
        %v3200 = vadd.f32 %v3072, %v3147
        %v3201 = vadd.f32 %v3073, %v3147
        %v3202 = vadd.f32 %v3074, %v3152
        %v3203 = vadd.f32 %v3075, %v3152
        %v3204 = vadd.f32 %v3076, %v3157
        %v3205 = vadd.f32 %v3077, %v3157
        %v3206 = vadd.f32 %v3078, %v3162
        %v3207 = vadd.f32 %v3079, %v3162
        %v3208 = vadd.f32 %v3080, %v3167
        %v3209 = vadd.f32 %v3081, %v3167
        %v3210 = vadd.f32 %v3082, %v3172
        %v3211 = vadd.f32 %v3083, %v3172
        %v3212 = vadd.f32 %v3084, %v3177
        %v3213 = vadd.f32 %v3085, %v3177
        %v3214 = vadd.f32 %v3086, %v3182
        %v3215 = vadd.f32 %v3087, %v3182
        %v3216 = vld [vmem:[%s388] sm:$0xff]
        %v3217 = vld [vmem:[%s388 + $0x8] sm:$0xff]
        %v3218 = vld [vmem:[%s388 + $0x10] sm:$0xff]
        %v3219 = vld [vmem:[%s388 + $0x18] sm:$0xff]
        %v3220 = vld [vmem:[%s388 + $0x20] sm:$0xff]
        %v3221 = vld [vmem:[%s388 + $0x28] sm:$0xff]
        %v3222 = vld [vmem:[%s388 + $0x30] sm:$0xff]
        %v3223 = vld [vmem:[%s388 + $0x38] sm:$0xff]
        %v3224 = vld [vmem:[%s394] sm:$0xff]
        %v3225 = vld [vmem:[%s394 + $0x8] sm:$0xff]
        %v3226 = vld [vmem:[%s394 + $0x10] sm:$0xff]
        %v3227 = vld [vmem:[%s394 + $0x18] sm:$0xff]
        %v3228 = vunpack.c.l.bf16 %v3224
        %v3229 = vunpack.c.h.bf16 %v3224
        %v3230 = vunpack.c.l.bf16 %v3225
        %v3231 = vunpack.c.h.bf16 %v3225
        %v3232 = vunpack.c.l.bf16 %v3226
        %v3233 = vunpack.c.h.bf16 %v3226
        %v3234 = vunpack.c.l.bf16 %v3227
        %v3235 = vunpack.c.h.bf16 %v3227
        %s3236 = scalar_lea.vmem %s394, 32
        %v3237 = vld [vmem:[%s3236] sm:$0xff]
        %v3238 = vld [vmem:[%s3236 + $0x8] sm:$0xff]
        %v3239 = vld [vmem:[%s3236 + $0x10] sm:$0xff]
        %v3240 = vld [vmem:[%s3236 + $0x18] sm:$0xff]
        %v3241 = vunpack.c.l.bf16 %v3237
        %v3242 = vunpack.c.h.bf16 %v3237
        %v3243 = vunpack.c.l.bf16 %v3238
        %v3244 = vunpack.c.h.bf16 %v3238
        %v3245 = vunpack.c.l.bf16 %v3239
        %v3246 = vunpack.c.h.bf16 %v3239
        %v3247 = vunpack.c.l.bf16 %v3240
        %v3248 = vunpack.c.h.bf16 %v3240
        %s3249 = scalar_lea.vmem %s394, 64
        %v3250 = vld [vmem:[%s3249] sm:$0xff]
        %v3251 = vld [vmem:[%s3249 + $0x8] sm:$0xff]
        %v3252 = vld [vmem:[%s3249 + $0x10] sm:$0xff]
        %v3253 = vld [vmem:[%s3249 + $0x18] sm:$0xff]
        %v3254 = vunpack.c.l.bf16 %v3250
        %v3255 = vunpack.c.h.bf16 %v3250
        %v3256 = vunpack.c.l.bf16 %v3251
        %v3257 = vunpack.c.h.bf16 %v3251
        %v3258 = vunpack.c.l.bf16 %v3252
        %v3259 = vunpack.c.h.bf16 %v3252
        %v3260 = vunpack.c.l.bf16 %v3253
        %v3261 = vunpack.c.h.bf16 %v3253
        %v3262 = vtanh.pop %v3200
        %v3263 = vtanh.pop %v3201
        %v3264 = vtanh.pop %v3202
        %v3265 = vtanh.pop %v3203
        %v3266 = vtanh.pop %v3204
        %v3267 = vtanh.pop %v3205
        %v3268 = vtanh.pop %v3206
        %v3269 = vtanh.pop %v3207
        %v3270 = vmul.f32 %v3216, %v3228
        %v3271 = vmul.f32 %v3217, %v3229
        %v3272 = vmul.f32 %v3218, %v3230
        %v3273 = vmul.f32 %v3219, %v3231
        %v3274 = vmul.f32 %v3220, %v3232
        %v3275 = vmul.f32 %v3221, %v3233
        %v3276 = vmul.f32 %v3222, %v3234
        %v3277 = vmul.f32 %v3223, %v3235
        %v3278 = vadd.f32 %v3184, %v3270
        %v3279 = vadd.f32 %v3185, %v3271
        %v3280 = vadd.f32 %v3186, %v3272
        %v3281 = vadd.f32 %v3187, %v3273
        %v3282 = vadd.f32 %v3188, %v3274
        %v3283 = vadd.f32 %v3189, %v3275
        %v3284 = vadd.f32 %v3190, %v3276
        %v3285 = vadd.f32 %v3191, %v3277
        %v3286 = vmul.f32 %v3278, 0.5
        %v3287 = vmul.f32 %v3279, 0.5
        %v3288 = vmul.f32 %v3280, 0.5
        %v3289 = vmul.f32 %v3281, 0.5
        %v3290 = vmul.f32 %v3282, 0.5
        %v3291 = vmul.f32 %v3283, 0.5
        %v3292 = vmul.f32 %v3284, 0.5
        %v3293 = vmul.f32 %v3285, 0.5
        %v3294 = vtanh.pop %v3286
        %v3295 = vtanh.pop %v3287
        %v3296 = vtanh.pop %v3288
        %v3297 = vtanh.pop %v3289
        %v3298 = vtanh.pop %v3290
        %v3299 = vtanh.pop %v3291
        %v3300 = vtanh.pop %v3292
        %v3301 = vtanh.pop %v3293
        %v3302 = vadd.f32 %v3294, 1.0
        %v3303 = vadd.f32 %v3295, 1.0
        %v3304 = vadd.f32 %v3296, 1.0
        %v3305 = vadd.f32 %v3297, 1.0
        %v3306 = vadd.f32 %v3298, 1.0
        %v3307 = vadd.f32 %v3299, 1.0
        %v3308 = vadd.f32 %v3300, 1.0
        %v3309 = vadd.f32 %v3301, 1.0
        %v3310 = vmul.f32 %v3302, 0.5
        %v3311 = vmul.f32 %v3303, 0.5
        %v3312 = vmul.f32 %v3304, 0.5
        %v3313 = vmul.f32 %v3305, 0.5
        %v3314 = vmul.f32 %v3306, 0.5
        %v3315 = vmul.f32 %v3307, 0.5
        %v3316 = vmul.f32 %v3308, 0.5
        %v3317 = vmul.f32 %v3309, 0.5
        %v3318 = vmul.f32 %v3216, %v3241
        %v3319 = vmul.f32 %v3217, %v3242
        %v3320 = vmul.f32 %v3218, %v3243
        %v3321 = vmul.f32 %v3219, %v3244
        %v3322 = vmul.f32 %v3220, %v3245
        %v3323 = vmul.f32 %v3221, %v3246
        %v3324 = vmul.f32 %v3222, %v3247
        %v3325 = vmul.f32 %v3223, %v3248
        %v3326 = vadd.f32 %v3192, %v3318
        %v3327 = vadd.f32 %v3193, %v3319
        %v3328 = vadd.f32 %v3194, %v3320
        %v3329 = vadd.f32 %v3195, %v3321
        %v3330 = vadd.f32 %v3196, %v3322
        %v3331 = vadd.f32 %v3197, %v3323
        %v3332 = vadd.f32 %v3198, %v3324
        %v3333 = vadd.f32 %v3199, %v3325
        %v3334 = vmul.f32 %v3326, 0.5
        %v3335 = vmul.f32 %v3327, 0.5
        %v3336 = vmul.f32 %v3328, 0.5
        %v3337 = vmul.f32 %v3329, 0.5
        %v3338 = vmul.f32 %v3330, 0.5
        %v3339 = vmul.f32 %v3331, 0.5
        %v3340 = vmul.f32 %v3332, 0.5
        %v3341 = vmul.f32 %v3333, 0.5
        %v3342 = vtanh.pop %v3334
        %v3343 = vtanh.pop %v3335
        %v3344 = vtanh.pop %v3336
        %v3345 = vtanh.pop %v3337
        %v3346 = vtanh.pop %v3338
        %v3347 = vtanh.pop %v3339
        %v3348 = vtanh.pop %v3340
        %v3349 = vtanh.pop %v3341
        %v3350 = vadd.f32 %v3342, 1.0
        %v3351 = vadd.f32 %v3343, 1.0
        %v3352 = vadd.f32 %v3344, 1.0
        %v3353 = vadd.f32 %v3345, 1.0
        %v3354 = vadd.f32 %v3346, 1.0
        %v3355 = vadd.f32 %v3347, 1.0
        %v3356 = vadd.f32 %v3348, 1.0
        %v3357 = vadd.f32 %v3349, 1.0
        %v3358 = vmul.f32 %v3350, 0.5
        %v3359 = vmul.f32 %v3351, 0.5
        %v3360 = vmul.f32 %v3352, 0.5
        %v3361 = vmul.f32 %v3353, 0.5
        %v3362 = vmul.f32 %v3354, 0.5
        %v3363 = vmul.f32 %v3355, 0.5
        %v3364 = vmul.f32 %v3356, 0.5
        %v3365 = vmul.f32 %v3357, 0.5
        %v3366 = vmul.f32 %v3358, %v3216
        %v3367 = vmul.f32 %v3359, %v3217
        %v3368 = vmul.f32 %v3360, %v3218
        %v3369 = vmul.f32 %v3361, %v3219
        %v3370 = vmul.f32 %v3362, %v3220
        %v3371 = vmul.f32 %v3363, %v3221
        %v3372 = vmul.f32 %v3364, %v3222
        %v3373 = vmul.f32 %v3365, %v3223
        %v3374 = vmul.f32 %v3310, %v3262
        %v3375 = vmul.f32 %v3311, %v3263
        %v3376 = vmul.f32 %v3312, %v3264
        %v3377 = vmul.f32 %v3313, %v3265
        %v3378 = vmul.f32 %v3314, %v3266
        %v3379 = vmul.f32 %v3315, %v3267
        %v3380 = vmul.f32 %v3316, %v3268
        %v3381 = vmul.f32 %v3317, %v3269
        %v3382 = vadd.f32 %v3366, %v3374
        %v3383 = vadd.f32 %v3367, %v3375
        %v3384 = vadd.f32 %v3368, %v3376
        %v3385 = vadd.f32 %v3369, %v3377
        %v3386 = vadd.f32 %v3370, %v3378
        %v3387 = vadd.f32 %v3371, %v3379
        %v3388 = vadd.f32 %v3372, %v3380
        %v3389 = vadd.f32 %v3373, %v3381
        %v3390 = vmul.f32 %v3382, %v3254
        %v3391 = vmul.f32 %v3383, %v3255
        %v3392 = vmul.f32 %v3384, %v3256
        %v3393 = vmul.f32 %v3385, %v3257
        %v3394 = vmul.f32 %v3386, %v3258
        %v3395 = vmul.f32 %v3387, %v3259
        %v3396 = vmul.f32 %v3388, %v3260
        %v3397 = vmul.f32 %v3389, %v3261
        %v3398 = vadd.f32 %v3208, %v3390
        %v3399 = vadd.f32 %v3209, %v3391
        %v3400 = vadd.f32 %v3210, %v3392
        %v3401 = vadd.f32 %v3211, %v3393
        %v3402 = vadd.f32 %v3212, %v3394
        %v3403 = vadd.f32 %v3213, %v3395
        %v3404 = vadd.f32 %v3214, %v3396
        %v3405 = vadd.f32 %v3215, %v3397
        %v3406 = vmul.f32 %v3398, 0.5
        %v3407 = vmul.f32 %v3399, 0.5
        %v3408 = vmul.f32 %v3400, 0.5
        %v3409 = vmul.f32 %v3401, 0.5
        %v3410 = vmul.f32 %v3402, 0.5
        %v3411 = vmul.f32 %v3403, 0.5
        %v3412 = vmul.f32 %v3404, 0.5
        %v3413 = vmul.f32 %v3405, 0.5
        %v3414 = vtanh.pop %v3406
        %v3415 = vtanh.pop %v3407
        %v3416 = vtanh.pop %v3408
        %v3417 = vtanh.pop %v3409
        %v3418 = vtanh.pop %v3410
        %v3419 = vtanh.pop %v3411
        %v3420 = vtanh.pop %v3412
        %v3421 = vtanh.pop %v3413
        %v3422 = vadd.f32 %v3414, 1.0
        %v3423 = vadd.f32 %v3415, 1.0
        %v3424 = vadd.f32 %v3416, 1.0
        %v3425 = vadd.f32 %v3417, 1.0
        %v3426 = vadd.f32 %v3418, 1.0
        %v3427 = vadd.f32 %v3419, 1.0
        %v3428 = vadd.f32 %v3420, 1.0
        %v3429 = vadd.f32 %v3421, 1.0
        %v3430 = vmul.f32 %v3422, 0.5
        %v3431 = vmul.f32 %v3423, 0.5
        %v3432 = vmul.f32 %v3424, 0.5
        %v3433 = vmul.f32 %v3425, 0.5
        %v3434 = vmul.f32 %v3426, 0.5
        %v3435 = vmul.f32 %v3427, 0.5
        %v3436 = vmul.f32 %v3428, 0.5
        %v3437 = vmul.f32 %v3429, 0.5
        %v3438 = vtanh.pop %v3382
        %v3439 = vtanh.pop %v3383
        %v3440 = vtanh.pop %v3384
        %v3441 = vtanh.pop %v3385
        %v3442 = vtanh.pop %v3386
        %v3443 = vtanh.pop %v3387
        %v3444 = vtanh.pop %v3388
        %v3445 = vtanh.pop %v3389
        %v3446 = vmul.f32 %v3430, %v3438
        %v3447 = vmul.f32 %v3431, %v3439
        %v3448 = vmul.f32 %v3432, %v3440
        %v3449 = vmul.f32 %v3433, %v3441
        %v3450 = vmul.f32 %v3434, %v3442
        %v3451 = vmul.f32 %v3435, %v3443
        %v3452 = vmul.f32 %v3436, %v3444
        %v3453 = vmul.f32 %v3437, %v3445
        %3454 = vst [vmem:[%s358] sm:$0xff] %v3446
        %3455 = vst [vmem:[%s358 + $0x8] sm:$0xff] %v3447
        %3456 = vst [vmem:[%s358 + $0x10] sm:$0xff] %v3448
        %3457 = vst [vmem:[%s358 + $0x18] sm:$0xff] %v3449
        %3458 = vst [vmem:[%s358 + $0x20] sm:$0xff] %v3450
        %3459 = vst [vmem:[%s358 + $0x28] sm:$0xff] %v3451
        %3460 = vst [vmem:[%s358 + $0x30] sm:$0xff] %v3452
        %3461 = vst [vmem:[%s358 + $0x38] sm:$0xff] %v3453
        %3462 = vst [vmem:[%s365] sm:$0xff] %v3382
        %3463 = vst [vmem:[%s365 + $0x8] sm:$0xff] %v3383
        %3464 = vst [vmem:[%s365 + $0x10] sm:$0xff] %v3384
        %3465 = vst [vmem:[%s365 + $0x18] sm:$0xff] %v3385
        %3466 = vst [vmem:[%s365 + $0x20] sm:$0xff] %v3386
        %3467 = vst [vmem:[%s365 + $0x28] sm:$0xff] %v3387
        %3468 = vst [vmem:[%s365 + $0x30] sm:$0xff] %v3388
        %3469 = vst [vmem:[%s365 + $0x38] sm:$0xff] %v3389
        %s3470 = sand.u32 %s197, 1
        %s3471 = scalar_lea.sflag [#allocation3], %s3470
        %s3472 = sand.u32 %s197, 1
        %s3473 = smul.addr %s3472, 64
        %s3474 = scalar_lea.vmem [#allocation2], %s3473
        %s3475 = sand.u32 %s225, 1
        %s3476 = scalar_lea.sflag [#allocation5], %s3475
        %s3477 = sand.u32 %s225, 1
        %s3478 = smul.addr %s3477, 64
        %s3479 = scalar_lea.vmem [#allocation4], %s3478
        // Predicated region
        $region45: #{tpu_custom_call.1} parent=43 // pred_check
          %p3480 = pneg %p207
        $region46: #{tpu_custom_call.1} parent=43 // pred_check_branch
          %3482 = sbr.rel (%p3480) target = $region48
        $region47: #{tpu_custom_call.1} parent=43 // pred_region
          %s3483 = smul.u32 2, %s30
          %s3485 = ssub.s32 1024, 1024
          %3486 = vsyncadd %s3471, %s3485
          %s3487 = smul.addr %s29, 8
          %s3488 = sadd.s32 %s3483, %s3487
          %s3489 = smul.addr %s3488, 128
          %s3490 = scalar_lea.hbm %s6, %s3489
          %s3491 = sshll.u32 %s3474, 4
          %s3492 = int_to_ptr.vmem [resolvable:$true] %s3491
          %3497 = dma.vmem_to_hbm [thread:$0]  %s3492, 1024, %s3490, %s3471, 256, 256, 16
        $region48: #{tpu_custom_call.1} parent=43 // pred_fallthru
          _
        // Predicated region
        $region49: #{tpu_custom_call.1} parent=43 // pred_check
          %p3498 = pneg %p235
        $region50: #{tpu_custom_call.1} parent=43 // pred_check_branch
          %3500 = sbr.rel (%p3498) target = $region52
        $region51: #{tpu_custom_call.1} parent=43 // pred_region
          %s3501 = smul.u32 2, %s30
          %s3503 = ssub.s32 1024, 1024
          %3504 = vsyncadd %s3476, %s3503
          %s3505 = smul.addr %s29, 8
          %s3506 = sadd.s32 %s3501, %s3505
          %s3507 = smul.addr %s3506, 128
          %s3508 = scalar_lea.hbm %s7, %s3507
          %s3509 = sshll.u32 %s3479, 4
          %s3510 = int_to_ptr.vmem [resolvable:$true] %s3509
          %3515 = dma.vmem_to_hbm [thread:$0]  %s3510, 1024, %s3508, %s3476, 256, 256, 16
        $region52: #{tpu_custom_call.1} parent=43 // pred_fallthru
          _
      $region44: #{tpu_custom_call.1} parent=5 // pred_fallthru
        _
      %p3516 = scmp.le.s32.totalorder 2, %s20
      // Predicated region
      $region53: #{tpu_custom_call.1} parent=5 // pred_check
        %p3517 = pneg %p3516
      $region54: #{tpu_custom_call.1} parent=5 // pred_check_branch
        %3519 = sbr.rel (%p3517) target = $region56
      $region55: #{tpu_custom_call.1} parent=5 // pred_region
        %s3520 = ssub.s32 %s20, 2
        // Predicated region
        $region57: #{tpu_custom_call.1} parent=55 // pred_check
          %p3521 = pneg %p213
        $region58: #{tpu_custom_call.1} parent=55 // pred_check_branch
          %3523 = sbr.rel (%p3521) target = $region60
        $region59: #{tpu_custom_call.1} parent=55 // pred_region
          %s3524 = sand.u32 %s198, 1
          %s3525 = scalar_lea.sflag [#allocation3], %s3524
          %s3526 = sand.u32 %s198, 1
          %s3527 = smul.addr %s3526, 64
          %s3528 = scalar_lea.vmem [#allocation2], %s3527
          %3529 = dma.done %s3525, 1024
        $region60: #{tpu_custom_call.1} parent=55 // pred_fallthru
          _
        // Predicated region
        $region61: #{tpu_custom_call.1} parent=55 // pred_check
          %p3530 = pneg %p241
        $region62: #{tpu_custom_call.1} parent=55 // pred_check_branch
          %3532 = sbr.rel (%p3530) target = $region64
        $region63: #{tpu_custom_call.1} parent=55 // pred_region
          %s3533 = sand.u32 %s226, 1
          %s3534 = scalar_lea.sflag [#allocation5], %s3533
          %s3535 = sand.u32 %s226, 1
          %s3536 = smul.addr %s3535, 64
          %s3537 = scalar_lea.vmem [#allocation4], %s3536
          %3538 = dma.done %s3534, 1024
        $region64: #{tpu_custom_call.1} parent=55 // pred_fallthru
          _
      $region56: #{tpu_custom_call.1} parent=5 // pred_fallthru
        _
    $region6: #{tpu_custom_call.1} parent=1 // loop_footer
      %s24 = sadd.s32 1, %s20
    $region7: #{tpu_custom_call.1} parent=1 // loop_footer_branch
      %19 = sbr.rel target = $region3
    $region8: #{tpu_custom_call.1} parent=1 // loop_exit
      _
    %3539 = vsyncpa [#allocation3], 1
    %s3540 = scalar_lea.sflag [#allocation3], 1
    %3541 = vsyncpa %s3540, 1
    %3542 = vsyncpa [#allocation5], 1
    %s3543 = scalar_lea.sflag [#allocation5], 1
    %3544 = vsyncpa %s3543, 1

</llo_original>
